<compile_context>
chip_gen: v5e
topology: v5e:2x2
jax: 0.10.0
libtpu: 0.0.40
codegen_flags: <defaults>
</compile_context>

<pallas_src>
import functools

import jax
import jax.numpy as jnp
from jax.experimental import pallas as pl
from jax.experimental.pallas import tpu as pltpu

# bf16 operands on the MXU (f32 accumulation): ~2-4x MXU throughput on
# v6e/v7x and half the DMA/VMEM bytes for x and the weights.  Casts happen in
# the JAX wrapper (v5e's VPU has no native bf16, so the kernel's elementwise
# path stays f32).  Set to jnp.float32 for bit-exact f32 semantics.
MATMUL_DTYPE = jnp.bfloat16


def _round_up(x, m):
    return (x + m - 1) // m * m


# ---------------------------------------------------------------------------
# Fused SPP kernel: cv1 -> SPPF pool cascade -> (concat folded into) cv2.
# ---------------------------------------------------------------------------
def _spp_fused_kernel(x_ref, w1_ref, b1_ref, w2_ref, b2_ref, o_ref, buf_ref,
                      *, k):
    _, H, W, C1 = x_ref.shape
    C_ = w1_ref.shape[1]
    C2 = w2_ref.shape[2]
    p = k // 2
    Hb, Wb, _ = buf_ref.shape           # Hb = H + 2p, Wb = round_up(W + p, 8)
    M = H * W
    HWb = H * Wb

    # Zero the padded pooling scratch ONCE.  Only the data region
    # [p:p+H, 0:W] is ever rewritten, so the zero border survives all later
    # grid steps.  (Requires the N grid axis to be "arbitrary": a megacore-
    # split "parallel" axis would give the second core no program_id == 0.)
    @pl.when(pl.program_id(0) == 0)
    def _init():
        buf_ref[...] = jnp.zeros(buf_ref.shape, buf_ref.dtype)

    # ---- cv1: 1x1 conv (BN scale pre-folded into W1) + BN bias + ReLU6 ----
    x2 = x_ref[0].reshape(M, C1)                    # layout no-op if W % 8 == 0
    y = jnp.dot(x2, w1_ref[...], preferred_element_type=jnp.float32)
    y = jnp.clip(y + b1_ref[...], 0.0, 6.0)         # (M, C_) f32, >= 0

    def mm(a_mc, i):
        # cv2 branch i of the virtual concat [y, p5, p9, p13].
        return jnp.dot(a_mc.astype(MATMUL_DTYPE), w2_ref[i],
                       preferred_element_type=jnp.float32)

    def pool():
        # k x k, stride-1, 'same'-padded max pool of the buffer data region.
        # Zero padding is exact ONLY because the data is post-ReLU6 (>= 0);
        # a signed activation would let the zero border win the max.
        xp = buf_ref[...]                           # (Hb, Wb, C_)
        # H pass: leading-dim slices (no lane/sublane shifts -> free).
        t = xp[0:H]
        for dh in range(1, k):
            t = jnp.maximum(t, xp[dh:dh + H])       # (H, Wb, C_)
        # W pass: circular sublane rotations on the XLU (overlap VPU maxes).
        # Flattened 2-D roll; the shift set {+-d} is symmetric (so it is
        # independent of the roll sign convention) and every wrapped element
        # lands in the zero-pad columns [W, Wb), so the result is exact.
        t2 = t.reshape(HWb, C_)                     # no-op: Wb % 8 == 0
        o2 = t2
        for dw in range(1, p + 1):
            o2 = jnp.maximum(o2, pltpu.roll(t2, dw, axis=0))
            o2 = jnp.maximum(o2, pltpu.roll(t2, HWb - dw, axis=0))
        return o2.reshape(H, Wb, C_)[:, 0:W, :]     # (H, W, C_)

    # ---- SPPF cascade interleaved with the cv2 branch matmuls -------------
    buf_ref[p:p + H, 0:W, :] = y.reshape(H, W, C_)  # column-0 aligned store
    acc = mm(y, 0)
    p5 = pool()
    buf_ref[p:p + H, 0:W, :] = p5
    acc = acc + mm(p5.reshape(M, C_), 1)
    p9 = pool()
    buf_ref[p:p + H, 0:W, :] = p9
    acc = acc + mm(p9.reshape(M, C_), 2)
    p13 = pool()                                    # no write-back needed
    acc = acc + mm(p13.reshape(M, C_), 3)

    # ---- cv2: BN bias + ReLU6 ---------------------------------------------
    out = jnp.clip(acc + b2_ref[...], 0.0, 6.0)
    o_ref[0] = out.reshape(H, W, C2).astype(o_ref.dtype)


def spp_forward_nhwc(x_nhwc, cv1_params, cv2_params, ks=(5, 9, 13)):
    """Fused SPP forward, NHWC in / NHWC out (no layout transposes)."""
    assert tuple(ks) == (5, 9, 13), "SPPF cascade below assumes k=(5, 9, 13)"
    k = ks[0]
    p = k // 2
    N, H, W, C1 = x_nhwc.shape
    w1, s1, b1 = cv1_params
    w2, s2, b2 = cv2_params
    C_ = w1.shape[1]
    C2 = w2.shape[1]
    assert w2.shape[0] == 4 * C_

    # Fold BN scale into the 1x1 conv weights; cast matmul operands to bf16
    # here in the wrapper (biases and all in-kernel elementwise math are f32).
    w1b = (w1 * s1).astype(MATMUL_DTYPE)                      # (C1, C_)
    w2b = (w2 * s2).astype(MATMUL_DTYPE).reshape(4, C_, C2)   # concat order
    xb = x_nhwc.astype(MATMUL_DTYPE)

    Hb = H + 2 * p                       # explicit zero rows above/below data
    Wb = _round_up(W + p, 8)             # >= p zero cols: right pad + roll wrap

    kern = functools.partial(_spp_fused_kernel, k=k)
    return pl.pallas_call(
        kern,
        out_shape=jax.ShapeDtypeStruct((N, H, W, C2), x_nhwc.dtype),
        grid_spec=pltpu.PrefetchScalarGridSpec(
            num_scalar_prefetch=0,
            grid=(N,),
            in_specs=[
                pl.BlockSpec((1, H, W, C1), lambda n: (n, 0, 0, 0)),
                pl.BlockSpec((C1, C_), lambda n: (0, 0)),
                pl.BlockSpec((1, C_), lambda n: (0, 0)),
                pl.BlockSpec((4, C_, C2), lambda n: (0, 0, 0)),
                pl.BlockSpec((1, C2), lambda n: (0, 0)),
            ],
            out_specs=pl.BlockSpec((1, H, W, C2), lambda n: (n, 0, 0, 0)),
            scratch_shapes=[pltpu.VMEM((Hb, Wb, C_), jnp.float32)],
        ),
        # "arbitrary": the zeroed-once scratch border is reused across images,
        # so the N axis must not be megacore-split (v7x dual-core should come
        # from H-strip tiling instead -- see TODO at top).
        compiler_params=pltpu.CompilerParams(
            dimension_semantics=("arbitrary",)),
    )(xb, w1b, b1, w2b, b2)


def spp_forward(x_nchw, cv1_params, cv2_params, ks=(5, 9, 13)):
    """PyTorch-interface (NCHW) wrapper around the NHWC-native fused kernel.
    TODO(synk): keep the surrounding model NHWC end-to-end (call
      spp_forward_nhwc directly) to drop these two full-tensor transposes."""
    x_nhwc = jnp.transpose(x_nchw, (0, 2, 3, 1))
    out = spp_forward_nhwc(x_nhwc, cv1_params, cv2_params, ks=ks)
    return jnp.transpose(out, (0, 3, 1, 2))


# ---------------------------------------------------------------------------
# Deterministic parameter construction (1x1 conv + BN, matching ops.Conv2D
# with enable_bias=False, enable_batch_norm=True, activation=ReLU6).
# ---------------------------------------------------------------------------
def make_conv_params(key, cin, cout):
    kw, kg, kb, km, kv = jax.random.split(key, 5)
    w = jax.random.normal(kw, (cin, cout), jnp.float32) / jnp.sqrt(float(cin))
    gamma = 1.0 + 0.1 * jax.random.normal(kg, (cout,), jnp.float32)
    beta = 0.1 * jax.random.normal(kb, (cout,), jnp.float32)
    mean = 0.1 * jax.random.normal(km, (cout,), jnp.float32)
    var = jnp.abs(jax.random.normal(kv, (cout,), jnp.float32)) + 1.0
    eps = 1e-5
    scale = gamma / jnp.sqrt(var + eps)
    bias = beta - mean * scale
    return w, scale.reshape(1, cout), bias.reshape(1, cout)


def make_spp_params(key, c1, c2, ks=(5, 9, 13)):
    c_ = c1 // 2
    k1, k2 = jax.random.split(key)
    cv1 = make_conv_params(k1, c1, c_)
    cv2 = make_conv_params(k2, c_ * (len(ks) + 1), c2)
    return cv1, cv2


if __name__ == "__main__":
    key = jax.random.PRNGKey(0)
    kx, kp = jax.random.split(key)

    N, C1, H, W = 2, 4, 16, 16
    C2 = 8

    x = jax.random.normal(kx, (N, C1, H, W), jnp.float32)
    cv1_params, cv2_params = make_spp_params(kp, C1, C2)

    out = spp_forward(x, cv1_params, cv2_params)
    jax.block_until_ready(out)
    assert out.shape == (N, C2, H, W), out.shape
    print("KERNEL_OK")
</pallas_src>

<mosaic_0001>
module attributes {stable_mosaic.version = 11 : i64} {
  func.func @_spp_fused_kernel(%arg0: i32, %arg1: memref<1x16x16x4xbf16, #tpu.memory_space<vmem>>, %arg2: memref<4x2xbf16, #tpu.memory_space<vmem>>, %arg3: memref<1x2xf32, #tpu.memory_space<vmem>>, %arg4: memref<4x2x8xbf16, #tpu.memory_space<vmem>>, %arg5: memref<1x8xf32, #tpu.memory_space<vmem>>, %arg6: memref<1x16x16x8xf32, #tpu.memory_space<vmem>>, %arg7: memref<20x24x2xf32, #tpu.memory_space<vmem>>) attributes {dimension_semantics = [#tpu.dimension_semantics<arbitrary>], iteration_bounds = array<i64: 2>, scalar_prefetch = 0 : i64, scratch_operands = 1 : i64, tpu.core_type = #tpu.core_type<tc>, window_params = [{transform_indices = @transform_0, window_bounds = array<i64: 1, 16, 16, 4>}, {pipeline_mode = #tpu.pipeline_mode<synchronous>, transform_indices = @transform_1, window_bounds = array<i64: 4, 2>}, {pipeline_mode = #tpu.pipeline_mode<synchronous>, transform_indices = @transform_2, window_bounds = array<i64: 1, 2>}, {pipeline_mode = #tpu.pipeline_mode<synchronous>, transform_indices = @transform_3, window_bounds = array<i64: 4, 2, 8>}, {pipeline_mode = #tpu.pipeline_mode<synchronous>, transform_indices = @transform_4, window_bounds = array<i64: 1, 8>}, {transform_indices = @transform_5, window_bounds = array<i64: 1, 16, 16, 8>}]} {
    %c0_i32 = arith.constant 0 : i32
    %0 = arith.cmpi eq, %arg0, %c0_i32 : i32
    %1 = arith.extui %0 : i1 to i32
    %c0_i32_0 = arith.constant 0 : i32
    %2 = arith.cmpi ne, %1, %c0_i32_0 : i32
    scf.if %2 {
      %cst_57 = arith.constant 0.000000e+00 : f32
      %115 = vector.broadcast %cst_57 : f32 to vector<20x24x2xf32>
      %c0_58 = arith.constant 0 : index
      %c0_59 = arith.constant 0 : index
      %c0_60 = arith.constant 0 : index
      %116 = vector.load %arg7[%c0_58, %c0_59, %c0_60] : memref<20x24x2xf32, #tpu.memory_space<vmem>>, vector<20x24x2xf32>
      tpu.vector_store %arg7[%c0_58, %c0_59, %c0_60], %115 {strides = array<i32>} : memref<20x24x2xf32, #tpu.memory_space<vmem>>, vector<20x24x2xf32>,
    } else {
    }
    %c0 = arith.constant 0 : index
    %c0_1 = arith.constant 0 : index
    %c0_2 = arith.constant 0 : index
    %c0_3 = arith.constant 0 : index
    %3 = vector.load %arg1[%c0, %c0_1, %c0_2, %c0_3] : memref<1x16x16x4xbf16, #tpu.memory_space<vmem>>, vector<1x16x16x4xbf16>
    %4 = vector.shape_cast %3 : vector<1x16x16x4xbf16> to vector<16x16x4xbf16>
    %5 = vector.shape_cast %4 : vector<16x16x4xbf16> to vector<256x4xbf16>
    %c0_4 = arith.constant 0 : index
    %c0_5 = arith.constant 0 : index
    %6 = vector.load %arg2[%c0_4, %c0_5] : memref<4x2xbf16, #tpu.memory_space<vmem>>, vector<4x2xbf16>
    %cst = arith.constant dense<0.000000e+00> : vector<256x2xf32>
    %7 = tpu.matmul %5, %6, %cst {dimension_numbers = #tpu.dot_dimension_numbers<[1], [0], [0], [1], [0, 0, 1, 1], [], []>} : vector<256x4xbf16>, vector<4x2xbf16>, vector<256x2xf32> -> vector<256x2xf32>
    %c0_6 = arith.constant 0 : index
    %c0_7 = arith.constant 0 : index
    %8 = vector.load %arg3[%c0_6, %c0_7] : memref<1x2xf32, #tpu.memory_space<vmem>>, vector<1x2xf32>
    %9 = vector.broadcast %8 : vector<1x2xf32> to vector<256x2xf32>
    %10 = arith.addf %7, %9 : vector<256x2xf32>
    %cst_8 = arith.constant 0.000000e+00 : f32
    %cst_9 = arith.constant 6.000000e+00 : f32
    %11 = vector.broadcast %cst_8 : f32 to vector<256x2xf32>
    %12 = arith.maximumf %11, %10 : vector<256x2xf32>
    %13 = vector.broadcast %cst_9 : f32 to vector<256x2xf32>
    %14 = arith.minimumf %13, %12 : vector<256x2xf32>
    %15 = vector.shape_cast %14 : vector<256x2xf32> to vector<16x16x2xf32>
    %c2 = arith.constant 2 : index
    %c0_10 = arith.constant 0 : index
    %c0_11 = arith.constant 0 : index
    %16 = vector.load %arg7[%c2, %c0_10, %c0_11] : memref<20x24x2xf32, #tpu.memory_space<vmem>>, vector<16x16x2xf32>
    tpu.vector_store %arg7[%c2, %c0_10, %c0_11], %15 {strides = array<i32>} : memref<20x24x2xf32, #tpu.memory_space<vmem>>, vector<16x16x2xf32>,
    %17 = arith.truncf %14 : vector<256x2xf32> to vector<256x2xbf16>
    %c0_12 = arith.constant 0 : index
    %c0_13 = arith.constant 0 : index
    %c0_14 = arith.constant 0 : index
    %18 = vector.load %arg4[%c0_12, %c0_13, %c0_14] : memref<4x2x8xbf16, #tpu.memory_space<vmem>>, vector<1x2x8xbf16>
    %19 = vector.shape_cast %18 : vector<1x2x8xbf16> to vector<2x8xbf16>
    %cst_15 = arith.constant dense<0.000000e+00> : vector<256x8xf32>
    %20 = tpu.matmul %17, %19, %cst_15 {dimension_numbers = #tpu.dot_dimension_numbers<[1], [0], [0], [1], [0, 0, 1, 1], [], []>} : vector<256x2xbf16>, vector<2x8xbf16>, vector<256x8xf32> -> vector<256x8xf32>
    %c0_16 = arith.constant 0 : index
    %c0_17 = arith.constant 0 : index
    %c0_18 = arith.constant 0 : index
    %21 = vector.load %arg7[%c0_16, %c0_17, %c0_18] : memref<20x24x2xf32, #tpu.memory_space<vmem>>, vector<20x24x2xf32>
    %22 = vector.extract_strided_slice %21 {offsets = [0, 0, 0], sizes = [16, 24, 2], strides = [1, 1, 1]} : vector<20x24x2xf32> to vector<16x24x2xf32>
    %23 = vector.extract_strided_slice %21 {offsets = [1, 0, 0], sizes = [16, 24, 2], strides = [1, 1, 1]} : vector<20x24x2xf32> to vector<16x24x2xf32>
    %24 = arith.maximumf %22, %23 : vector<16x24x2xf32>
    %25 = vector.extract_strided_slice %21 {offsets = [2, 0, 0], sizes = [16, 24, 2], strides = [1, 1, 1]} : vector<20x24x2xf32> to vector<16x24x2xf32>
    %26 = arith.maximumf %24, %25 : vector<16x24x2xf32>
    %27 = vector.extract_strided_slice %21 {offsets = [3, 0, 0], sizes = [16, 24, 2], strides = [1, 1, 1]} : vector<20x24x2xf32> to vector<16x24x2xf32>
    %28 = arith.maximumf %26, %27 : vector<16x24x2xf32>
    %29 = vector.extract_strided_slice %21 {offsets = [4, 0, 0], sizes = [16, 24, 2], strides = [1, 1, 1]} : vector<20x24x2xf32> to vector<16x24x2xf32>
    %30 = arith.maximumf %28, %29 : vector<16x24x2xf32>
    %31 = vector.shape_cast %30 : vector<16x24x2xf32> to vector<384x2xf32>
    %c1_i32 = arith.constant 1 : i32
    %32 = tpu.dynamic_rotate %31 by %c1_i32 dim 0 : vector<384x2xf32>, i32 -> vector<384x2xf32>
    %33 = arith.maximumf %31, %32 : vector<384x2xf32>
    %c383_i32 = arith.constant 383 : i32
    %34 = tpu.dynamic_rotate %31 by %c383_i32 dim 0 : vector<384x2xf32>, i32 -> vector<384x2xf32>
    %35 = arith.maximumf %33, %34 : vector<384x2xf32>
    %c2_i32 = arith.constant 2 : i32
    %36 = tpu.dynamic_rotate %31 by %c2_i32 dim 0 : vector<384x2xf32>, i32 -> vector<384x2xf32>
    %37 = arith.maximumf %35, %36 : vector<384x2xf32>
    %c382_i32 = arith.constant 382 : i32
    %38 = tpu.dynamic_rotate %31 by %c382_i32 dim 0 : vector<384x2xf32>, i32 -> vector<384x2xf32>
    %39 = arith.maximumf %37, %38 : vector<384x2xf32>
    %40 = vector.shape_cast %39 : vector<384x2xf32> to vector<16x24x2xf32>
    %41 = vector.extract_strided_slice %40 {offsets = [0, 0, 0], sizes = [16, 16, 2], strides = [1, 1, 1]} : vector<16x24x2xf32> to vector<16x16x2xf32>
    %c2_19 = arith.constant 2 : index
    %c0_20 = arith.constant 0 : index
    %c0_21 = arith.constant 0 : index
    %42 = vector.load %arg7[%c2_19, %c0_20, %c0_21] : memref<20x24x2xf32, #tpu.memory_space<vmem>>, vector<16x16x2xf32>
    tpu.vector_store %arg7[%c2_19, %c0_20, %c0_21], %41 {strides = array<i32>} : memref<20x24x2xf32, #tpu.memory_space<vmem>>, vector<16x16x2xf32>,
    %43 = vector.shape_cast %41 : vector<16x16x2xf32> to vector<256x2xf32>
    %44 = arith.truncf %43 : vector<256x2xf32> to vector<256x2xbf16>
    %c1 = arith.constant 1 : index
    %c0_22 = arith.constant 0 : index
    %c0_23 = arith.constant 0 : index
    %45 = vector.load %arg4[%c1, %c0_22, %c0_23] : memref<4x2x8xbf16, #tpu.memory_space<vmem>>, vector<1x2x8xbf16>
    %46 = vector.shape_cast %45 : vector<1x2x8xbf16> to vector<2x8xbf16>
    %cst_24 = arith.constant dense<0.000000e+00> : vector<256x8xf32>
    %47 = tpu.matmul %44, %46, %cst_24 {dimension_numbers = #tpu.dot_dimension_numbers<[1], [0], [0], [1], [0, 0, 1, 1], [], []>} : vector<256x2xbf16>, vector<2x8xbf16>, vector<256x8xf32> -> vector<256x8xf32>
    %48 = arith.addf %20, %47 : vector<256x8xf32>
    %c0_25 = arith.constant 0 : index
    %c0_26 = arith.constant 0 : index
    %c0_27 = arith.constant 0 : index
    %49 = vector.load %arg7[%c0_25, %c0_26, %c0_27] : memref<20x24x2xf32, #tpu.memory_space<vmem>>, vector<20x24x2xf32>
    %50 = vector.extract_strided_slice %49 {offsets = [0, 0, 0], sizes = [16, 24, 2], strides = [1, 1, 1]} : vector<20x24x2xf32> to vector<16x24x2xf32>
    %51 = vector.extract_strided_slice %49 {offsets = [1, 0, 0], sizes = [16, 24, 2], strides = [1, 1, 1]} : vector<20x24x2xf32> to vector<16x24x2xf32>
    %52 = arith.maximumf %50, %51 : vector<16x24x2xf32>
    %53 = vector.extract_strided_slice %49 {offsets = [2, 0, 0], sizes = [16, 24, 2], strides = [1, 1, 1]} : vector<20x24x2xf32> to vector<16x24x2xf32>
    %54 = arith.maximumf %52, %53 : vector<16x24x2xf32>
    %55 = vector.extract_strided_slice %49 {offsets = [3, 0, 0], sizes = [16, 24, 2], strides = [1, 1, 1]} : vector<20x24x2xf32> to vector<16x24x2xf32>
    %56 = arith.maximumf %54, %55 : vector<16x24x2xf32>
    %57 = vector.extract_strided_slice %49 {offsets = [4, 0, 0], sizes = [16, 24, 2], strides = [1, 1, 1]} : vector<20x24x2xf32> to vector<16x24x2xf32>
    %58 = arith.maximumf %56, %57 : vector<16x24x2xf32>
    %59 = vector.shape_cast %58 : vector<16x24x2xf32> to vector<384x2xf32>
    %c1_i32_28 = arith.constant 1 : i32
    %60 = tpu.dynamic_rotate %59 by %c1_i32_28 dim 0 : vector<384x2xf32>, i32 -> vector<384x2xf32>
    %61 = arith.maximumf %59, %60 : vector<384x2xf32>
    %c383_i32_29 = arith.constant 383 : i32
    %62 = tpu.dynamic_rotate %59 by %c383_i32_29 dim 0 : vector<384x2xf32>, i32 -> vector<384x2xf32>
    %63 = arith.maximumf %61, %62 : vector<384x2xf32>
    %c2_i32_30 = arith.constant 2 : i32
    %64 = tpu.dynamic_rotate %59 by %c2_i32_30 dim 0 : vector<384x2xf32>, i32 -> vector<384x2xf32>
    %65 = arith.maximumf %63, %64 : vector<384x2xf32>
    %c382_i32_31 = arith.constant 382 : i32
    %66 = tpu.dynamic_rotate %59 by %c382_i32_31 dim 0 : vector<384x2xf32>, i32 -> vector<384x2xf32>
    %67 = arith.maximumf %65, %66 : vector<384x2xf32>
    %68 = vector.shape_cast %67 : vector<384x2xf32> to vector<16x24x2xf32>
    %69 = vector.extract_strided_slice %68 {offsets = [0, 0, 0], sizes = [16, 16, 2], strides = [1, 1, 1]} : vector<16x24x2xf32> to vector<16x16x2xf32>
    %c2_32 = arith.constant 2 : index
    %c0_33 = arith.constant 0 : index
    %c0_34 = arith.constant 0 : index
    %70 = vector.load %arg7[%c2_32, %c0_33, %c0_34] : memref<20x24x2xf32, #tpu.memory_space<vmem>>, vector<16x16x2xf32>
    tpu.vector_store %arg7[%c2_32, %c0_33, %c0_34], %69 {strides = array<i32>} : memref<20x24x2xf32, #tpu.memory_space<vmem>>, vector<16x16x2xf32>,
    %71 = vector.shape_cast %69 : vector<16x16x2xf32> to vector<256x2xf32>
    %72 = arith.truncf %71 : vector<256x2xf32> to vector<256x2xbf16>
    %c2_35 = arith.constant 2 : index
    %c0_36 = arith.constant 0 : index
    %c0_37 = arith.constant 0 : index
    %73 = vector.load %arg4[%c2_35, %c0_36, %c0_37] : memref<4x2x8xbf16, #tpu.memory_space<vmem>>, vector<1x2x8xbf16>
    %74 = vector.shape_cast %73 : vector<1x2x8xbf16> to vector<2x8xbf16>
    %cst_38 = arith.constant dense<0.000000e+00> : vector<256x8xf32>
    %75 = tpu.matmul %72, %74, %cst_38 {dimension_numbers = #tpu.dot_dimension_numbers<[1], [0], [0], [1], [0, 0, 1, 1], [], []>} : vector<256x2xbf16>, vector<2x8xbf16>, vector<256x8xf32> -> vector<256x8xf32>
    %76 = arith.addf %48, %75 : vector<256x8xf32>
    %c0_39 = arith.constant 0 : index
    %c0_40 = arith.constant 0 : index
    %c0_41 = arith.constant 0 : index
    %77 = vector.load %arg7[%c0_39, %c0_40, %c0_41] : memref<20x24x2xf32, #tpu.memory_space<vmem>>, vector<20x24x2xf32>
    %78 = vector.extract_strided_slice %77 {offsets = [0, 0, 0], sizes = [16, 24, 2], strides = [1, 1, 1]} : vector<20x24x2xf32> to vector<16x24x2xf32>
    %79 = vector.extract_strided_slice %77 {offsets = [1, 0, 0], sizes = [16, 24, 2], strides = [1, 1, 1]} : vector<20x24x2xf32> to vector<16x24x2xf32>
    %80 = arith.maximumf %78, %79 : vector<16x24x2xf32>
    %81 = vector.extract_strided_slice %77 {offsets = [2, 0, 0], sizes = [16, 24, 2], strides = [1, 1, 1]} : vector<20x24x2xf32> to vector<16x24x2xf32>
    %82 = arith.maximumf %80, %81 : vector<16x24x2xf32>
    %83 = vector.extract_strided_slice %77 {offsets = [3, 0, 0], sizes = [16, 24, 2], strides = [1, 1, 1]} : vector<20x24x2xf32> to vector<16x24x2xf32>
    %84 = arith.maximumf %82, %83 : vector<16x24x2xf32>
    %85 = vector.extract_strided_slice %77 {offsets = [4, 0, 0], sizes = [16, 24, 2], strides = [1, 1, 1]} : vector<20x24x2xf32> to vector<16x24x2xf32>
    %86 = arith.maximumf %84, %85 : vector<16x24x2xf32>
    %87 = vector.shape_cast %86 : vector<16x24x2xf32> to vector<384x2xf32>
    %c1_i32_42 = arith.constant 1 : i32
    %88 = tpu.dynamic_rotate %87 by %c1_i32_42 dim 0 : vector<384x2xf32>, i32 -> vector<384x2xf32>
    %89 = arith.maximumf %87, %88 : vector<384x2xf32>
    %c383_i32_43 = arith.constant 383 : i32
    %90 = tpu.dynamic_rotate %87 by %c383_i32_43 dim 0 : vector<384x2xf32>, i32 -> vector<384x2xf32>
    %91 = arith.maximumf %89, %90 : vector<384x2xf32>
    %c2_i32_44 = arith.constant 2 : i32
    %92 = tpu.dynamic_rotate %87 by %c2_i32_44 dim 0 : vector<384x2xf32>, i32 -> vector<384x2xf32>
    %93 = arith.maximumf %91, %92 : vector<384x2xf32>
    %c382_i32_45 = arith.constant 382 : i32
    %94 = tpu.dynamic_rotate %87 by %c382_i32_45 dim 0 : vector<384x2xf32>, i32 -> vector<384x2xf32>
    %95 = arith.maximumf %93, %94 : vector<384x2xf32>
    %96 = vector.shape_cast %95 : vector<384x2xf32> to vector<16x24x2xf32>
    %97 = vector.extract_strided_slice %96 {offsets = [0, 0, 0], sizes = [16, 16, 2], strides = [1, 1, 1]} : vector<16x24x2xf32> to vector<16x16x2xf32>
    %98 = vector.shape_cast %97 : vector<16x16x2xf32> to vector<256x2xf32>
    %99 = arith.truncf %98 : vector<256x2xf32> to vector<256x2xbf16>
    %c3 = arith.constant 3 : index
    %c0_46 = arith.constant 0 : index
    %c0_47 = arith.constant 0 : index
    %100 = vector.load %arg4[%c3, %c0_46, %c0_47] : memref<4x2x8xbf16, #tpu.memory_space<vmem>>, vector<1x2x8xbf16>
    %101 = vector.shape_cast %100 : vector<1x2x8xbf16> to vector<2x8xbf16>
    %cst_48 = arith.constant dense<0.000000e+00> : vector<256x8xf32>
    %102 = tpu.matmul %99, %101, %cst_48 {dimension_numbers = #tpu.dot_dimension_numbers<[1], [0], [0], [1], [0, 0, 1, 1], [], []>} : vector<256x2xbf16>, vector<2x8xbf16>, vector<256x8xf32> -> vector<256x8xf32>
    %103 = arith.addf %76, %102 : vector<256x8xf32>
    %c0_49 = arith.constant 0 : index
    %c0_50 = arith.constant 0 : index
    %104 = vector.load %arg5[%c0_49, %c0_50] : memref<1x8xf32, #tpu.memory_space<vmem>>, vector<1x8xf32>
    %105 = vector.broadcast %104 : vector<1x8xf32> to vector<256x8xf32>
    %106 = arith.addf %103, %105 : vector<256x8xf32>
    %cst_51 = arith.constant 0.000000e+00 : f32
    %cst_52 = arith.constant 6.000000e+00 : f32
    %107 = vector.broadcast %cst_51 : f32 to vector<256x8xf32>
    %108 = arith.maximumf %107, %106 : vector<256x8xf32>
    %109 = vector.broadcast %cst_52 : f32 to vector<256x8xf32>
    %110 = arith.minimumf %109, %108 : vector<256x8xf32>
    %111 = vector.shape_cast %110 : vector<256x8xf32> to vector<16x16x8xf32>
    %c0_53 = arith.constant 0 : index
    %c0_54 = arith.constant 0 : index
    %c0_55 = arith.constant 0 : index
    %c0_56 = arith.constant 0 : index
    %112 = vector.load %arg6[%c0_53, %c0_54, %c0_55, %c0_56] : memref<1x16x16x8xf32, #tpu.memory_space<vmem>>, vector<1x16x16x8xf32>
    %113 = vector.shape_cast %112 : vector<1x16x16x8xf32> to vector<16x16x8xf32>
    %114 = vector.shape_cast %111 : vector<16x16x8xf32> to vector<1x16x16x8xf32>
    tpu.vector_store %arg6[%c0_53, %c0_54, %c0_55, %c0_56], %114 {strides = array<i32>} : memref<1x16x16x8xf32, #tpu.memory_space<vmem>>, vector<1x16x16x8xf32>,
    return
  }
  func.func @transform_0(%arg0: i32) -> (i32, i32, i32, i32) {
    %c0_i32 = arith.constant 0 : i32
    %c0_i32_0 = arith.constant 0 : i32
    %c0_i32_1 = arith.constant 0 : i32
    %c0_i32_2 = arith.constant 0 : i32
    return %arg0, %c0_i32, %c0_i32_0, %c0_i32_1 : i32, i32, i32, i32
  }
  func.func @transform_1(%arg0: i32) -> (i32, i32) {
    %c0_i32 = arith.constant 0 : i32
    %c0_i32_0 = arith.constant 0 : i32
    %c0_i32_1 = arith.constant 0 : i32
    return %c0_i32, %c0_i32_0 : i32, i32
  }
  func.func @transform_2(%arg0: i32) -> (i32, i32) {
    %c0_i32 = arith.constant 0 : i32
    %c0_i32_0 = arith.constant 0 : i32
    %c0_i32_1 = arith.constant 0 : i32
    return %c0_i32, %c0_i32_0 : i32, i32
  }
  func.func @transform_3(%arg0: i32) -> (i32, i32, i32) {
    %c0_i32 = arith.constant 0 : i32
    %c0_i32_0 = arith.constant 0 : i32
    %c0_i32_1 = arith.constant 0 : i32
    %c0_i32_2 = arith.constant 0 : i32
    return %c0_i32, %c0_i32_0, %c0_i32_1 : i32, i32, i32
  }
  func.func @transform_4(%arg0: i32) -> (i32, i32) {
    %c0_i32 = arith.constant 0 : i32
    %c0_i32_0 = arith.constant 0 : i32
    %c0_i32_1 = arith.constant 0 : i32
    return %c0_i32, %c0_i32_0 : i32, i32
  }
  func.func @transform_5(%arg0: i32) -> (i32, i32, i32, i32) {
    %c0_i32 = arith.constant 0 : i32
    %c0_i32_0 = arith.constant 0 : i32
    %c0_i32_1 = arith.constant 0 : i32
    %c0_i32_2 = arith.constant 0 : i32
    return %arg0, %c0_i32, %c0_i32_0, %c0_i32_1 : i32, i32, i32, i32
  }
}

</mosaic_0001>

<llo_original>
// kernel: tpu_custom_call.1
$region0: #{tpu_custom_call.1}
  #allocation0 [shape = 'u32[]', space=smem, size = 0x4, offset = 0x4, fixed_abs, tag = 'smem constant byte address 0x4 - core index']
  #allocation1 [shape = 'u32[72,128]{1,0:T(1,128)}', space=vmem, size = 0x9000, scoped, tag = 'internal scratch']
  #allocation2 [shape = 'f32[20,24,2]{2,1,0:T(8,128)}', space=vmem, size = 0x3c000, scoped, tag = 'scratch operand']
  %s0 = inlined_call_operand.vmem [shape: bf16[2,16,16,4], index: 0, kind: input, shape index: {}]
  %s1 = inlined_call_operand.vmem [shape: bf16[4,2], index: 1, kind: input, shape index: {}]
  %s2 = inlined_call_operand.vmem [shape: f32[1,2], index: 2, kind: input, shape index: {}]
  %s3 = inlined_call_operand.vmem [shape: bf16[4,2,8], index: 3, kind: input, shape index: {}]
  %s4 = inlined_call_operand.vmem [shape: f32[1,8], index: 4, kind: input, shape index: {}]
  %s5 = inlined_call_operand.vmem [shape: f32[2,16,16,8], index: 5, kind: output, shape index: {}]
  %s6 = sld [smem:[#allocation0]]
  $region57: #{tpu_custom_call.1} parent=0
    _
  %s8 = ssub.s32 1, %s6
  %s9 = scalar_select 0, %s8, %s6
  loop: start=0, step=1, limit=4
  $region2: #{tpu_custom_call.1} parent=0 // loop_pre_header
    _
  $region3: #{tpu_custom_call.1} parent=0 // loop_header
    %s11 = sphi 0, %s15
    %p12 = scmp.ge.s32.totalorder %s11, 4
    %s21 = sphi 0, %s23
    %s24 = sphi 0, %s21
    %s25 = sphi 0, %s24
    %s41 = sphi 0, %s25
    %s45 = sphi 0, %s45
    %s47 = sphi 0, %s45
    %s48 = sphi 0, %s47
    %s62 = sphi 0, %s48
    %s66 = sphi 0, %s66
    %s68 = sphi 0, %s66
    %s69 = sphi 0, %s68
    %s83 = sphi 0, %s69
    %s87 = sphi 0, %s87
    %s89 = sphi 0, %s87
    %s90 = sphi 0, %s89
    %s104 = sphi 0, %s90
    %s108 = sphi 0, %s108
    %s110 = sphi 0, %s108
    %s111 = sphi 0, %s110
    %s125 = sphi 0, %s111
    %s131 = sphi 0, %s133
    %s134 = sphi 0, %s131
    %s135 = sphi 0, %s134
    %s151 = sphi 0, %s135
  $region4: #{tpu_custom_call.1} parent=0 // loop_header_branch
    %14 = sbr.rel (%p12) target = $region8
  $region5: #{tpu_custom_call.1} parent=0 // loop_body
    %s16 = ssub.s32 %s11, 1
    %s17 = ssub.s32 %s11, 2
    %s18 = sadd.s32 %s11, 1
    %s19 = ssub.s32 %s11, %s18
    %p20 = scmp.eq.s32.totalorder %s19, 0
    %s22 = sadd.s32 %s21, 1
    %s23 = scalar_select %p20, %s21, %s22
    %p26 = pneg %p20
    %p27 = scmp.eq.s32.totalorder %s11, 1
    %p28 = por %p26, %p27
    %p29 = scmp.ne.s32.totalorder %s21, %s24
    %p30 = scmp.eq.s32.totalorder %s11, 0
    %p31 = por %p29, %p30
    %p32 = scmp.ne.s32.totalorder %s21, %s24
    %p33 = scmp.eq.s32.totalorder %s16, 1
    %p34 = por %p32, %p33
    %p35 = scmp.ne.s32.totalorder %s24, %s25
    %p36 = scmp.eq.s32.totalorder %s16, 0
    %p37 = por %p35, %p36
    %p38 = scmp.ne.s32.totalorder %s24, %s25
    %p39 = scmp.eq.s32.totalorder %s17, 1
    %p40 = por %p38, %p39
    %p42 = scmp.ne.s32.totalorder %s25, %s41
    %p43 = scmp.eq.s32.totalorder %s17, 0
    %p44 = por %p42, %p43
    %s46 = sadd.s32 %s45, 1
    %p49 = scmp.eq.s32.totalorder %s11, 1
    %p50 = scmp.ne.s32.totalorder %s45, %s47
    %p51 = scmp.eq.s32.totalorder %s11, 0
    %p52 = por %p50, %p51
    %p53 = scmp.ne.s32.totalorder %s45, %s47
    %p54 = scmp.eq.s32.totalorder %s16, 1
    %p55 = por %p53, %p54
    %p56 = scmp.ne.s32.totalorder %s47, %s48
    %p57 = scmp.eq.s32.totalorder %s16, 0
    %p58 = por %p56, %p57
    %p59 = scmp.ne.s32.totalorder %s47, %s48
    %p60 = scmp.eq.s32.totalorder %s17, 1
    %p61 = por %p59, %p60
    %p63 = scmp.ne.s32.totalorder %s48, %s62
    %p64 = scmp.eq.s32.totalorder %s17, 0
    %p65 = por %p63, %p64
    %s67 = sadd.s32 %s66, 1
    %p70 = scmp.eq.s32.totalorder %s11, 1
    %p71 = scmp.ne.s32.totalorder %s66, %s68
    %p72 = scmp.eq.s32.totalorder %s11, 0
    %p73 = por %p71, %p72
    %p74 = scmp.ne.s32.totalorder %s66, %s68
    %p75 = scmp.eq.s32.totalorder %s16, 1
    %p76 = por %p74, %p75
    %p77 = scmp.ne.s32.totalorder %s68, %s69
    %p78 = scmp.eq.s32.totalorder %s16, 0
    %p79 = por %p77, %p78
    %p80 = scmp.ne.s32.totalorder %s68, %s69
    %p81 = scmp.eq.s32.totalorder %s17, 1
    %p82 = por %p80, %p81
    %p84 = scmp.ne.s32.totalorder %s69, %s83
    %p85 = scmp.eq.s32.totalorder %s17, 0
    %p86 = por %p84, %p85
    %s88 = sadd.s32 %s87, 1
    %p91 = scmp.eq.s32.totalorder %s11, 1
    %p92 = scmp.ne.s32.totalorder %s87, %s89
    %p93 = scmp.eq.s32.totalorder %s11, 0
    %p94 = por %p92, %p93
    %p95 = scmp.ne.s32.totalorder %s87, %s89
    %p96 = scmp.eq.s32.totalorder %s16, 1
    %p97 = por %p95, %p96
    %p98 = scmp.ne.s32.totalorder %s89, %s90
    %p99 = scmp.eq.s32.totalorder %s16, 0
    %p100 = por %p98, %p99
    %p101 = scmp.ne.s32.totalorder %s89, %s90
    %p102 = scmp.eq.s32.totalorder %s17, 1
    %p103 = por %p101, %p102
    %p105 = scmp.ne.s32.totalorder %s90, %s104
    %p106 = scmp.eq.s32.totalorder %s17, 0
    %p107 = por %p105, %p106
    %s109 = sadd.s32 %s108, 1
    %p112 = scmp.eq.s32.totalorder %s11, 1
    %p113 = scmp.ne.s32.totalorder %s108, %s110
    %p114 = scmp.eq.s32.totalorder %s11, 0
    %p115 = por %p113, %p114
    %p116 = scmp.ne.s32.totalorder %s108, %s110
    %p117 = scmp.eq.s32.totalorder %s16, 1
    %p118 = por %p116, %p117
    %p119 = scmp.ne.s32.totalorder %s110, %s111
    %p120 = scmp.eq.s32.totalorder %s16, 0
    %p121 = por %p119, %p120
    %p122 = scmp.ne.s32.totalorder %s110, %s111
    %p123 = scmp.eq.s32.totalorder %s17, 1
    %p124 = por %p122, %p123
    %p126 = scmp.ne.s32.totalorder %s111, %s125
    %p127 = scmp.eq.s32.totalorder %s17, 0
    %p128 = por %p126, %p127
    %s129 = ssub.s32 %s11, %s18
    %p130 = scmp.eq.s32.totalorder %s129, 0
    %s132 = sadd.s32 %s131, 1
    %s133 = scalar_select %p130, %s131, %s132
    %p136 = pneg %p130
    %p137 = scmp.eq.s32.totalorder %s11, 1
    %p138 = por %p136, %p137
    %p139 = scmp.ne.s32.totalorder %s131, %s134
    %p140 = scmp.eq.s32.totalorder %s11, 0
    %p141 = por %p139, %p140
    %p142 = scmp.ne.s32.totalorder %s131, %s134
    %p143 = scmp.eq.s32.totalorder %s16, 1
    %p144 = por %p142, %p143
    %p145 = scmp.ne.s32.totalorder %s134, %s135
    %p146 = scmp.eq.s32.totalorder %s16, 0
    %p147 = por %p145, %p146
    %p148 = scmp.ne.s32.totalorder %s134, %s135
    %p149 = scmp.eq.s32.totalorder %s17, 1
    %p150 = por %p148, %p149
    %p152 = scmp.ne.s32.totalorder %s135, %s151
    %p153 = scmp.eq.s32.totalorder %s17, 0
    %p154 = por %p152, %p153
    %p155 = scmp.le.s32.totalorder 1, %s11
    %p156 = scmp.lt.s32.totalorder %s11, 3
    %p157 = pnand %p155, %p156
    %p158 = pneg %p157
    // Predicated region
    $region9: #{tpu_custom_call.1} parent=5 // pred_check
      _
    $region10: #{tpu_custom_call.1} parent=5 // pred_check_branch
      %160 = sbr.rel (%p157) target = $region12
    $region11: #{tpu_custom_call.1} parent=5 // pred_region
      %s161 = ssub.s32 %s11, 1
      // Predicated region
      $region13: #{tpu_custom_call.1} parent=11 // pred_check
        %p162 = pneg %p58
      $region14: #{tpu_custom_call.1} parent=11 // pred_check_branch
        %164 = sbr.rel (%p162) target = $region16
      $region15: #{tpu_custom_call.1} parent=11 // pred_region
        _
      $region16: #{tpu_custom_call.1} parent=11 // pred_fallthru
        _
      // Predicated region
      $region17: #{tpu_custom_call.1} parent=11 // pred_check
        %p165 = pneg %p79
      $region18: #{tpu_custom_call.1} parent=11 // pred_check_branch
        %167 = sbr.rel (%p165) target = $region20
      $region19: #{tpu_custom_call.1} parent=11 // pred_region
        _
      $region20: #{tpu_custom_call.1} parent=11 // pred_fallthru
        _
      // Predicated region
      $region21: #{tpu_custom_call.1} parent=11 // pred_check
        %p168 = pneg %p100
      $region22: #{tpu_custom_call.1} parent=11 // pred_check_branch
        %170 = sbr.rel (%p168) target = $region24
      $region23: #{tpu_custom_call.1} parent=11 // pred_region
        _
      $region24: #{tpu_custom_call.1} parent=11 // pred_fallthru
        _
      // Predicated region
      $region25: #{tpu_custom_call.1} parent=11 // pred_check
        %p171 = pneg %p121
      $region26: #{tpu_custom_call.1} parent=11 // pred_check_branch
        %173 = sbr.rel (%p171) target = $region28
      $region27: #{tpu_custom_call.1} parent=11 // pred_region
        _
      $region28: #{tpu_custom_call.1} parent=11 // pred_fallthru
        _
    $region12: #{tpu_custom_call.1} parent=5 // pred_fallthru
      _
    %p174 = scmp.lt.s32.totalorder %s11, 2
    // Predicated region
    $region29: #{tpu_custom_call.1} parent=5 // pred_check
      %p175 = pneg %p174
    $region30: #{tpu_custom_call.1} parent=5 // pred_check_branch
      %177 = sbr.rel (%p175) target = $region32
    $region31: #{tpu_custom_call.1} parent=5 // pred_region
      // Predicated region
      $region33: #{tpu_custom_call.1} parent=31 // pred_check
        %p178 = pneg %p31
      $region34: #{tpu_custom_call.1} parent=31 // pred_check_branch
        %180 = sbr.rel (%p178) target = $region36
      $region35: #{tpu_custom_call.1} parent=31 // pred_region
        %p181 = scmp.lt.s32.totalorder %s11, 1
        %s182 = scalar_select %p181, %s11, 1
        %s183 = smul.addr %s182, 32
        %s184 = smul.addr %s183, 4
        %s185 = scalar_lea.vmem %s0, %s184
      $region36: #{tpu_custom_call.1} parent=31 // pred_fallthru
        _
    $region32: #{tpu_custom_call.1} parent=5 // pred_fallthru
      _
    %p186 = scmp.le.s32.totalorder 1, %s11
    %p187 = scmp.lt.s32.totalorder %s11, 3
    %p188 = pnand %p186, %p187
    %p189 = pneg %p188
    // Predicated region
    $region37: #{tpu_custom_call.1} parent=5 // pred_check
      _
    $region38: #{tpu_custom_call.1} parent=5 // pred_check_branch
      %191 = sbr.rel (%p188) target = $region40
    $region39: #{tpu_custom_call.1} parent=5 // pred_region
      %s192 = ssub.s32 %s11, 1
      %p193 = scmp.lt.s32.totalorder %s16, 1
      %s194 = scalar_select %p193, %s16, 1
      %s195 = smul.addr %s194, 32
      %s196 = smul.addr %s195, 4
      %s197 = scalar_lea.vmem %s0, %s196
      %p198 = pneg %p37
      %p199 = pneg %p34
      %p200 = pneg %p58
      %p201 = pneg %p55
      %p202 = pneg %p79
      %p203 = pneg %p76
      %p204 = pneg %p100
      %p205 = pneg %p97
      %p206 = pneg %p121
      %p207 = pneg %p118
      %p208 = pneg %p147
      %p209 = pneg %p144
      %p210 = scmp.lt.s32.totalorder %s16, 1
      %s211 = scalar_select %p210, %s16, 1
      %s212 = smul.addr %s211, 32
      %s213 = smul.addr %s212, 8
      %s214 = scalar_lea.vmem %s5, %s213
      %p215 = scmp.lt.s32.totalorder %s16, 1
      %s216 = scalar_select %p215, %s16, 1
      %s217 = smul.addr %s216, 32
      %s218 = smul.addr %s217, 4
      %s219 = scalar_lea.vmem %s0, %s218
      %p220 = scmp.lt.s32.totalorder %s16, 1
      %s221 = scalar_select %p220, %s16, 1
      %s222 = smul.addr %s221, 32
      %s223 = smul.addr %s222, 8
      %s224 = scalar_lea.vmem %s5, %s223
      %p226 = scmp.eq.s32.totalorder %s16, 0
      // Predicated region
      $region41: #{tpu_custom_call.1} parent=39 // pred_check
        %p227 = pneg %p226
      $region42: #{tpu_custom_call.1} parent=39 // pred_check_branch
        %229 = sbr.rel (%p227) target = $region44
      $region43: #{tpu_custom_call.1} parent=39 // pred_region
        %vm230 = vcmask 15360
        %231 = vst.msk [vmem:[#allocation2] sm:$0xff] %vm230, 0.0
        %232 = vst.msk [vmem:[#allocation2 + $0x8] sm:$0xff] %vm230, 0.0
        %233 = vst.msk [vmem:[#allocation2 + $0x10] sm:$0xff] %vm230, 0.0
        %234 = vst.msk [vmem:[#allocation2 + $0x18] sm:$0xff] %vm230, 0.0
        %235 = vst.msk [vmem:[#allocation2 + $0x20] sm:$0xff] %vm230, 0.0
        %236 = vst.msk [vmem:[#allocation2 + $0x28] sm:$0xff] %vm230, 0.0
        %237 = vst.msk [vmem:[#allocation2 + $0x30] sm:$0xff] %vm230, 0.0
        %238 = vst.msk [vmem:[#allocation2 + $0x38] sm:$0xff] %vm230, 0.0
        %239 = vst.msk [vmem:[#allocation2 + $0x40] sm:$0xff] %vm230, 0.0
        %240 = vst.msk [vmem:[#allocation2 + $0x48] sm:$0xff] %vm230, 0.0
        %241 = vst.msk [vmem:[#allocation2 + $0x50] sm:$0xff] %vm230, 0.0
        %242 = vst.msk [vmem:[#allocation2 + $0x58] sm:$0xff] %vm230, 0.0
        %243 = vst.msk [vmem:[#allocation2 + $0x60] sm:$0xff] %vm230, 0.0
        %244 = vst.msk [vmem:[#allocation2 + $0x68] sm:$0xff] %vm230, 0.0
        %245 = vst.msk [vmem:[#allocation2 + $0x70] sm:$0xff] %vm230, 0.0
        %246 = vst.msk [vmem:[#allocation2 + $0x78] sm:$0xff] %vm230, 0.0
        %247 = vst.msk [vmem:[#allocation2 + $0x80] sm:$0xff] %vm230, 0.0
        %248 = vst.msk [vmem:[#allocation2 + $0x88] sm:$0xff] %vm230, 0.0
        %249 = vst.msk [vmem:[#allocation2 + $0x90] sm:$0xff] %vm230, 0.0
        %250 = vst.msk [vmem:[#allocation2 + $0x98] sm:$0xff] %vm230, 0.0
        %251 = vst.msk [vmem:[#allocation2 + $0xa0] sm:$0xff] %vm230, 0.0
        %252 = vst.msk [vmem:[#allocation2 + $0xa8] sm:$0xff] %vm230, 0.0
        %253 = vst.msk [vmem:[#allocation2 + $0xb0] sm:$0xff] %vm230, 0.0
        %254 = vst.msk [vmem:[#allocation2 + $0xb8] sm:$0xff] %vm230, 0.0
        %255 = vst.msk [vmem:[#allocation2 + $0xc0] sm:$0xff] %vm230, 0.0
        %256 = vst.msk [vmem:[#allocation2 + $0xc8] sm:$0xff] %vm230, 0.0
        %257 = vst.msk [vmem:[#allocation2 + $0xd0] sm:$0xff] %vm230, 0.0
        %258 = vst.msk [vmem:[#allocation2 + $0xd8] sm:$0xff] %vm230, 0.0
        %259 = vst.msk [vmem:[#allocation2 + $0xe0] sm:$0xff] %vm230, 0.0
        %260 = vst.msk [vmem:[#allocation2 + $0xe8] sm:$0xff] %vm230, 0.0
        %261 = vst.msk [vmem:[#allocation2 + $0xf0] sm:$0xff] %vm230, 0.0
        %262 = vst.msk [vmem:[#allocation2 + $0xf8] sm:$0xff] %vm230, 0.0
        %263 = vst.msk [vmem:[#allocation2 + $0x100] sm:$0xff] %vm230, 0.0
        %264 = vst.msk [vmem:[#allocation2 + $0x108] sm:$0xff] %vm230, 0.0
        %265 = vst.msk [vmem:[#allocation2 + $0x110] sm:$0xff] %vm230, 0.0
        %266 = vst.msk [vmem:[#allocation2 + $0x118] sm:$0xff] %vm230, 0.0
        %267 = vst.msk [vmem:[#allocation2 + $0x120] sm:$0xff] %vm230, 0.0
        %268 = vst.msk [vmem:[#allocation2 + $0x128] sm:$0xff] %vm230, 0.0
        %269 = vst.msk [vmem:[#allocation2 + $0x130] sm:$0xff] %vm230, 0.0
        %270 = vst.msk [vmem:[#allocation2 + $0x138] sm:$0xff] %vm230, 0.0
        %271 = vst.msk [vmem:[#allocation2 + $0x140] sm:$0xff] %vm230, 0.0
        %272 = vst.msk [vmem:[#allocation2 + $0x148] sm:$0xff] %vm230, 0.0
        %273 = vst.msk [vmem:[#allocation2 + $0x150] sm:$0xff] %vm230, 0.0
        %274 = vst.msk [vmem:[#allocation2 + $0x158] sm:$0xff] %vm230, 0.0
        %275 = vst.msk [vmem:[#allocation2 + $0x160] sm:$0xff] %vm230, 0.0
        %276 = vst.msk [vmem:[#allocation2 + $0x168] sm:$0xff] %vm230, 0.0
        %277 = vst.msk [vmem:[#allocation2 + $0x170] sm:$0xff] %vm230, 0.0
        %278 = vst.msk [vmem:[#allocation2 + $0x178] sm:$0xff] %vm230, 0.0
        %279 = vst.msk [vmem:[#allocation2 + $0x180] sm:$0xff] %vm230, 0.0
        %280 = vst.msk [vmem:[#allocation2 + $0x188] sm:$0xff] %vm230, 0.0
        %281 = vst.msk [vmem:[#allocation2 + $0x190] sm:$0xff] %vm230, 0.0
        %282 = vst.msk [vmem:[#allocation2 + $0x198] sm:$0xff] %vm230, 0.0
        %283 = vst.msk [vmem:[#allocation2 + $0x1a0] sm:$0xff] %vm230, 0.0
        %284 = vst.msk [vmem:[#allocation2 + $0x1a8] sm:$0xff] %vm230, 0.0
        %285 = vst.msk [vmem:[#allocation2 + $0x1b0] sm:$0xff] %vm230, 0.0
        %286 = vst.msk [vmem:[#allocation2 + $0x1b8] sm:$0xff] %vm230, 0.0
        %287 = vst.msk [vmem:[#allocation2 + $0x1c0] sm:$0xff] %vm230, 0.0
        %288 = vst.msk [vmem:[#allocation2 + $0x1c8] sm:$0xff] %vm230, 0.0
        %289 = vst.msk [vmem:[#allocation2 + $0x1d0] sm:$0xff] %vm230, 0.0
        %290 = vst.msk [vmem:[#allocation2 + $0x1d8] sm:$0xff] %vm230, 0.0
      $region44: #{tpu_custom_call.1} parent=39 // pred_fallthru
        _
      %v291 = vld [vmem:[%s219] sm:$0xf]
      %v292 = vld [vmem:[%s219 + $0x4] sm:$0xf]
      %v293 = vld [vmem:[%s219 + $0x8] sm:$0xf]
      %v294 = vld [vmem:[%s219 + $0xc] sm:$0xf]
      %v295 = vld [vmem:[%s219 + $0x10] sm:$0xf]
      %v296 = vld [vmem:[%s219 + $0x14] sm:$0xf]
      %v297 = vld [vmem:[%s219 + $0x18] sm:$0xf]
      %v298 = vld [vmem:[%s219 + $0x1c] sm:$0xf]
      %v299 = vld [vmem:[%s219 + $0x20] sm:$0xf]
      %v300 = vld [vmem:[%s219 + $0x24] sm:$0xf]
      %v301 = vld [vmem:[%s219 + $0x28] sm:$0xf]
      %v302 = vld [vmem:[%s219 + $0x2c] sm:$0xf]
      %v303 = vld [vmem:[%s219 + $0x30] sm:$0xf]
      %v304 = vld [vmem:[%s219 + $0x34] sm:$0xf]
      %v305 = vld [vmem:[%s219 + $0x38] sm:$0xf]
      %v306 = vld [vmem:[%s219 + $0x3c] sm:$0xf]
      %v307 = vld [vmem:[%s219 + $0x40] sm:$0xf]
      %v308 = vld [vmem:[%s219 + $0x44] sm:$0xf]
      %v309 = vld [vmem:[%s219 + $0x48] sm:$0xf]
      %v310 = vld [vmem:[%s219 + $0x4c] sm:$0xf]
      %v311 = vld [vmem:[%s219 + $0x50] sm:$0xf]
      %v312 = vld [vmem:[%s219 + $0x54] sm:$0xf]
      %v313 = vld [vmem:[%s219 + $0x58] sm:$0xf]
      %v314 = vld [vmem:[%s219 + $0x5c] sm:$0xf]
      %v315 = vld [vmem:[%s219 + $0x60] sm:$0xf]
      %v316 = vld [vmem:[%s219 + $0x64] sm:$0xf]
      %v317 = vld [vmem:[%s219 + $0x68] sm:$0xf]
      %v318 = vld [vmem:[%s219 + $0x6c] sm:$0xf]
      %v319 = vld [vmem:[%s219 + $0x70] sm:$0xf]
      %v320 = vld [vmem:[%s219 + $0x74] sm:$0xf]
      %v321 = vld [vmem:[%s219 + $0x78] sm:$0xf]
      %v322 = vld [vmem:[%s219 + $0x7c] sm:$0xf]
      %v323 = vld [vmem:[%s1] sm:$0x3]
      %v324 = vld [vmem:[%s2] sm:$0x1]
      %v326 = vperm.slane %v324, 0
      %v360 = vunpack.c.l.b16 %v291
      %v361 = vunpack.c.l.b16 %v292
      %v362 = vunpack.c.l.b16 %v293
      %v363 = vunpack.c.l.b16 %v294
      %v364 = vunpack.c.l.b16 %v295
      %v365 = vunpack.c.l.b16 %v296
      %v366 = vunpack.c.l.b16 %v297
      %v367 = vunpack.c.l.b16 %v298
      %v368 = vunpack.c.l.b16 %v299
      %v369 = vunpack.c.l.b16 %v300
      %v370 = vunpack.c.l.b16 %v301
      %v371 = vunpack.c.l.b16 %v302
      %v372 = vunpack.c.l.b16 %v303
      %v373 = vunpack.c.l.b16 %v304
      %v374 = vunpack.c.l.b16 %v305
      %v375 = vunpack.c.l.b16 %v306
      %v376 = vunpack.c.l.b16 %v307
      %v377 = vunpack.c.l.b16 %v308
      %v378 = vunpack.c.l.b16 %v309
      %v379 = vunpack.c.l.b16 %v310
      %v380 = vunpack.c.l.b16 %v311
      %v381 = vunpack.c.l.b16 %v312
      %v382 = vunpack.c.l.b16 %v313
      %v383 = vunpack.c.l.b16 %v314
      %v384 = vunpack.c.l.b16 %v315
      %v385 = vunpack.c.l.b16 %v316
      %v386 = vunpack.c.l.b16 %v317
      %v387 = vunpack.c.l.b16 %v318
      %v388 = vunpack.c.l.b16 %v319
      %v389 = vunpack.c.l.b16 %v320
      %v390 = vunpack.c.l.b16 %v321
      %v391 = vunpack.c.l.b16 %v322
      %v392 = vpack.c.b16 %v361, %v360
      %v393 = vpack.c.b16 %v363, %v362
      %v394 = vpack.c.b16 %v365, %v364
      %v395 = vpack.c.b16 %v367, %v366
      %v396 = vpack.c.b16 %v369, %v368
      %v397 = vpack.c.b16 %v371, %v370
      %v398 = vpack.c.b16 %v373, %v372
      %v399 = vpack.c.b16 %v375, %v374
      %v400 = vpack.c.b16 %v377, %v376
      %v401 = vpack.c.b16 %v379, %v378
      %v402 = vpack.c.b16 %v381, %v380
      %v403 = vpack.c.b16 %v383, %v382
      %v404 = vpack.c.b16 %v385, %v384
      %v405 = vpack.c.b16 %v387, %v386
      %v406 = vpack.c.b16 %v389, %v388
      %v407 = vpack.c.b16 %v391, %v390
      %vm408 = vcmask 31744
      %v410 = vsel %vm408, %v392, 0
      %v413 = vsel %vm408, %v393, 0
      %v416 = vsel %vm408, %v394, 0
      %v419 = vsel %vm408, %v395, 0
      %v422 = vsel %vm408, %v396, 0
      %v425 = vsel %vm408, %v397, 0
      %v428 = vsel %vm408, %v398, 0
      %v431 = vsel %vm408, %v399, 0
      %v434 = vsel %vm408, %v400, 0
      %v437 = vsel %vm408, %v401, 0
      %v440 = vsel %vm408, %v402, 0
      %v443 = vsel %vm408, %v403, 0
      %v446 = vsel %vm408, %v404, 0
      %v449 = vsel %vm408, %v405, 0
      %v452 = vsel %vm408, %v406, 0
      %v455 = vsel %vm408, %v407, 0
      %vm457 = vcmask 1041408
      %v459 = vsel %vm457, %v323, 0
      %461 = vmatpush.bf16.msra.mxu0 0
      %462 = vmatpush.bf16.msra.mxu0 0
      %463 = vmatpush.bf16.msra.mxu0 0
      %464 = vmatpush.bf16.msra.mxu0 0
      %465 = vmatpush.bf16.msra.mxu0 0
      %466 = vmatpush.bf16.msra.mxu0 0
      %467 = vmatpush.bf16.msra.mxu0 0
      %468 = vmatpush.bf16.msra.mxu0 %v459
      %469 = vmatmul.bf16.gmra.mxu0 %v410
      %v470 = vpop.f32.mrf.mxu0
      %v471 = vadd.f32 %v326, %v470
      %v472 = vpop.f32.mrf.mxu0
      %v473 = vadd.f32 %v326, %v472
      %474 = vmatmul.bf16.gmra.mxu0 %v413
      %v475 = vpop.f32.mrf.mxu0
      %v476 = vadd.f32 %v326, %v475
      %v477 = vpop.f32.mrf.mxu0
      %v478 = vadd.f32 %v326, %v477
      %479 = vmatmul.bf16.gmra.mxu0 %v416
      %v480 = vpop.f32.mrf.mxu0
      %v481 = vadd.f32 %v326, %v480
      %v482 = vpop.f32.mrf.mxu0
      %v483 = vadd.f32 %v326, %v482
      %484 = vmatmul.bf16.gmra.mxu0 %v419
      %v485 = vpop.f32.mrf.mxu0
      %v486 = vadd.f32 %v326, %v485
      %v487 = vpop.f32.mrf.mxu0
      %v488 = vadd.f32 %v326, %v487
      %489 = vmatmul.bf16.gmra.mxu0 %v422
      %v490 = vpop.f32.mrf.mxu0
      %v491 = vadd.f32 %v326, %v490
      %v492 = vpop.f32.mrf.mxu0
      %v493 = vadd.f32 %v326, %v492
      %494 = vmatmul.bf16.gmra.mxu0 %v425
      %v495 = vpop.f32.mrf.mxu0
      %v496 = vadd.f32 %v326, %v495
      %v497 = vpop.f32.mrf.mxu0
      %v498 = vadd.f32 %v326, %v497
      %499 = vmatmul.bf16.gmra.mxu0 %v428
      %v500 = vpop.f32.mrf.mxu0
      %v501 = vadd.f32 %v326, %v500
      %v502 = vpop.f32.mrf.mxu0
      %v503 = vadd.f32 %v326, %v502
      %504 = vmatmul.bf16.gmra.mxu0 %v431
      %v505 = vpop.f32.mrf.mxu0
      %v506 = vadd.f32 %v326, %v505
      %v507 = vpop.f32.mrf.mxu0
      %v508 = vadd.f32 %v326, %v507
      %509 = vmatmul.bf16.gmra.mxu0 %v434
      %v510 = vpop.f32.mrf.mxu0
      %v511 = vadd.f32 %v326, %v510
      %v512 = vpop.f32.mrf.mxu0
      %v513 = vadd.f32 %v326, %v512
      %514 = vmatmul.bf16.gmra.mxu0 %v437
      %v515 = vpop.f32.mrf.mxu0
      %v516 = vadd.f32 %v326, %v515
      %v517 = vpop.f32.mrf.mxu0
      %v518 = vadd.f32 %v326, %v517
      %519 = vmatmul.bf16.gmra.mxu0 %v440
      %v520 = vpop.f32.mrf.mxu0
      %v521 = vadd.f32 %v326, %v520
      %v522 = vpop.f32.mrf.mxu0
      %v523 = vadd.f32 %v326, %v522
      %524 = vmatmul.bf16.gmra.mxu0 %v443
      %v525 = vpop.f32.mrf.mxu0
      %v526 = vadd.f32 %v326, %v525
      %v527 = vpop.f32.mrf.mxu0
      %v528 = vadd.f32 %v326, %v527
      %529 = vmatmul.bf16.gmra.mxu0 %v446
      %v530 = vpop.f32.mrf.mxu0
      %v531 = vadd.f32 %v326, %v530
      %v532 = vpop.f32.mrf.mxu0
      %v533 = vadd.f32 %v326, %v532
      %534 = vmatmul.bf16.gmra.mxu0 %v449
      %v535 = vpop.f32.mrf.mxu0
      %v536 = vadd.f32 %v326, %v535
      %v537 = vpop.f32.mrf.mxu0
      %v538 = vadd.f32 %v326, %v537
      %539 = vmatmul.bf16.gmra.mxu0 %v452
      %v540 = vpop.f32.mrf.mxu0
      %v541 = vadd.f32 %v326, %v540
      %v542 = vpop.f32.mrf.mxu0
      %v543 = vadd.f32 %v326, %v542
      %544 = vmatmul.bf16.gmra.mxu0 %v455
      %v545 = vpop.f32.mrf.mxu0
      %v546 = vadd.f32 %v326, %v545
      %v547 = vpop.f32.mrf.mxu0
      %v548 = vadd.f32 %v326, %v547
      %549 = vdwg.mxu0
      %v550 = vmax.f32 %v471, 0.0
      %v551 = vmax.f32 %v473, 0.0
      %v552 = vmax.f32 %v476, 0.0
      %v553 = vmax.f32 %v478, 0.0
      %v554 = vmax.f32 %v481, 0.0
      %v555 = vmax.f32 %v483, 0.0
      %v556 = vmax.f32 %v486, 0.0
      %v557 = vmax.f32 %v488, 0.0
      %v558 = vmax.f32 %v491, 0.0
      %v559 = vmax.f32 %v493, 0.0
      %v560 = vmax.f32 %v496, 0.0
      %v561 = vmax.f32 %v498, 0.0
      %v562 = vmax.f32 %v501, 0.0
      %v563 = vmax.f32 %v503, 0.0
      %v564 = vmax.f32 %v506, 0.0
      %v565 = vmax.f32 %v508, 0.0
      %v566 = vmax.f32 %v511, 0.0
      %v567 = vmax.f32 %v513, 0.0
      %v568 = vmax.f32 %v516, 0.0
      %v569 = vmax.f32 %v518, 0.0
      %v570 = vmax.f32 %v521, 0.0
      %v571 = vmax.f32 %v523, 0.0
      %v572 = vmax.f32 %v526, 0.0
      %v573 = vmax.f32 %v528, 0.0
      %v574 = vmax.f32 %v531, 0.0
      %v575 = vmax.f32 %v533, 0.0
      %v576 = vmax.f32 %v536, 0.0
      %v577 = vmax.f32 %v538, 0.0
      %v578 = vmax.f32 %v541, 0.0
      %v579 = vmax.f32 %v543, 0.0
      %v580 = vmax.f32 %v546, 0.0
      %v581 = vmax.f32 %v548, 0.0
      %v582 = vmin.f32 %v550, 6.0
      %v583 = vmin.f32 %v551, 6.0
      %v584 = vmin.f32 %v552, 6.0
      %v585 = vmin.f32 %v553, 6.0
      %v586 = vmin.f32 %v554, 6.0
      %v587 = vmin.f32 %v555, 6.0
      %v588 = vmin.f32 %v556, 6.0
      %v589 = vmin.f32 %v557, 6.0
      %v590 = vmin.f32 %v558, 6.0
      %v591 = vmin.f32 %v559, 6.0
      %v592 = vmin.f32 %v560, 6.0
      %v593 = vmin.f32 %v561, 6.0
      %v594 = vmin.f32 %v562, 6.0
      %v595 = vmin.f32 %v563, 6.0
      %v596 = vmin.f32 %v564, 6.0
      %v597 = vmin.f32 %v565, 6.0
      %v598 = vmin.f32 %v566, 6.0
      %v599 = vmin.f32 %v567, 6.0
      %v600 = vmin.f32 %v568, 6.0
      %v601 = vmin.f32 %v569, 6.0
      %v602 = vmin.f32 %v570, 6.0
      %v603 = vmin.f32 %v571, 6.0
      %v604 = vmin.f32 %v572, 6.0
      %v605 = vmin.f32 %v573, 6.0
      %v606 = vmin.f32 %v574, 6.0
      %v607 = vmin.f32 %v575, 6.0
      %v608 = vmin.f32 %v576, 6.0
      %v609 = vmin.f32 %v577, 6.0
      %v610 = vmin.f32 %v578, 6.0
      %v611 = vmin.f32 %v579, 6.0
      %v612 = vmin.f32 %v580, 6.0
      %v613 = vmin.f32 %v581, 6.0
      %s614 = scalar_lea.vmem [#allocation2], 48
      %vm615 = vcmask 15360
      %616 = vst.msk [vmem:[%s614] sm:$0xff] %vm615, %v582
      %617 = vst.msk [vmem:[%s614 + $0x8] sm:$0xff] %vm615, %v583
      %618 = vst.msk [vmem:[%s614 + $0x18] sm:$0xff] %vm615, %v584
      %619 = vst.msk [vmem:[%s614 + $0x20] sm:$0xff] %vm615, %v585
      %620 = vst.msk [vmem:[%s614 + $0x30] sm:$0xff] %vm615, %v586
      %621 = vst.msk [vmem:[%s614 + $0x38] sm:$0xff] %vm615, %v587
      %622 = vst.msk [vmem:[%s614 + $0x48] sm:$0xff] %vm615, %v588
      %623 = vst.msk [vmem:[%s614 + $0x50] sm:$0xff] %vm615, %v589
      %624 = vst.msk [vmem:[%s614 + $0x60] sm:$0xff] %vm615, %v590
      %625 = vst.msk [vmem:[%s614 + $0x68] sm:$0xff] %vm615, %v591
      %626 = vst.msk [vmem:[%s614 + $0x78] sm:$0xff] %vm615, %v592
      %627 = vst.msk [vmem:[%s614 + $0x80] sm:$0xff] %vm615, %v593
      %628 = vst.msk [vmem:[%s614 + $0x90] sm:$0xff] %vm615, %v594
      %629 = vst.msk [vmem:[%s614 + $0x98] sm:$0xff] %vm615, %v595
      %630 = vst.msk [vmem:[%s614 + $0xa8] sm:$0xff] %vm615, %v596
      %631 = vst.msk [vmem:[%s614 + $0xb0] sm:$0xff] %vm615, %v597
      %632 = vst.msk [vmem:[%s614 + $0xc0] sm:$0xff] %vm615, %v598
      %633 = vst.msk [vmem:[%s614 + $0xc8] sm:$0xff] %vm615, %v599
      %634 = vst.msk [vmem:[%s614 + $0xd8] sm:$0xff] %vm615, %v600
      %635 = vst.msk [vmem:[%s614 + $0xe0] sm:$0xff] %vm615, %v601
      %636 = vst.msk [vmem:[%s614 + $0xf0] sm:$0xff] %vm615, %v602
      %637 = vst.msk [vmem:[%s614 + $0xf8] sm:$0xff] %vm615, %v603
      %638 = vst.msk [vmem:[%s614 + $0x108] sm:$0xff] %vm615, %v604
      %639 = vst.msk [vmem:[%s614 + $0x110] sm:$0xff] %vm615, %v605
      %640 = vst.msk [vmem:[%s614 + $0x120] sm:$0xff] %vm615, %v606
      %641 = vst.msk [vmem:[%s614 + $0x128] sm:$0xff] %vm615, %v607
      %642 = vst.msk [vmem:[%s614 + $0x138] sm:$0xff] %vm615, %v608
      %643 = vst.msk [vmem:[%s614 + $0x140] sm:$0xff] %vm615, %v609
      %644 = vst.msk [vmem:[%s614 + $0x150] sm:$0xff] %vm615, %v610
      %645 = vst.msk [vmem:[%s614 + $0x158] sm:$0xff] %vm615, %v611
      %646 = vst.msk [vmem:[%s614 + $0x168] sm:$0xff] %vm615, %v612
      %647 = vst.msk [vmem:[%s614 + $0x170] sm:$0xff] %vm615, %v613
      %v648 = vpack.c.bf16 %v583, %v582
      %v649 = vpack.c.bf16 %v585, %v584
      %v650 = vpack.c.bf16 %v587, %v586
      %v651 = vpack.c.bf16 %v589, %v588
      %v652 = vpack.c.bf16 %v591, %v590
      %v653 = vpack.c.bf16 %v593, %v592
      %v654 = vpack.c.bf16 %v595, %v594
      %v655 = vpack.c.bf16 %v597, %v596
      %v656 = vpack.c.bf16 %v599, %v598
      %v657 = vpack.c.bf16 %v601, %v600
      %v658 = vpack.c.bf16 %v603, %v602
      %v659 = vpack.c.bf16 %v605, %v604
      %v660 = vpack.c.bf16 %v607, %v606
      %v661 = vpack.c.bf16 %v609, %v608
      %v662 = vpack.c.bf16 %v611, %v610
      %v663 = vpack.c.bf16 %v613, %v612
      %v664 = vld [vmem:[%s3] sm:$0x1]
      %v665 = vld [vmem:[#allocation2] sm:$0xff]
      %v666 = vld [vmem:[#allocation2 + $0x8] sm:$0xff]
      %v667 = vld [vmem:[#allocation2 + $0x10] sm:$0xff]
      %v668 = vld [vmem:[#allocation2 + $0x18] sm:$0xff]
      %v669 = vld [vmem:[#allocation2 + $0x20] sm:$0xff]
      %v670 = vld [vmem:[#allocation2 + $0x28] sm:$0xff]
      %v671 = vld [vmem:[#allocation2 + $0x30] sm:$0xff]
      %v672 = vld [vmem:[#allocation2 + $0x38] sm:$0xff]
      %v673 = vld [vmem:[#allocation2 + $0x40] sm:$0xff]
      %v674 = vld [vmem:[#allocation2 + $0x48] sm:$0xff]
      %v675 = vld [vmem:[#allocation2 + $0x50] sm:$0xff]
      %v676 = vld [vmem:[#allocation2 + $0x58] sm:$0xff]
      %v677 = vld [vmem:[#allocation2 + $0x60] sm:$0xff]
      %v678 = vld [vmem:[#allocation2 + $0x68] sm:$0xff]
      %v679 = vld [vmem:[#allocation2 + $0x70] sm:$0xff]
      %v680 = vld [vmem:[#allocation2 + $0x78] sm:$0xff]
      %v681 = vld [vmem:[#allocation2 + $0x80] sm:$0xff]
      %v682 = vld [vmem:[#allocation2 + $0x88] sm:$0xff]
      %v683 = vld [vmem:[#allocation2 + $0x90] sm:$0xff]
      %v684 = vld [vmem:[#allocation2 + $0x98] sm:$0xff]
      %v685 = vld [vmem:[#allocation2 + $0xa0] sm:$0xff]
      %v686 = vld [vmem:[#allocation2 + $0xa8] sm:$0xff]
      %v687 = vld [vmem:[#allocation2 + $0xb0] sm:$0xff]
      %v688 = vld [vmem:[#allocation2 + $0xb8] sm:$0xff]
      %v689 = vld [vmem:[#allocation2 + $0xc0] sm:$0xff]
      %v690 = vld [vmem:[#allocation2 + $0xc8] sm:$0xff]
      %v691 = vld [vmem:[#allocation2 + $0xd0] sm:$0xff]
      %v692 = vld [vmem:[#allocation2 + $0xd8] sm:$0xff]
      %v693 = vld [vmem:[#allocation2 + $0xe0] sm:$0xff]
      %v694 = vld [vmem:[#allocation2 + $0xe8] sm:$0xff]
      %v695 = vld [vmem:[#allocation2 + $0xf0] sm:$0xff]
      %v696 = vld [vmem:[#allocation2 + $0xf8] sm:$0xff]
      %v697 = vld [vmem:[#allocation2 + $0x100] sm:$0xff]
      %v698 = vld [vmem:[#allocation2 + $0x108] sm:$0xff]
      %v699 = vld [vmem:[#allocation2 + $0x110] sm:$0xff]
      %v700 = vld [vmem:[#allocation2 + $0x118] sm:$0xff]
      %v701 = vld [vmem:[#allocation2 + $0x120] sm:$0xff]
      %v702 = vld [vmem:[#allocation2 + $0x128] sm:$0xff]
      %v703 = vld [vmem:[#allocation2 + $0x130] sm:$0xff]
      %v704 = vld [vmem:[#allocation2 + $0x138] sm:$0xff]
      %v705 = vld [vmem:[#allocation2 + $0x140] sm:$0xff]
      %v706 = vld [vmem:[#allocation2 + $0x148] sm:$0xff]
      %v707 = vld [vmem:[#allocation2 + $0x150] sm:$0xff]
      %v708 = vld [vmem:[#allocation2 + $0x158] sm:$0xff]
      %v709 = vld [vmem:[#allocation2 + $0x160] sm:$0xff]
      %v710 = vld [vmem:[#allocation2 + $0x168] sm:$0xff]
      %v711 = vld [vmem:[#allocation2 + $0x170] sm:$0xff]
      %v712 = vld [vmem:[#allocation2 + $0x178] sm:$0xff]
      %v713 = vld [vmem:[#allocation2 + $0x180] sm:$0xff]
      %v714 = vld [vmem:[#allocation2 + $0x188] sm:$0xff]
      %v715 = vld [vmem:[#allocation2 + $0x190] sm:$0xff]
      %v716 = vld [vmem:[#allocation2 + $0x198] sm:$0xff]
      %v717 = vld [vmem:[#allocation2 + $0x1a0] sm:$0xff]
      %v718 = vld [vmem:[#allocation2 + $0x1a8] sm:$0xff]
      %v719 = vld [vmem:[#allocation2 + $0x1b0] sm:$0xff]
      %v720 = vld [vmem:[#allocation2 + $0x1b8] sm:$0xff]
      %v721 = vld [vmem:[#allocation2 + $0x1c0] sm:$0xff]
      %v722 = vld [vmem:[#allocation2 + $0x1c8] sm:$0xff]
      %v723 = vld [vmem:[#allocation2 + $0x1d0] sm:$0xff]
      %v724 = vld [vmem:[#allocation2 + $0x1d8] sm:$0xff]
      %v725 = vmax.f32 %v665, %v668
      %v726 = vmax.f32 %v666, %v669
      %v727 = vmax.f32 %v667, %v670
      %v728 = vmax.f32 %v668, %v671
      %v729 = vmax.f32 %v669, %v672
      %v730 = vmax.f32 %v670, %v673
      %v731 = vmax.f32 %v671, %v674
      %v732 = vmax.f32 %v672, %v675
      %v733 = vmax.f32 %v673, %v676
      %v734 = vmax.f32 %v674, %v677
      %v735 = vmax.f32 %v675, %v678
      %v736 = vmax.f32 %v676, %v679
      %v737 = vmax.f32 %v677, %v680
      %v738 = vmax.f32 %v678, %v681
      %v739 = vmax.f32 %v679, %v682
      %v740 = vmax.f32 %v680, %v683
      %v741 = vmax.f32 %v681, %v684
      %v742 = vmax.f32 %v682, %v685
      %v743 = vmax.f32 %v683, %v686
      %v744 = vmax.f32 %v684, %v687
      %v745 = vmax.f32 %v685, %v688
      %v746 = vmax.f32 %v686, %v689
      %v747 = vmax.f32 %v687, %v690
      %v748 = vmax.f32 %v688, %v691
      %v749 = vmax.f32 %v689, %v692
      %v750 = vmax.f32 %v690, %v693
      %v751 = vmax.f32 %v691, %v694
      %v752 = vmax.f32 %v692, %v695
      %v753 = vmax.f32 %v693, %v696
      %v754 = vmax.f32 %v694, %v697
      %v755 = vmax.f32 %v695, %v698
      %v756 = vmax.f32 %v696, %v699
      %v757 = vmax.f32 %v697, %v700
      %v758 = vmax.f32 %v698, %v701
      %v759 = vmax.f32 %v699, %v702
      %v760 = vmax.f32 %v700, %v703
      %v761 = vmax.f32 %v701, %v704
      %v762 = vmax.f32 %v702, %v705
      %v763 = vmax.f32 %v703, %v706
      %v764 = vmax.f32 %v704, %v707
      %v765 = vmax.f32 %v705, %v708
      %v766 = vmax.f32 %v706, %v709
      %v767 = vmax.f32 %v707, %v710
      %v768 = vmax.f32 %v708, %v711
      %v769 = vmax.f32 %v709, %v712
      %v770 = vmax.f32 %v710, %v713
      %v771 = vmax.f32 %v711, %v714
      %v772 = vmax.f32 %v712, %v715
      %v773 = vmax.f32 %v725, %v671
      %v774 = vmax.f32 %v726, %v672
      %v775 = vmax.f32 %v727, %v673
      %v776 = vmax.f32 %v728, %v674
      %v777 = vmax.f32 %v729, %v675
      %v778 = vmax.f32 %v730, %v676
      %v779 = vmax.f32 %v731, %v677
      %v780 = vmax.f32 %v732, %v678
      %v781 = vmax.f32 %v733, %v679
      %v782 = vmax.f32 %v734, %v680
      %v783 = vmax.f32 %v735, %v681
      %v784 = vmax.f32 %v736, %v682
      %v785 = vmax.f32 %v737, %v683
      %v786 = vmax.f32 %v738, %v684
      %v787 = vmax.f32 %v739, %v685
      %v788 = vmax.f32 %v740, %v686
      %v789 = vmax.f32 %v741, %v687
      %v790 = vmax.f32 %v742, %v688
      %v791 = vmax.f32 %v743, %v689
      %v792 = vmax.f32 %v744, %v690
      %v793 = vmax.f32 %v745, %v691
      %v794 = vmax.f32 %v746, %v692
      %v795 = vmax.f32 %v747, %v693
      %v796 = vmax.f32 %v748, %v694
      %v797 = vmax.f32 %v749, %v695
      %v798 = vmax.f32 %v750, %v696
      %v799 = vmax.f32 %v751, %v697
      %v800 = vmax.f32 %v752, %v698
      %v801 = vmax.f32 %v753, %v699
      %v802 = vmax.f32 %v754, %v700
      %v803 = vmax.f32 %v755, %v701
      %v804 = vmax.f32 %v756, %v702
      %v805 = vmax.f32 %v757, %v703
      %v806 = vmax.f32 %v758, %v704
      %v807 = vmax.f32 %v759, %v705
      %v808 = vmax.f32 %v760, %v706
      %v809 = vmax.f32 %v761, %v707
      %v810 = vmax.f32 %v762, %v708
      %v811 = vmax.f32 %v763, %v709
      %v812 = vmax.f32 %v764, %v710
      %v813 = vmax.f32 %v765, %v711
      %v814 = vmax.f32 %v766, %v712
      %v815 = vmax.f32 %v767, %v713
      %v816 = vmax.f32 %v768, %v714
      %v817 = vmax.f32 %v769, %v715
      %v818 = vmax.f32 %v770, %v716
      %v819 = vmax.f32 %v771, %v717
      %v820 = vmax.f32 %v772, %v718
      %v821 = vmax.f32 %v773, %v674
      %v822 = vmax.f32 %v774, %v675
      %v823 = vmax.f32 %v775, %v676
      %v824 = vmax.f32 %v776, %v677
      %v825 = vmax.f32 %v777, %v678
      %v826 = vmax.f32 %v778, %v679
      %v827 = vmax.f32 %v779, %v680
      %v828 = vmax.f32 %v780, %v681
      %v829 = vmax.f32 %v781, %v682
      %v830 = vmax.f32 %v782, %v683
      %v831 = vmax.f32 %v783, %v684
      %v832 = vmax.f32 %v784, %v685
      %v833 = vmax.f32 %v785, %v686
      %v834 = vmax.f32 %v786, %v687
      %v835 = vmax.f32 %v787, %v688
      %v836 = vmax.f32 %v788, %v689
      %v837 = vmax.f32 %v789, %v690
      %v838 = vmax.f32 %v790, %v691
      %v839 = vmax.f32 %v791, %v692
      %v840 = vmax.f32 %v792, %v693
      %v841 = vmax.f32 %v793, %v694
      %v842 = vmax.f32 %v794, %v695
      %v843 = vmax.f32 %v795, %v696
      %v844 = vmax.f32 %v796, %v697
      %v845 = vmax.f32 %v797, %v698
      %v846 = vmax.f32 %v798, %v699
      %v847 = vmax.f32 %v799, %v700
      %v848 = vmax.f32 %v800, %v701
      %v849 = vmax.f32 %v801, %v702
      %v850 = vmax.f32 %v802, %v703
      %v851 = vmax.f32 %v803, %v704
      %v852 = vmax.f32 %v804, %v705
      %v853 = vmax.f32 %v805, %v706
      %v854 = vmax.f32 %v806, %v707
      %v855 = vmax.f32 %v807, %v708
      %v856 = vmax.f32 %v808, %v709
      %v857 = vmax.f32 %v809, %v710
      %v858 = vmax.f32 %v810, %v711
      %v859 = vmax.f32 %v811, %v712
      %v860 = vmax.f32 %v812, %v713
      %v861 = vmax.f32 %v813, %v714
      %v862 = vmax.f32 %v814, %v715
      %v863 = vmax.f32 %v815, %v716
      %v864 = vmax.f32 %v816, %v717
      %v865 = vmax.f32 %v817, %v718
      %v866 = vmax.f32 %v818, %v719
      %v867 = vmax.f32 %v819, %v720
      %v868 = vmax.f32 %v820, %v721
      %v869 = vmax.f32 %v821, %v677
      %v870 = vmax.f32 %v822, %v678
      %v871 = vmax.f32 %v823, %v679
      %v872 = vmax.f32 %v824, %v680
      %v873 = vmax.f32 %v825, %v681
      %v874 = vmax.f32 %v826, %v682
      %v875 = vmax.f32 %v827, %v683
      %v876 = vmax.f32 %v828, %v684
      %v877 = vmax.f32 %v829, %v685
      %v878 = vmax.f32 %v830, %v686
      %v879 = vmax.f32 %v831, %v687
      %v880 = vmax.f32 %v832, %v688
      %v881 = vmax.f32 %v833, %v689
      %v882 = vmax.f32 %v834, %v690
      %v883 = vmax.f32 %v835, %v691
      %v884 = vmax.f32 %v836, %v692
      %v885 = vmax.f32 %v837, %v693
      %v886 = vmax.f32 %v838, %v694
      %v887 = vmax.f32 %v839, %v695
      %v888 = vmax.f32 %v840, %v696
      %v889 = vmax.f32 %v841, %v697
      %v890 = vmax.f32 %v842, %v698
      %v891 = vmax.f32 %v843, %v699
      %v892 = vmax.f32 %v844, %v700
      %v893 = vmax.f32 %v845, %v701
      %v894 = vmax.f32 %v846, %v702
      %v895 = vmax.f32 %v847, %v703
      %v896 = vmax.f32 %v848, %v704
      %v897 = vmax.f32 %v849, %v705
      %v898 = vmax.f32 %v850, %v706
      %v899 = vmax.f32 %v851, %v707
      %v900 = vmax.f32 %v852, %v708
      %v901 = vmax.f32 %v853, %v709
      %v902 = vmax.f32 %v854, %v710
      %v903 = vmax.f32 %v855, %v711
      %v904 = vmax.f32 %v856, %v712
      %v905 = vmax.f32 %v857, %v713
      %v906 = vmax.f32 %v858, %v714
      %v907 = vmax.f32 %v859, %v715
      %v908 = vmax.f32 %v860, %v716
      %v909 = vmax.f32 %v861, %v717
      %v910 = vmax.f32 %v862, %v718
      %v911 = vmax.f32 %v863, %v719
      %v912 = vmax.f32 %v864, %v720
      %v913 = vmax.f32 %v865, %v721
      %v914 = vmax.f32 %v866, %v722
      %v915 = vmax.f32 %v867, %v723
      %v916 = vmax.f32 %v868, %v724
      %v917 = vrot.slane %v869, 7
      %v918 = vrot.slane %v870, 7
      %v919 = vrot.slane %v871, 7
      %v920 = vrot.slane %v872, 7
      %v921 = vrot.slane %v873, 7
      %v922 = vrot.slane %v874, 7
      %v923 = vrot.slane %v875, 7
      %v924 = vrot.slane %v876, 7
      %v925 = vrot.slane %v877, 7
      %v926 = vrot.slane %v878, 7
      %v927 = vrot.slane %v879, 7
      %v928 = vrot.slane %v880, 7
      %v929 = vrot.slane %v881, 7
      %v930 = vrot.slane %v882, 7
      %v931 = vrot.slane %v883, 7
      %v932 = vrot.slane %v884, 7
      %v933 = vrot.slane %v885, 7
      %v934 = vrot.slane %v886, 7
      %v935 = vrot.slane %v887, 7
      %v936 = vrot.slane %v888, 7
      %v937 = vrot.slane %v889, 7
      %v938 = vrot.slane %v890, 7
      %v939 = vrot.slane %v891, 7
      %v940 = vrot.slane %v892, 7
      %v941 = vrot.slane %v893, 7
      %v942 = vrot.slane %v894, 7
      %v943 = vrot.slane %v895, 7
      %v944 = vrot.slane %v896, 7
      %v945 = vrot.slane %v897, 7
      %v946 = vrot.slane %v898, 7
      %v947 = vrot.slane %v899, 7
      %v948 = vrot.slane %v900, 7
      %v949 = vrot.slane %v901, 7
      %v950 = vrot.slane %v902, 7
      %v951 = vrot.slane %v903, 7
      %v952 = vrot.slane %v904, 7
      %v953 = vrot.slane %v905, 7
      %v954 = vrot.slane %v906, 7
      %v955 = vrot.slane %v907, 7
      %v956 = vrot.slane %v908, 7
      %v957 = vrot.slane %v909, 7
      %v958 = vrot.slane %v910, 7
      %v959 = vrot.slane %v911, 7
      %v960 = vrot.slane %v912, 7
      %v961 = vrot.slane %v913, 7
      %v962 = vrot.slane %v914, 7
      %v963 = vrot.slane %v915, 7
      %v964 = vrot.slane %v916, 7
      %v965 = vlaneseq
      %v966 = vshrl.u32 %v965, 7
      %vm967 = vcmp.lt.s32.totalorder %v966, 1
      %v968 = vsel %vm967, %v962, %v963
      %v969 = vsel %vm967, %v961, %v962
      %v970 = vsel %vm967, %v959, %v960
      %v971 = vsel %vm967, %v958, %v959
      %v972 = vsel %vm967, %v956, %v957
      %v973 = vsel %vm967, %v955, %v956
      %v974 = vsel %vm967, %v953, %v954
      %v975 = vsel %vm967, %v952, %v953
      %v976 = vsel %vm967, %v950, %v951
      %v977 = vsel %vm967, %v949, %v950
      %v978 = vsel %vm967, %v947, %v948
      %v979 = vsel %vm967, %v946, %v947
      %v980 = vsel %vm967, %v944, %v945
      %v981 = vsel %vm967, %v943, %v944
      %v982 = vsel %vm967, %v941, %v942
      %v983 = vsel %vm967, %v940, %v941
      %v984 = vsel %vm967, %v938, %v939
      %v985 = vsel %vm967, %v937, %v938
      %v986 = vsel %vm967, %v935, %v936
      %v987 = vsel %vm967, %v934, %v935
      %v988 = vsel %vm967, %v932, %v933
      %v989 = vsel %vm967, %v931, %v932
      %v990 = vsel %vm967, %v929, %v930
      %v991 = vsel %vm967, %v928, %v929
      %v992 = vsel %vm967, %v926, %v927
      %v993 = vsel %vm967, %v925, %v926
      %v994 = vsel %vm967, %v923, %v924
      %v995 = vsel %vm967, %v922, %v923
      %v996 = vsel %vm967, %v920, %v921
      %v997 = vsel %vm967, %v919, %v920
      %v998 = vsel %vm967, %v917, %v918
      %v999 = vsel %vm967, %v964, %v917
      %v1000 = vmax.f32 %v869, %v999
      %v1001 = vmax.f32 %v870, %v998
      %v1002 = vmax.f32 %v872, %v997
      %v1003 = vmax.f32 %v873, %v996
      %v1004 = vmax.f32 %v875, %v995
      %v1005 = vmax.f32 %v876, %v994
      %v1006 = vmax.f32 %v878, %v993
      %v1007 = vmax.f32 %v879, %v992
      %v1008 = vmax.f32 %v881, %v991
      %v1009 = vmax.f32 %v882, %v990
      %v1010 = vmax.f32 %v884, %v989
      %v1011 = vmax.f32 %v885, %v988
      %v1012 = vmax.f32 %v887, %v987
      %v1013 = vmax.f32 %v888, %v986
      %v1014 = vmax.f32 %v890, %v985
      %v1015 = vmax.f32 %v891, %v984
      %v1016 = vmax.f32 %v893, %v983
      %v1017 = vmax.f32 %v894, %v982
      %v1018 = vmax.f32 %v896, %v981
      %v1019 = vmax.f32 %v897, %v980
      %v1020 = vmax.f32 %v899, %v979
      %v1021 = vmax.f32 %v900, %v978
      %v1022 = vmax.f32 %v902, %v977
      %v1023 = vmax.f32 %v903, %v976
      %v1024 = vmax.f32 %v905, %v975
      %v1025 = vmax.f32 %v906, %v974
      %v1026 = vmax.f32 %v908, %v973
      %v1027 = vmax.f32 %v909, %v972
      %v1028 = vmax.f32 %v911, %v971
      %v1029 = vmax.f32 %v912, %v970
      %v1030 = vmax.f32 %v914, %v969
      %v1031 = vmax.f32 %v915, %v968
      %v1032 = vrot.slane %v869, 1
      %v1033 = vrot.slane %v870, 1
      %v1034 = vrot.slane %v871, 1
      %v1035 = vrot.slane %v872, 1
      %v1036 = vrot.slane %v873, 1
      %v1037 = vrot.slane %v874, 1
      %v1038 = vrot.slane %v875, 1
      %v1039 = vrot.slane %v876, 1
      %v1040 = vrot.slane %v877, 1
      %v1041 = vrot.slane %v878, 1
      %v1042 = vrot.slane %v879, 1
      %v1043 = vrot.slane %v880, 1
      %v1044 = vrot.slane %v881, 1
      %v1045 = vrot.slane %v882, 1
      %v1046 = vrot.slane %v883, 1
      %v1047 = vrot.slane %v884, 1
      %v1048 = vrot.slane %v885, 1
      %v1049 = vrot.slane %v886, 1
      %v1050 = vrot.slane %v887, 1
      %v1051 = vrot.slane %v888, 1
      %v1052 = vrot.slane %v889, 1
      %v1053 = vrot.slane %v890, 1
      %v1054 = vrot.slane %v891, 1
      %v1055 = vrot.slane %v892, 1
      %v1056 = vrot.slane %v893, 1
      %v1057 = vrot.slane %v894, 1
      %v1058 = vrot.slane %v895, 1
      %v1059 = vrot.slane %v896, 1
      %v1060 = vrot.slane %v897, 1
      %v1061 = vrot.slane %v898, 1
      %v1062 = vrot.slane %v899, 1
      %v1063 = vrot.slane %v900, 1
      %v1064 = vrot.slane %v901, 1
      %v1065 = vrot.slane %v902, 1
      %v1066 = vrot.slane %v903, 1
      %v1067 = vrot.slane %v904, 1
      %v1068 = vrot.slane %v905, 1
      %v1069 = vrot.slane %v906, 1
      %v1070 = vrot.slane %v907, 1
      %v1071 = vrot.slane %v908, 1
      %v1072 = vrot.slane %v909, 1
      %v1073 = vrot.slane %v910, 1
      %v1074 = vrot.slane %v911, 1
      %v1075 = vrot.slane %v912, 1
      %v1076 = vrot.slane %v913, 1
      %v1077 = vrot.slane %v914, 1
      %v1078 = vrot.slane %v915, 1
      %v1079 = vrot.slane %v916, 1
      %vm1080 = vcmp.lt.s32.totalorder %v966, 7
      %v1081 = vsel %vm1080, %v1078, %v1079
      %v1082 = vsel %vm1080, %v1077, %v1078
      %v1083 = vsel %vm1080, %v1075, %v1076
      %v1084 = vsel %vm1080, %v1074, %v1075
      %v1085 = vsel %vm1080, %v1072, %v1073
      %v1086 = vsel %vm1080, %v1071, %v1072
      %v1087 = vsel %vm1080, %v1069, %v1070
      %v1088 = vsel %vm1080, %v1068, %v1069
      %v1089 = vsel %vm1080, %v1066, %v1067
      %v1090 = vsel %vm1080, %v1065, %v1066
      %v1091 = vsel %vm1080, %v1063, %v1064
      %v1092 = vsel %vm1080, %v1062, %v1063
      %v1093 = vsel %vm1080, %v1060, %v1061
      %v1094 = vsel %vm1080, %v1059, %v1060
      %v1095 = vsel %vm1080, %v1057, %v1058
      %v1096 = vsel %vm1080, %v1056, %v1057
      %v1097 = vsel %vm1080, %v1054, %v1055
      %v1098 = vsel %vm1080, %v1053, %v1054
      %v1099 = vsel %vm1080, %v1051, %v1052
      %v1100 = vsel %vm1080, %v1050, %v1051
      %v1101 = vsel %vm1080, %v1048, %v1049
      %v1102 = vsel %vm1080, %v1047, %v1048
      %v1103 = vsel %vm1080, %v1045, %v1046
      %v1104 = vsel %vm1080, %v1044, %v1045
      %v1105 = vsel %vm1080, %v1042, %v1043
      %v1106 = vsel %vm1080, %v1041, %v1042
      %v1107 = vsel %vm1080, %v1039, %v1040
      %v1108 = vsel %vm1080, %v1038, %v1039
      %v1109 = vsel %vm1080, %v1036, %v1037
      %v1110 = vsel %vm1080, %v1035, %v1036
      %v1111 = vsel %vm1080, %v1033, %v1034
      %v1112 = vsel %vm1080, %v1032, %v1033
      %v1113 = vmax.f32 %v1000, %v1112
      %v1114 = vmax.f32 %v1001, %v1111
      %v1115 = vmax.f32 %v1002, %v1110
      %v1116 = vmax.f32 %v1003, %v1109
      %v1117 = vmax.f32 %v1004, %v1108
      %v1118 = vmax.f32 %v1005, %v1107
      %v1119 = vmax.f32 %v1006, %v1106
      %v1120 = vmax.f32 %v1007, %v1105
      %v1121 = vmax.f32 %v1008, %v1104
      %v1122 = vmax.f32 %v1009, %v1103
      %v1123 = vmax.f32 %v1010, %v1102
      %v1124 = vmax.f32 %v1011, %v1101
      %v1125 = vmax.f32 %v1012, %v1100
      %v1126 = vmax.f32 %v1013, %v1099
      %v1127 = vmax.f32 %v1014, %v1098
      %v1128 = vmax.f32 %v1015, %v1097
      %v1129 = vmax.f32 %v1016, %v1096
      %v1130 = vmax.f32 %v1017, %v1095
      %v1131 = vmax.f32 %v1018, %v1094
      %v1132 = vmax.f32 %v1019, %v1093
      %v1133 = vmax.f32 %v1020, %v1092
      %v1134 = vmax.f32 %v1021, %v1091
      %v1135 = vmax.f32 %v1022, %v1090
      %v1136 = vmax.f32 %v1023, %v1089
      %v1137 = vmax.f32 %v1024, %v1088
      %v1138 = vmax.f32 %v1025, %v1087
      %v1139 = vmax.f32 %v1026, %v1086
      %v1140 = vmax.f32 %v1027, %v1085
      %v1141 = vmax.f32 %v1028, %v1084
      %v1142 = vmax.f32 %v1029, %v1083
      %v1143 = vmax.f32 %v1030, %v1082
      %v1144 = vmax.f32 %v1031, %v1081
      %v1145 = vrot.slane %v869, 6
      %v1146 = vrot.slane %v870, 6
      %v1147 = vrot.slane %v871, 6
      %v1148 = vrot.slane %v872, 6
      %v1149 = vrot.slane %v873, 6
      %v1150 = vrot.slane %v874, 6
      %v1151 = vrot.slane %v875, 6
      %v1152 = vrot.slane %v876, 6
      %v1153 = vrot.slane %v877, 6
      %v1154 = vrot.slane %v878, 6
      %v1155 = vrot.slane %v879, 6
      %v1156 = vrot.slane %v880, 6
      %v1157 = vrot.slane %v881, 6
      %v1158 = vrot.slane %v882, 6
      %v1159 = vrot.slane %v883, 6
      %v1160 = vrot.slane %v884, 6
      %v1161 = vrot.slane %v885, 6
      %v1162 = vrot.slane %v886, 6
      %v1163 = vrot.slane %v887, 6
      %v1164 = vrot.slane %v888, 6
      %v1165 = vrot.slane %v889, 6
      %v1166 = vrot.slane %v890, 6
      %v1167 = vrot.slane %v891, 6
      %v1168 = vrot.slane %v892, 6
      %v1169 = vrot.slane %v893, 6
      %v1170 = vrot.slane %v894, 6
      %v1171 = vrot.slane %v895, 6
      %v1172 = vrot.slane %v896, 6
      %v1173 = vrot.slane %v897, 6
      %v1174 = vrot.slane %v898, 6
      %v1175 = vrot.slane %v899, 6
      %v1176 = vrot.slane %v900, 6
      %v1177 = vrot.slane %v901, 6
      %v1178 = vrot.slane %v902, 6
      %v1179 = vrot.slane %v903, 6
      %v1180 = vrot.slane %v904, 6
      %v1181 = vrot.slane %v905, 6
      %v1182 = vrot.slane %v906, 6
      %v1183 = vrot.slane %v907, 6
      %v1184 = vrot.slane %v908, 6
      %v1185 = vrot.slane %v909, 6
      %v1186 = vrot.slane %v910, 6
      %v1187 = vrot.slane %v911, 6
      %v1188 = vrot.slane %v912, 6
      %v1189 = vrot.slane %v913, 6
      %v1190 = vrot.slane %v914, 6
      %v1191 = vrot.slane %v915, 6
      %v1192 = vrot.slane %v916, 6
      %vm1193 = vcmp.lt.s32.totalorder %v966, 2
      %v1194 = vsel %vm1193, %v1190, %v1191
      %v1195 = vsel %vm1193, %v1189, %v1190
      %v1196 = vsel %vm1193, %v1187, %v1188
      %v1197 = vsel %vm1193, %v1186, %v1187
      %v1198 = vsel %vm1193, %v1184, %v1185
      %v1199 = vsel %vm1193, %v1183, %v1184
      %v1200 = vsel %vm1193, %v1181, %v1182
      %v1201 = vsel %vm1193, %v1180, %v1181
      %v1202 = vsel %vm1193, %v1178, %v1179
      %v1203 = vsel %vm1193, %v1177, %v1178
      %v1204 = vsel %vm1193, %v1175, %v1176
      %v1205 = vsel %vm1193, %v1174, %v1175
      %v1206 = vsel %vm1193, %v1172, %v1173
      %v1207 = vsel %vm1193, %v1171, %v1172
      %v1208 = vsel %vm1193, %v1169, %v1170
      %v1209 = vsel %vm1193, %v1168, %v1169
      %v1210 = vsel %vm1193, %v1166, %v1167
      %v1211 = vsel %vm1193, %v1165, %v1166
      %v1212 = vsel %vm1193, %v1163, %v1164
      %v1213 = vsel %vm1193, %v1162, %v1163
      %v1214 = vsel %vm1193, %v1160, %v1161
      %v1215 = vsel %vm1193, %v1159, %v1160
      %v1216 = vsel %vm1193, %v1157, %v1158
      %v1217 = vsel %vm1193, %v1156, %v1157
      %v1218 = vsel %vm1193, %v1154, %v1155
      %v1219 = vsel %vm1193, %v1153, %v1154
      %v1220 = vsel %vm1193, %v1151, %v1152
      %v1221 = vsel %vm1193, %v1150, %v1151
      %v1222 = vsel %vm1193, %v1148, %v1149
      %v1223 = vsel %vm1193, %v1147, %v1148
      %v1224 = vsel %vm1193, %v1145, %v1146
      %v1225 = vsel %vm1193, %v1192, %v1145
      %v1226 = vmax.f32 %v1113, %v1225
      %v1227 = vmax.f32 %v1114, %v1224
      %v1228 = vmax.f32 %v1115, %v1223
      %v1229 = vmax.f32 %v1116, %v1222
      %v1230 = vmax.f32 %v1117, %v1221
      %v1231 = vmax.f32 %v1118, %v1220
      %v1232 = vmax.f32 %v1119, %v1219
      %v1233 = vmax.f32 %v1120, %v1218
      %v1234 = vmax.f32 %v1121, %v1217
      %v1235 = vmax.f32 %v1122, %v1216
      %v1236 = vmax.f32 %v1123, %v1215
      %v1237 = vmax.f32 %v1124, %v1214
      %v1238 = vmax.f32 %v1125, %v1213
      %v1239 = vmax.f32 %v1126, %v1212
      %v1240 = vmax.f32 %v1127, %v1211
      %v1241 = vmax.f32 %v1128, %v1210
      %v1242 = vmax.f32 %v1129, %v1209
      %v1243 = vmax.f32 %v1130, %v1208
      %v1244 = vmax.f32 %v1131, %v1207
      %v1245 = vmax.f32 %v1132, %v1206
      %v1246 = vmax.f32 %v1133, %v1205
      %v1247 = vmax.f32 %v1134, %v1204
      %v1248 = vmax.f32 %v1135, %v1203
      %v1249 = vmax.f32 %v1136, %v1202
      %v1250 = vmax.f32 %v1137, %v1201
      %v1251 = vmax.f32 %v1138, %v1200
      %v1252 = vmax.f32 %v1139, %v1199
      %v1253 = vmax.f32 %v1140, %v1198
      %v1254 = vmax.f32 %v1141, %v1197
      %v1255 = vmax.f32 %v1142, %v1196
      %v1256 = vmax.f32 %v1143, %v1195
      %v1257 = vmax.f32 %v1144, %v1194
      %v1258 = vrot.slane %v869, 2
      %v1259 = vrot.slane %v870, 2
      %v1260 = vrot.slane %v871, 2
      %v1261 = vrot.slane %v872, 2
      %v1262 = vrot.slane %v873, 2
      %v1263 = vrot.slane %v874, 2
      %v1264 = vrot.slane %v875, 2
      %v1265 = vrot.slane %v876, 2
      %v1266 = vrot.slane %v877, 2
      %v1267 = vrot.slane %v878, 2
      %v1268 = vrot.slane %v879, 2
      %v1269 = vrot.slane %v880, 2
      %v1270 = vrot.slane %v881, 2
      %v1271 = vrot.slane %v882, 2
      %v1272 = vrot.slane %v883, 2
      %v1273 = vrot.slane %v884, 2
      %v1274 = vrot.slane %v885, 2
      %v1275 = vrot.slane %v886, 2
      %v1276 = vrot.slane %v887, 2
      %v1277 = vrot.slane %v888, 2
      %v1278 = vrot.slane %v889, 2
      %v1279 = vrot.slane %v890, 2
      %v1280 = vrot.slane %v891, 2
      %v1281 = vrot.slane %v892, 2
      %v1282 = vrot.slane %v893, 2
      %v1283 = vrot.slane %v894, 2
      %v1284 = vrot.slane %v895, 2
      %v1285 = vrot.slane %v896, 2
      %v1286 = vrot.slane %v897, 2
      %v1287 = vrot.slane %v898, 2
      %v1288 = vrot.slane %v899, 2
      %v1289 = vrot.slane %v900, 2
      %v1290 = vrot.slane %v901, 2
      %v1291 = vrot.slane %v902, 2
      %v1292 = vrot.slane %v903, 2
      %v1293 = vrot.slane %v904, 2
      %v1294 = vrot.slane %v905, 2
      %v1295 = vrot.slane %v906, 2
      %v1296 = vrot.slane %v907, 2
      %v1297 = vrot.slane %v908, 2
      %v1298 = vrot.slane %v909, 2
      %v1299 = vrot.slane %v910, 2
      %v1300 = vrot.slane %v911, 2
      %v1301 = vrot.slane %v912, 2
      %v1302 = vrot.slane %v913, 2
      %v1303 = vrot.slane %v914, 2
      %v1304 = vrot.slane %v915, 2
      %v1305 = vrot.slane %v916, 2
      %vm1306 = vcmp.lt.s32.totalorder %v966, 6
      %v1307 = vsel %vm1306, %v1304, %v1305
      %v1308 = vsel %vm1306, %v1303, %v1304
      %v1309 = vsel %vm1306, %v1301, %v1302
      %v1310 = vsel %vm1306, %v1300, %v1301
      %v1311 = vsel %vm1306, %v1298, %v1299
      %v1312 = vsel %vm1306, %v1297, %v1298
      %v1313 = vsel %vm1306, %v1295, %v1296
      %v1314 = vsel %vm1306, %v1294, %v1295
      %v1315 = vsel %vm1306, %v1292, %v1293
      %v1316 = vsel %vm1306, %v1291, %v1292
      %v1317 = vsel %vm1306, %v1289, %v1290
      %v1318 = vsel %vm1306, %v1288, %v1289
      %v1319 = vsel %vm1306, %v1286, %v1287
      %v1320 = vsel %vm1306, %v1285, %v1286
      %v1321 = vsel %vm1306, %v1283, %v1284
      %v1322 = vsel %vm1306, %v1282, %v1283
      %v1323 = vsel %vm1306, %v1280, %v1281
      %v1324 = vsel %vm1306, %v1279, %v1280
      %v1325 = vsel %vm1306, %v1277, %v1278
      %v1326 = vsel %vm1306, %v1276, %v1277
      %v1327 = vsel %vm1306, %v1274, %v1275
      %v1328 = vsel %vm1306, %v1273, %v1274
      %v1329 = vsel %vm1306, %v1271, %v1272
      %v1330 = vsel %vm1306, %v1270, %v1271
      %v1331 = vsel %vm1306, %v1268, %v1269
      %v1332 = vsel %vm1306, %v1267, %v1268
      %v1333 = vsel %vm1306, %v1265, %v1266
      %v1334 = vsel %vm1306, %v1264, %v1265
      %v1335 = vsel %vm1306, %v1262, %v1263
      %v1336 = vsel %vm1306, %v1261, %v1262
      %v1337 = vsel %vm1306, %v1259, %v1260
      %v1338 = vsel %vm1306, %v1258, %v1259
      %v1339 = vmax.f32 %v1226, %v1338
      %v1340 = vmax.f32 %v1227, %v1337
      %v1341 = vmax.f32 %v1228, %v1336
      %v1342 = vmax.f32 %v1229, %v1335
      %v1343 = vmax.f32 %v1230, %v1334
      %v1344 = vmax.f32 %v1231, %v1333
      %v1345 = vmax.f32 %v1232, %v1332
      %v1346 = vmax.f32 %v1233, %v1331
      %v1347 = vmax.f32 %v1234, %v1330
      %v1348 = vmax.f32 %v1235, %v1329
      %v1349 = vmax.f32 %v1236, %v1328
      %v1350 = vmax.f32 %v1237, %v1327
      %v1351 = vmax.f32 %v1238, %v1326
      %v1352 = vmax.f32 %v1239, %v1325
      %v1353 = vmax.f32 %v1240, %v1324
      %v1354 = vmax.f32 %v1241, %v1323
      %v1355 = vmax.f32 %v1242, %v1322
      %v1356 = vmax.f32 %v1243, %v1321
      %v1357 = vmax.f32 %v1244, %v1320
      %v1358 = vmax.f32 %v1245, %v1319
      %v1359 = vmax.f32 %v1246, %v1318
      %v1360 = vmax.f32 %v1247, %v1317
      %v1361 = vmax.f32 %v1248, %v1316
      %v1362 = vmax.f32 %v1249, %v1315
      %v1363 = vmax.f32 %v1250, %v1314
      %v1364 = vmax.f32 %v1251, %v1313
      %v1365 = vmax.f32 %v1252, %v1312
      %v1366 = vmax.f32 %v1253, %v1311
      %v1367 = vmax.f32 %v1254, %v1310
      %v1368 = vmax.f32 %v1255, %v1309
      %v1369 = vmax.f32 %v1256, %v1308
      %v1370 = vmax.f32 %v1257, %v1307
      %1371 = vst.msk [vmem:[%s614] sm:$0xff] %vm615, %v1339
      %1372 = vst.msk [vmem:[%s614 + $0x8] sm:$0xff] %vm615, %v1340
      %1373 = vst.msk [vmem:[%s614 + $0x18] sm:$0xff] %vm615, %v1341
      %1374 = vst.msk [vmem:[%s614 + $0x20] sm:$0xff] %vm615, %v1342
      %1375 = vst.msk [vmem:[%s614 + $0x30] sm:$0xff] %vm615, %v1343
      %1376 = vst.msk [vmem:[%s614 + $0x38] sm:$0xff] %vm615, %v1344
      %1377 = vst.msk [vmem:[%s614 + $0x48] sm:$0xff] %vm615, %v1345
      %1378 = vst.msk [vmem:[%s614 + $0x50] sm:$0xff] %vm615, %v1346
      %1379 = vst.msk [vmem:[%s614 + $0x60] sm:$0xff] %vm615, %v1347
      %1380 = vst.msk [vmem:[%s614 + $0x68] sm:$0xff] %vm615, %v1348
      %1381 = vst.msk [vmem:[%s614 + $0x78] sm:$0xff] %vm615, %v1349
      %1382 = vst.msk [vmem:[%s614 + $0x80] sm:$0xff] %vm615, %v1350
      %1383 = vst.msk [vmem:[%s614 + $0x90] sm:$0xff] %vm615, %v1351
      %1384 = vst.msk [vmem:[%s614 + $0x98] sm:$0xff] %vm615, %v1352
      %1385 = vst.msk [vmem:[%s614 + $0xa8] sm:$0xff] %vm615, %v1353
      %1386 = vst.msk [vmem:[%s614 + $0xb0] sm:$0xff] %vm615, %v1354
      %1387 = vst.msk [vmem:[%s614 + $0xc0] sm:$0xff] %vm615, %v1355
      %1388 = vst.msk [vmem:[%s614 + $0xc8] sm:$0xff] %vm615, %v1356
      %1389 = vst.msk [vmem:[%s614 + $0xd8] sm:$0xff] %vm615, %v1357
      %1390 = vst.msk [vmem:[%s614 + $0xe0] sm:$0xff] %vm615, %v1358
      %1391 = vst.msk [vmem:[%s614 + $0xf0] sm:$0xff] %vm615, %v1359
      %1392 = vst.msk [vmem:[%s614 + $0xf8] sm:$0xff] %vm615, %v1360
      %1393 = vst.msk [vmem:[%s614 + $0x108] sm:$0xff] %vm615, %v1361
      %1394 = vst.msk [vmem:[%s614 + $0x110] sm:$0xff] %vm615, %v1362
      %1395 = vst.msk [vmem:[%s614 + $0x120] sm:$0xff] %vm615, %v1363
      %1396 = vst.msk [vmem:[%s614 + $0x128] sm:$0xff] %vm615, %v1364
      %1397 = vst.msk [vmem:[%s614 + $0x138] sm:$0xff] %vm615, %v1365
      %1398 = vst.msk [vmem:[%s614 + $0x140] sm:$0xff] %vm615, %v1366
      %1399 = vst.msk [vmem:[%s614 + $0x150] sm:$0xff] %vm615, %v1367
      %1400 = vst.msk [vmem:[%s614 + $0x158] sm:$0xff] %vm615, %v1368
      %1401 = vst.msk [vmem:[%s614 + $0x168] sm:$0xff] %vm615, %v1369
      %1402 = vst.msk [vmem:[%s614 + $0x170] sm:$0xff] %vm615, %v1370
      %v1403 = vpack.c.bf16 %v1340, %v1339
      %v1404 = vpack.c.bf16 %v1342, %v1341
      %v1405 = vpack.c.bf16 %v1344, %v1343
      %v1406 = vpack.c.bf16 %v1346, %v1345
      %v1407 = vpack.c.bf16 %v1348, %v1347
      %v1408 = vpack.c.bf16 %v1350, %v1349
      %v1409 = vpack.c.bf16 %v1352, %v1351
      %v1410 = vpack.c.bf16 %v1354, %v1353
      %v1411 = vpack.c.bf16 %v1356, %v1355
      %v1412 = vpack.c.bf16 %v1358, %v1357
      %v1413 = vpack.c.bf16 %v1360, %v1359
      %v1414 = vpack.c.bf16 %v1362, %v1361
      %v1415 = vpack.c.bf16 %v1364, %v1363
      %v1416 = vpack.c.bf16 %v1366, %v1365
      %v1417 = vpack.c.bf16 %v1368, %v1367
      %v1418 = vpack.c.bf16 %v1370, %v1369
      %s1419 = scalar_lea.vmem %s3, 1
      %v1420 = vld [vmem:[%s1419] sm:$0x1]
      %v1422 = vsel %vm615, %v1403, 0
      %v1425 = vsel %vm615, %v1404, 0
      %v1428 = vsel %vm615, %v1405, 0
      %v1431 = vsel %vm615, %v1406, 0
      %v1434 = vsel %vm615, %v1407, 0
      %v1437 = vsel %vm615, %v1408, 0
      %v1440 = vsel %vm615, %v1409, 0
      %v1443 = vsel %vm615, %v1410, 0
      %v1446 = vsel %vm615, %v1411, 0
      %v1449 = vsel %vm615, %v1412, 0
      %v1452 = vsel %vm615, %v1413, 0
      %v1455 = vsel %vm615, %v1414, 0
      %v1458 = vsel %vm615, %v1415, 0
      %v1461 = vsel %vm615, %v1416, 0
      %v1464 = vsel %vm615, %v1417, 0
      %v1467 = vsel %vm615, %v1418, 0
      %vm1469 = vcmask 1040384
      %v1471 = vsel %vm1469, %v1420, 0
      %1473 = vmatpush.bf16.msra.mxu0 0
      %1474 = vmatpush.bf16.msra.mxu0 0
      %1475 = vmatpush.bf16.msra.mxu0 0
      %1476 = vmatpush.bf16.msra.mxu0 0
      %1477 = vmatpush.bf16.msra.mxu0 0
      %1478 = vmatpush.bf16.msra.mxu0 0
      %1479 = vmatpush.bf16.msra.mxu0 0
      %1480 = vmatpush.bf16.msra.mxu0 %v1471
      %1481 = vmatmul.bf16.gmra.mxu0 %v1422
      %v1482 = vpop.f32.mrf.mxu0
      %v1483 = vadd.f32 0.0, %v1482
      %v1484 = vpop.f32.mrf.mxu0
      %v1485 = vadd.f32 0.0, %v1484
      %1486 = vmatmul.bf16.gmra.mxu0 %v1425
      %v1487 = vpop.f32.mrf.mxu0
      %v1488 = vadd.f32 0.0, %v1487
      %v1489 = vpop.f32.mrf.mxu0
      %v1490 = vadd.f32 0.0, %v1489
      %1491 = vmatmul.bf16.gmra.mxu0 %v1428
      %v1492 = vpop.f32.mrf.mxu0
      %v1493 = vadd.f32 0.0, %v1492
      %v1494 = vpop.f32.mrf.mxu0
      %v1495 = vadd.f32 0.0, %v1494
      %1496 = vmatmul.bf16.gmra.mxu0 %v1431
      %v1497 = vpop.f32.mrf.mxu0
      %v1498 = vadd.f32 0.0, %v1497
      %v1499 = vpop.f32.mrf.mxu0
      %v1500 = vadd.f32 0.0, %v1499
      %1501 = vmatmul.bf16.gmra.mxu0 %v1434
      %v1502 = vpop.f32.mrf.mxu0
      %v1503 = vadd.f32 0.0, %v1502
      %v1504 = vpop.f32.mrf.mxu0
      %v1505 = vadd.f32 0.0, %v1504
      %1506 = vmatmul.bf16.gmra.mxu0 %v1437
      %v1507 = vpop.f32.mrf.mxu0
      %v1508 = vadd.f32 0.0, %v1507
      %v1509 = vpop.f32.mrf.mxu0
      %v1510 = vadd.f32 0.0, %v1509
      %1511 = vmatmul.bf16.gmra.mxu0 %v1440
      %v1512 = vpop.f32.mrf.mxu0
      %v1513 = vadd.f32 0.0, %v1512
      %v1514 = vpop.f32.mrf.mxu0
      %v1515 = vadd.f32 0.0, %v1514
      %1516 = vmatmul.bf16.gmra.mxu0 %v1443
      %v1517 = vpop.f32.mrf.mxu0
      %v1518 = vadd.f32 0.0, %v1517
      %v1519 = vpop.f32.mrf.mxu0
      %v1520 = vadd.f32 0.0, %v1519
      %1521 = vmatmul.bf16.gmra.mxu0 %v1446
      %v1522 = vpop.f32.mrf.mxu0
      %v1523 = vadd.f32 0.0, %v1522
      %v1524 = vpop.f32.mrf.mxu0
      %v1525 = vadd.f32 0.0, %v1524
      %1526 = vmatmul.bf16.gmra.mxu0 %v1449
      %v1527 = vpop.f32.mrf.mxu0
      %v1528 = vadd.f32 0.0, %v1527
      %v1529 = vpop.f32.mrf.mxu0
      %v1530 = vadd.f32 0.0, %v1529
      %1531 = vmatmul.bf16.gmra.mxu0 %v1452
      %v1532 = vpop.f32.mrf.mxu0
      %v1533 = vadd.f32 0.0, %v1532
      %v1534 = vpop.f32.mrf.mxu0
      %v1535 = vadd.f32 0.0, %v1534
      %1536 = vmatmul.bf16.gmra.mxu0 %v1455
      %v1537 = vpop.f32.mrf.mxu0
      %v1538 = vadd.f32 0.0, %v1537
      %v1539 = vpop.f32.mrf.mxu0
      %v1540 = vadd.f32 0.0, %v1539
      %1541 = vmatmul.bf16.gmra.mxu0 %v1458
      %v1542 = vpop.f32.mrf.mxu0
      %v1543 = vadd.f32 0.0, %v1542
      %v1544 = vpop.f32.mrf.mxu0
      %v1545 = vadd.f32 0.0, %v1544
      %1546 = vmatmul.bf16.gmra.mxu0 %v1461
      %v1547 = vpop.f32.mrf.mxu0
      %v1548 = vadd.f32 0.0, %v1547
      %v1549 = vpop.f32.mrf.mxu0
      %v1550 = vadd.f32 0.0, %v1549
      %1551 = vmatmul.bf16.gmra.mxu0 %v1464
      %v1552 = vpop.f32.mrf.mxu0
      %v1553 = vadd.f32 0.0, %v1552
      %v1554 = vpop.f32.mrf.mxu0
      %v1555 = vadd.f32 0.0, %v1554
      %1556 = vmatmul.bf16.gmra.mxu0 %v1467
      %v1557 = vpop.f32.mrf.mxu0
      %v1558 = vadd.f32 0.0, %v1557
      %v1559 = vpop.f32.mrf.mxu0
      %v1560 = vadd.f32 0.0, %v1559
      %1561 = vdwg.mxu0
      %v1563 = vsel %vm615, %v648, 0
      %v1566 = vsel %vm615, %v649, 0
      %v1569 = vsel %vm615, %v650, 0
      %v1572 = vsel %vm615, %v651, 0
      %v1575 = vsel %vm615, %v652, 0
      %v1578 = vsel %vm615, %v653, 0
      %v1581 = vsel %vm615, %v654, 0
      %v1584 = vsel %vm615, %v655, 0
      %v1587 = vsel %vm615, %v656, 0
      %v1590 = vsel %vm615, %v657, 0
      %v1593 = vsel %vm615, %v658, 0
      %v1596 = vsel %vm615, %v659, 0
      %v1599 = vsel %vm615, %v660, 0
      %v1602 = vsel %vm615, %v661, 0
      %v1605 = vsel %vm615, %v662, 0
      %v1608 = vsel %vm615, %v663, 0
      %v1611 = vsel %vm1469, %v664, 0
      %1613 = vmatpush.bf16.msra.mxu0 0
      %1614 = vmatpush.bf16.msra.mxu0 0
      %1615 = vmatpush.bf16.msra.mxu0 0
      %1616 = vmatpush.bf16.msra.mxu0 0
      %1617 = vmatpush.bf16.msra.mxu0 0
      %1618 = vmatpush.bf16.msra.mxu0 0
      %1619 = vmatpush.bf16.msra.mxu0 0
      %1620 = vmatpush.bf16.msra.mxu0 %v1611
      %1621 = vmatmul.bf16.gmra.mxu0 %v1563
      %v1622 = vpop.f32.mrf.mxu0
      %v1623 = vadd.f32 %v1483, %v1622
      %v1624 = vpop.f32.mrf.mxu0
      %v1625 = vadd.f32 %v1485, %v1624
      %1626 = vmatmul.bf16.gmra.mxu0 %v1566
      %v1627 = vpop.f32.mrf.mxu0
      %v1628 = vadd.f32 %v1488, %v1627
      %v1629 = vpop.f32.mrf.mxu0
      %v1630 = vadd.f32 %v1490, %v1629
      %1631 = vmatmul.bf16.gmra.mxu0 %v1569
      %v1632 = vpop.f32.mrf.mxu0
      %v1633 = vadd.f32 %v1493, %v1632
      %v1634 = vpop.f32.mrf.mxu0
      %v1635 = vadd.f32 %v1495, %v1634
      %1636 = vmatmul.bf16.gmra.mxu0 %v1572
      %v1637 = vpop.f32.mrf.mxu0
      %v1638 = vadd.f32 %v1498, %v1637
      %v1639 = vpop.f32.mrf.mxu0
      %v1640 = vadd.f32 %v1500, %v1639
      %1641 = vmatmul.bf16.gmra.mxu0 %v1575
      %v1642 = vpop.f32.mrf.mxu0
      %v1643 = vadd.f32 %v1503, %v1642
      %v1644 = vpop.f32.mrf.mxu0
      %v1645 = vadd.f32 %v1505, %v1644
      %1646 = vmatmul.bf16.gmra.mxu0 %v1578
      %v1647 = vpop.f32.mrf.mxu0
      %v1648 = vadd.f32 %v1508, %v1647
      %v1649 = vpop.f32.mrf.mxu0
      %v1650 = vadd.f32 %v1510, %v1649
      %1651 = vmatmul.bf16.gmra.mxu0 %v1581
      %v1652 = vpop.f32.mrf.mxu0
      %v1653 = vadd.f32 %v1513, %v1652
      %v1654 = vpop.f32.mrf.mxu0
      %v1655 = vadd.f32 %v1515, %v1654
      %1656 = vmatmul.bf16.gmra.mxu0 %v1584
      %v1657 = vpop.f32.mrf.mxu0
      %v1658 = vadd.f32 %v1518, %v1657
      %v1659 = vpop.f32.mrf.mxu0
      %v1660 = vadd.f32 %v1520, %v1659
      %1661 = vmatmul.bf16.gmra.mxu0 %v1587
      %v1662 = vpop.f32.mrf.mxu0
      %v1663 = vadd.f32 %v1523, %v1662
      %v1664 = vpop.f32.mrf.mxu0
      %v1665 = vadd.f32 %v1525, %v1664
      %1666 = vmatmul.bf16.gmra.mxu0 %v1590
      %v1667 = vpop.f32.mrf.mxu0
      %v1668 = vadd.f32 %v1528, %v1667
      %v1669 = vpop.f32.mrf.mxu0
      %v1670 = vadd.f32 %v1530, %v1669
      %1671 = vmatmul.bf16.gmra.mxu0 %v1593
      %v1672 = vpop.f32.mrf.mxu0
      %v1673 = vadd.f32 %v1533, %v1672
      %v1674 = vpop.f32.mrf.mxu0
      %v1675 = vadd.f32 %v1535, %v1674
      %1676 = vmatmul.bf16.gmra.mxu0 %v1596
      %v1677 = vpop.f32.mrf.mxu0
      %v1678 = vadd.f32 %v1538, %v1677
      %v1679 = vpop.f32.mrf.mxu0
      %v1680 = vadd.f32 %v1540, %v1679
      %1681 = vmatmul.bf16.gmra.mxu0 %v1599
      %v1682 = vpop.f32.mrf.mxu0
      %v1683 = vadd.f32 %v1543, %v1682
      %v1684 = vpop.f32.mrf.mxu0
      %v1685 = vadd.f32 %v1545, %v1684
      %1686 = vmatmul.bf16.gmra.mxu0 %v1602
      %v1687 = vpop.f32.mrf.mxu0
      %v1688 = vadd.f32 %v1548, %v1687
      %v1689 = vpop.f32.mrf.mxu0
      %v1690 = vadd.f32 %v1550, %v1689
      %1691 = vmatmul.bf16.gmra.mxu0 %v1605
      %v1692 = vpop.f32.mrf.mxu0
      %v1693 = vadd.f32 %v1553, %v1692
      %v1694 = vpop.f32.mrf.mxu0
      %v1695 = vadd.f32 %v1555, %v1694
      %1696 = vmatmul.bf16.gmra.mxu0 %v1608
      %v1697 = vpop.f32.mrf.mxu0
      %v1698 = vadd.f32 %v1558, %v1697
      %v1699 = vpop.f32.mrf.mxu0
      %v1700 = vadd.f32 %v1560, %v1699
      %1701 = vdwg.mxu0
      %v1702 = vld [vmem:[#allocation2] sm:$0xff]
      %v1703 = vld [vmem:[#allocation2 + $0x8] sm:$0xff]
      %v1704 = vld [vmem:[#allocation2 + $0x10] sm:$0xff]
      %v1705 = vld [vmem:[#allocation2 + $0x18] sm:$0xff]
      %v1706 = vld [vmem:[#allocation2 + $0x20] sm:$0xff]
      %v1707 = vld [vmem:[#allocation2 + $0x28] sm:$0xff]
      %v1708 = vld [vmem:[#allocation2 + $0x30] sm:$0xff]
      %v1709 = vld [vmem:[#allocation2 + $0x38] sm:$0xff]
      %v1710 = vld [vmem:[#allocation2 + $0x40] sm:$0xff]
      %v1711 = vld [vmem:[#allocation2 + $0x48] sm:$0xff]
      %v1712 = vld [vmem:[#allocation2 + $0x50] sm:$0xff]
      %v1713 = vld [vmem:[#allocation2 + $0x58] sm:$0xff]
      %v1714 = vld [vmem:[#allocation2 + $0x60] sm:$0xff]
      %v1715 = vld [vmem:[#allocation2 + $0x68] sm:$0xff]
      %v1716 = vld [vmem:[#allocation2 + $0x70] sm:$0xff]
      %v1717 = vld [vmem:[#allocation2 + $0x78] sm:$0xff]
      %v1718 = vld [vmem:[#allocation2 + $0x80] sm:$0xff]
      %v1719 = vld [vmem:[#allocation2 + $0x88] sm:$0xff]
      %v1720 = vld [vmem:[#allocation2 + $0x90] sm:$0xff]
      %v1721 = vld [vmem:[#allocation2 + $0x98] sm:$0xff]
      %v1722 = vld [vmem:[#allocation2 + $0xa0] sm:$0xff]
      %v1723 = vld [vmem:[#allocation2 + $0xa8] sm:$0xff]
      %v1724 = vld [vmem:[#allocation2 + $0xb0] sm:$0xff]
      %v1725 = vld [vmem:[#allocation2 + $0xb8] sm:$0xff]
      %v1726 = vld [vmem:[#allocation2 + $0xc0] sm:$0xff]
      %v1727 = vld [vmem:[#allocation2 + $0xc8] sm:$0xff]
      %v1728 = vld [vmem:[#allocation2 + $0xd0] sm:$0xff]
      %v1729 = vld [vmem:[#allocation2 + $0xd8] sm:$0xff]
      %v1730 = vld [vmem:[#allocation2 + $0xe0] sm:$0xff]
      %v1731 = vld [vmem:[#allocation2 + $0xe8] sm:$0xff]
      %v1732 = vld [vmem:[#allocation2 + $0xf0] sm:$0xff]
      %v1733 = vld [vmem:[#allocation2 + $0xf8] sm:$0xff]
      %v1734 = vld [vmem:[#allocation2 + $0x100] sm:$0xff]
      %v1735 = vld [vmem:[#allocation2 + $0x108] sm:$0xff]
      %v1736 = vld [vmem:[#allocation2 + $0x110] sm:$0xff]
      %v1737 = vld [vmem:[#allocation2 + $0x118] sm:$0xff]
      %v1738 = vld [vmem:[#allocation2 + $0x120] sm:$0xff]
      %v1739 = vld [vmem:[#allocation2 + $0x128] sm:$0xff]
      %v1740 = vld [vmem:[#allocation2 + $0x130] sm:$0xff]
      %v1741 = vld [vmem:[#allocation2 + $0x138] sm:$0xff]
      %v1742 = vld [vmem:[#allocation2 + $0x140] sm:$0xff]
      %v1743 = vld [vmem:[#allocation2 + $0x148] sm:$0xff]
      %v1744 = vld [vmem:[#allocation2 + $0x150] sm:$0xff]
      %v1745 = vld [vmem:[#allocation2 + $0x158] sm:$0xff]
      %v1746 = vld [vmem:[#allocation2 + $0x160] sm:$0xff]
      %v1747 = vld [vmem:[#allocation2 + $0x168] sm:$0xff]
      %v1748 = vld [vmem:[#allocation2 + $0x170] sm:$0xff]
      %v1749 = vld [vmem:[#allocation2 + $0x178] sm:$0xff]
      %v1750 = vld [vmem:[#allocation2 + $0x180] sm:$0xff]
      %v1751 = vld [vmem:[#allocation2 + $0x188] sm:$0xff]
      %v1752 = vld [vmem:[#allocation2 + $0x190] sm:$0xff]
      %v1753 = vld [vmem:[#allocation2 + $0x198] sm:$0xff]
      %v1754 = vld [vmem:[#allocation2 + $0x1a0] sm:$0xff]
      %v1755 = vld [vmem:[#allocation2 + $0x1a8] sm:$0xff]
      %v1756 = vld [vmem:[#allocation2 + $0x1b0] sm:$0xff]
      %v1757 = vld [vmem:[#allocation2 + $0x1b8] sm:$0xff]
      %v1758 = vld [vmem:[#allocation2 + $0x1c0] sm:$0xff]
      %v1759 = vld [vmem:[#allocation2 + $0x1c8] sm:$0xff]
      %v1760 = vld [vmem:[#allocation2 + $0x1d0] sm:$0xff]
      %v1761 = vld [vmem:[#allocation2 + $0x1d8] sm:$0xff]
      %v1762 = vmax.f32 %v1702, %v1705
      %v1763 = vmax.f32 %v1703, %v1706
      %v1764 = vmax.f32 %v1704, %v1707
      %v1765 = vmax.f32 %v1705, %v1708
      %v1766 = vmax.f32 %v1706, %v1709
      %v1767 = vmax.f32 %v1707, %v1710
      %v1768 = vmax.f32 %v1708, %v1711
      %v1769 = vmax.f32 %v1709, %v1712
      %v1770 = vmax.f32 %v1710, %v1713
      %v1771 = vmax.f32 %v1711, %v1714
      %v1772 = vmax.f32 %v1712, %v1715
      %v1773 = vmax.f32 %v1713, %v1716
      %v1774 = vmax.f32 %v1714, %v1717
      %v1775 = vmax.f32 %v1715, %v1718
      %v1776 = vmax.f32 %v1716, %v1719
      %v1777 = vmax.f32 %v1717, %v1720
      %v1778 = vmax.f32 %v1718, %v1721
      %v1779 = vmax.f32 %v1719, %v1722
      %v1780 = vmax.f32 %v1720, %v1723
      %v1781 = vmax.f32 %v1721, %v1724
      %v1782 = vmax.f32 %v1722, %v1725
      %v1783 = vmax.f32 %v1723, %v1726
      %v1784 = vmax.f32 %v1724, %v1727
      %v1785 = vmax.f32 %v1725, %v1728
      %v1786 = vmax.f32 %v1726, %v1729
      %v1787 = vmax.f32 %v1727, %v1730
      %v1788 = vmax.f32 %v1728, %v1731
      %v1789 = vmax.f32 %v1729, %v1732
      %v1790 = vmax.f32 %v1730, %v1733
      %v1791 = vmax.f32 %v1731, %v1734
      %v1792 = vmax.f32 %v1732, %v1735
      %v1793 = vmax.f32 %v1733, %v1736
      %v1794 = vmax.f32 %v1734, %v1737
      %v1795 = vmax.f32 %v1735, %v1738
      %v1796 = vmax.f32 %v1736, %v1739
      %v1797 = vmax.f32 %v1737, %v1740
      %v1798 = vmax.f32 %v1738, %v1741
      %v1799 = vmax.f32 %v1739, %v1742
      %v1800 = vmax.f32 %v1740, %v1743
      %v1801 = vmax.f32 %v1741, %v1744
      %v1802 = vmax.f32 %v1742, %v1745
      %v1803 = vmax.f32 %v1743, %v1746
      %v1804 = vmax.f32 %v1744, %v1747
      %v1805 = vmax.f32 %v1745, %v1748
      %v1806 = vmax.f32 %v1746, %v1749
      %v1807 = vmax.f32 %v1747, %v1750
      %v1808 = vmax.f32 %v1748, %v1751
      %v1809 = vmax.f32 %v1749, %v1752
      %v1810 = vmax.f32 %v1762, %v1708
      %v1811 = vmax.f32 %v1763, %v1709
      %v1812 = vmax.f32 %v1764, %v1710
      %v1813 = vmax.f32 %v1765, %v1711
      %v1814 = vmax.f32 %v1766, %v1712
      %v1815 = vmax.f32 %v1767, %v1713
      %v1816 = vmax.f32 %v1768, %v1714
      %v1817 = vmax.f32 %v1769, %v1715
      %v1818 = vmax.f32 %v1770, %v1716
      %v1819 = vmax.f32 %v1771, %v1717
      %v1820 = vmax.f32 %v1772, %v1718
      %v1821 = vmax.f32 %v1773, %v1719
      %v1822 = vmax.f32 %v1774, %v1720
      %v1823 = vmax.f32 %v1775, %v1721
      %v1824 = vmax.f32 %v1776, %v1722
      %v1825 = vmax.f32 %v1777, %v1723
      %v1826 = vmax.f32 %v1778, %v1724
      %v1827 = vmax.f32 %v1779, %v1725
      %v1828 = vmax.f32 %v1780, %v1726
      %v1829 = vmax.f32 %v1781, %v1727
      %v1830 = vmax.f32 %v1782, %v1728
      %v1831 = vmax.f32 %v1783, %v1729
      %v1832 = vmax.f32 %v1784, %v1730
      %v1833 = vmax.f32 %v1785, %v1731
      %v1834 = vmax.f32 %v1786, %v1732
      %v1835 = vmax.f32 %v1787, %v1733
      %v1836 = vmax.f32 %v1788, %v1734
      %v1837 = vmax.f32 %v1789, %v1735
      %v1838 = vmax.f32 %v1790, %v1736
      %v1839 = vmax.f32 %v1791, %v1737
      %v1840 = vmax.f32 %v1792, %v1738
      %v1841 = vmax.f32 %v1793, %v1739
      %v1842 = vmax.f32 %v1794, %v1740
      %v1843 = vmax.f32 %v1795, %v1741
      %v1844 = vmax.f32 %v1796, %v1742
      %v1845 = vmax.f32 %v1797, %v1743
      %v1846 = vmax.f32 %v1798, %v1744
      %v1847 = vmax.f32 %v1799, %v1745
      %v1848 = vmax.f32 %v1800, %v1746
      %v1849 = vmax.f32 %v1801, %v1747
      %v1850 = vmax.f32 %v1802, %v1748
      %v1851 = vmax.f32 %v1803, %v1749
      %v1852 = vmax.f32 %v1804, %v1750
      %v1853 = vmax.f32 %v1805, %v1751
      %v1854 = vmax.f32 %v1806, %v1752
      %v1855 = vmax.f32 %v1807, %v1753
      %v1856 = vmax.f32 %v1808, %v1754
      %v1857 = vmax.f32 %v1809, %v1755
      %v1858 = vmax.f32 %v1810, %v1711
      %v1859 = vmax.f32 %v1811, %v1712
      %v1860 = vmax.f32 %v1812, %v1713
      %v1861 = vmax.f32 %v1813, %v1714
      %v1862 = vmax.f32 %v1814, %v1715
      %v1863 = vmax.f32 %v1815, %v1716
      %v1864 = vmax.f32 %v1816, %v1717
      %v1865 = vmax.f32 %v1817, %v1718
      %v1866 = vmax.f32 %v1818, %v1719
      %v1867 = vmax.f32 %v1819, %v1720
      %v1868 = vmax.f32 %v1820, %v1721
      %v1869 = vmax.f32 %v1821, %v1722
      %v1870 = vmax.f32 %v1822, %v1723
      %v1871 = vmax.f32 %v1823, %v1724
      %v1872 = vmax.f32 %v1824, %v1725
      %v1873 = vmax.f32 %v1825, %v1726
      %v1874 = vmax.f32 %v1826, %v1727
      %v1875 = vmax.f32 %v1827, %v1728
      %v1876 = vmax.f32 %v1828, %v1729
      %v1877 = vmax.f32 %v1829, %v1730
      %v1878 = vmax.f32 %v1830, %v1731
      %v1879 = vmax.f32 %v1831, %v1732
      %v1880 = vmax.f32 %v1832, %v1733
      %v1881 = vmax.f32 %v1833, %v1734
      %v1882 = vmax.f32 %v1834, %v1735
      %v1883 = vmax.f32 %v1835, %v1736
      %v1884 = vmax.f32 %v1836, %v1737
      %v1885 = vmax.f32 %v1837, %v1738
      %v1886 = vmax.f32 %v1838, %v1739
      %v1887 = vmax.f32 %v1839, %v1740
      %v1888 = vmax.f32 %v1840, %v1741
      %v1889 = vmax.f32 %v1841, %v1742
      %v1890 = vmax.f32 %v1842, %v1743
      %v1891 = vmax.f32 %v1843, %v1744
      %v1892 = vmax.f32 %v1844, %v1745
      %v1893 = vmax.f32 %v1845, %v1746
      %v1894 = vmax.f32 %v1846, %v1747
      %v1895 = vmax.f32 %v1847, %v1748
      %v1896 = vmax.f32 %v1848, %v1749
      %v1897 = vmax.f32 %v1849, %v1750
      %v1898 = vmax.f32 %v1850, %v1751
      %v1899 = vmax.f32 %v1851, %v1752
      %v1900 = vmax.f32 %v1852, %v1753
      %v1901 = vmax.f32 %v1853, %v1754
      %v1902 = vmax.f32 %v1854, %v1755
      %v1903 = vmax.f32 %v1855, %v1756
      %v1904 = vmax.f32 %v1856, %v1757
      %v1905 = vmax.f32 %v1857, %v1758
      %v1906 = vmax.f32 %v1858, %v1714
      %v1907 = vmax.f32 %v1859, %v1715
      %v1908 = vmax.f32 %v1860, %v1716
      %v1909 = vmax.f32 %v1861, %v1717
      %v1910 = vmax.f32 %v1862, %v1718
      %v1911 = vmax.f32 %v1863, %v1719
      %v1912 = vmax.f32 %v1864, %v1720
      %v1913 = vmax.f32 %v1865, %v1721
      %v1914 = vmax.f32 %v1866, %v1722
      %v1915 = vmax.f32 %v1867, %v1723
      %v1916 = vmax.f32 %v1868, %v1724
      %v1917 = vmax.f32 %v1869, %v1725
      %v1918 = vmax.f32 %v1870, %v1726
      %v1919 = vmax.f32 %v1871, %v1727
      %v1920 = vmax.f32 %v1872, %v1728
      %v1921 = vmax.f32 %v1873, %v1729
      %v1922 = vmax.f32 %v1874, %v1730
      %v1923 = vmax.f32 %v1875, %v1731
      %v1924 = vmax.f32 %v1876, %v1732
      %v1925 = vmax.f32 %v1877, %v1733
      %v1926 = vmax.f32 %v1878, %v1734
      %v1927 = vmax.f32 %v1879, %v1735
      %v1928 = vmax.f32 %v1880, %v1736
      %v1929 = vmax.f32 %v1881, %v1737
      %v1930 = vmax.f32 %v1882, %v1738
      %v1931 = vmax.f32 %v1883, %v1739
      %v1932 = vmax.f32 %v1884, %v1740
      %v1933 = vmax.f32 %v1885, %v1741
      %v1934 = vmax.f32 %v1886, %v1742
      %v1935 = vmax.f32 %v1887, %v1743
      %v1936 = vmax.f32 %v1888, %v1744
      %v1937 = vmax.f32 %v1889, %v1745
      %v1938 = vmax.f32 %v1890, %v1746
      %v1939 = vmax.f32 %v1891, %v1747
      %v1940 = vmax.f32 %v1892, %v1748
      %v1941 = vmax.f32 %v1893, %v1749
      %v1942 = vmax.f32 %v1894, %v1750
      %v1943 = vmax.f32 %v1895, %v1751
      %v1944 = vmax.f32 %v1896, %v1752
      %v1945 = vmax.f32 %v1897, %v1753
      %v1946 = vmax.f32 %v1898, %v1754
      %v1947 = vmax.f32 %v1899, %v1755
      %v1948 = vmax.f32 %v1900, %v1756
      %v1949 = vmax.f32 %v1901, %v1757
      %v1950 = vmax.f32 %v1902, %v1758
      %v1951 = vmax.f32 %v1903, %v1759
      %v1952 = vmax.f32 %v1904, %v1760
      %v1953 = vmax.f32 %v1905, %v1761
      %v1954 = vrot.slane %v1906, 7
      %v1955 = vrot.slane %v1907, 7
      %v1956 = vrot.slane %v1908, 7
      %v1957 = vrot.slane %v1909, 7
      %v1958 = vrot.slane %v1910, 7
      %v1959 = vrot.slane %v1911, 7
      %v1960 = vrot.slane %v1912, 7
      %v1961 = vrot.slane %v1913, 7
      %v1962 = vrot.slane %v1914, 7
      %v1963 = vrot.slane %v1915, 7
      %v1964 = vrot.slane %v1916, 7
      %v1965 = vrot.slane %v1917, 7
      %v1966 = vrot.slane %v1918, 7
      %v1967 = vrot.slane %v1919, 7
      %v1968 = vrot.slane %v1920, 7
      %v1969 = vrot.slane %v1921, 7
      %v1970 = vrot.slane %v1922, 7
      %v1971 = vrot.slane %v1923, 7
      %v1972 = vrot.slane %v1924, 7
      %v1973 = vrot.slane %v1925, 7
      %v1974 = vrot.slane %v1926, 7
      %v1975 = vrot.slane %v1927, 7
      %v1976 = vrot.slane %v1928, 7
      %v1977 = vrot.slane %v1929, 7
      %v1978 = vrot.slane %v1930, 7
      %v1979 = vrot.slane %v1931, 7
      %v1980 = vrot.slane %v1932, 7
      %v1981 = vrot.slane %v1933, 7
      %v1982 = vrot.slane %v1934, 7
      %v1983 = vrot.slane %v1935, 7
      %v1984 = vrot.slane %v1936, 7
      %v1985 = vrot.slane %v1937, 7
      %v1986 = vrot.slane %v1938, 7
      %v1987 = vrot.slane %v1939, 7
      %v1988 = vrot.slane %v1940, 7
      %v1989 = vrot.slane %v1941, 7
      %v1990 = vrot.slane %v1942, 7
      %v1991 = vrot.slane %v1943, 7
      %v1992 = vrot.slane %v1944, 7
      %v1993 = vrot.slane %v1945, 7
      %v1994 = vrot.slane %v1946, 7
      %v1995 = vrot.slane %v1947, 7
      %v1996 = vrot.slane %v1948, 7
      %v1997 = vrot.slane %v1949, 7
      %v1998 = vrot.slane %v1950, 7
      %v1999 = vrot.slane %v1951, 7
      %v2000 = vrot.slane %v1952, 7
      %v2001 = vrot.slane %v1953, 7
      %v2002 = vsel %vm967, %v1999, %v2000
      %v2003 = vsel %vm967, %v1998, %v1999
      %v2004 = vsel %vm967, %v1996, %v1997
      %v2005 = vsel %vm967, %v1995, %v1996
      %v2006 = vsel %vm967, %v1993, %v1994
      %v2007 = vsel %vm967, %v1992, %v1993
      %v2008 = vsel %vm967, %v1990, %v1991
      %v2009 = vsel %vm967, %v1989, %v1990
      %v2010 = vsel %vm967, %v1987, %v1988
      %v2011 = vsel %vm967, %v1986, %v1987
      %v2012 = vsel %vm967, %v1984, %v1985
      %v2013 = vsel %vm967, %v1983, %v1984
      %v2014 = vsel %vm967, %v1981, %v1982
      %v2015 = vsel %vm967, %v1980, %v1981
      %v2016 = vsel %vm967, %v1978, %v1979
      %v2017 = vsel %vm967, %v1977, %v1978
      %v2018 = vsel %vm967, %v1975, %v1976
      %v2019 = vsel %vm967, %v1974, %v1975
      %v2020 = vsel %vm967, %v1972, %v1973
      %v2021 = vsel %vm967, %v1971, %v1972
      %v2022 = vsel %vm967, %v1969, %v1970
      %v2023 = vsel %vm967, %v1968, %v1969
      %v2024 = vsel %vm967, %v1966, %v1967
      %v2025 = vsel %vm967, %v1965, %v1966
      %v2026 = vsel %vm967, %v1963, %v1964
      %v2027 = vsel %vm967, %v1962, %v1963
      %v2028 = vsel %vm967, %v1960, %v1961
      %v2029 = vsel %vm967, %v1959, %v1960
      %v2030 = vsel %vm967, %v1957, %v1958
      %v2031 = vsel %vm967, %v1956, %v1957
      %v2032 = vsel %vm967, %v1954, %v1955
      %v2033 = vsel %vm967, %v2001, %v1954
      %v2034 = vmax.f32 %v1906, %v2033
      %v2035 = vmax.f32 %v1907, %v2032
      %v2036 = vmax.f32 %v1909, %v2031
      %v2037 = vmax.f32 %v1910, %v2030
      %v2038 = vmax.f32 %v1912, %v2029
      %v2039 = vmax.f32 %v1913, %v2028
      %v2040 = vmax.f32 %v1915, %v2027
      %v2041 = vmax.f32 %v1916, %v2026
      %v2042 = vmax.f32 %v1918, %v2025
      %v2043 = vmax.f32 %v1919, %v2024
      %v2044 = vmax.f32 %v1921, %v2023
      %v2045 = vmax.f32 %v1922, %v2022
      %v2046 = vmax.f32 %v1924, %v2021
      %v2047 = vmax.f32 %v1925, %v2020
      %v2048 = vmax.f32 %v1927, %v2019
      %v2049 = vmax.f32 %v1928, %v2018
      %v2050 = vmax.f32 %v1930, %v2017
      %v2051 = vmax.f32 %v1931, %v2016
      %v2052 = vmax.f32 %v1933, %v2015
      %v2053 = vmax.f32 %v1934, %v2014
      %v2054 = vmax.f32 %v1936, %v2013
      %v2055 = vmax.f32 %v1937, %v2012
      %v2056 = vmax.f32 %v1939, %v2011
      %v2057 = vmax.f32 %v1940, %v2010
      %v2058 = vmax.f32 %v1942, %v2009
      %v2059 = vmax.f32 %v1943, %v2008
      %v2060 = vmax.f32 %v1945, %v2007
      %v2061 = vmax.f32 %v1946, %v2006
      %v2062 = vmax.f32 %v1948, %v2005
      %v2063 = vmax.f32 %v1949, %v2004
      %v2064 = vmax.f32 %v1951, %v2003
      %v2065 = vmax.f32 %v1952, %v2002
      %v2066 = vrot.slane %v1906, 1
      %v2067 = vrot.slane %v1907, 1
      %v2068 = vrot.slane %v1908, 1
      %v2069 = vrot.slane %v1909, 1
      %v2070 = vrot.slane %v1910, 1
      %v2071 = vrot.slane %v1911, 1
      %v2072 = vrot.slane %v1912, 1
      %v2073 = vrot.slane %v1913, 1
      %v2074 = vrot.slane %v1914, 1
      %v2075 = vrot.slane %v1915, 1
      %v2076 = vrot.slane %v1916, 1
      %v2077 = vrot.slane %v1917, 1
      %v2078 = vrot.slane %v1918, 1
      %v2079 = vrot.slane %v1919, 1
      %v2080 = vrot.slane %v1920, 1
      %v2081 = vrot.slane %v1921, 1
      %v2082 = vrot.slane %v1922, 1
      %v2083 = vrot.slane %v1923, 1
      %v2084 = vrot.slane %v1924, 1
      %v2085 = vrot.slane %v1925, 1
      %v2086 = vrot.slane %v1926, 1
      %v2087 = vrot.slane %v1927, 1
      %v2088 = vrot.slane %v1928, 1
      %v2089 = vrot.slane %v1929, 1
      %v2090 = vrot.slane %v1930, 1
      %v2091 = vrot.slane %v1931, 1
      %v2092 = vrot.slane %v1932, 1
      %v2093 = vrot.slane %v1933, 1
      %v2094 = vrot.slane %v1934, 1
      %v2095 = vrot.slane %v1935, 1
      %v2096 = vrot.slane %v1936, 1
      %v2097 = vrot.slane %v1937, 1
      %v2098 = vrot.slane %v1938, 1
      %v2099 = vrot.slane %v1939, 1
      %v2100 = vrot.slane %v1940, 1
      %v2101 = vrot.slane %v1941, 1
      %v2102 = vrot.slane %v1942, 1
      %v2103 = vrot.slane %v1943, 1
      %v2104 = vrot.slane %v1944, 1
      %v2105 = vrot.slane %v1945, 1
      %v2106 = vrot.slane %v1946, 1
      %v2107 = vrot.slane %v1947, 1
      %v2108 = vrot.slane %v1948, 1
      %v2109 = vrot.slane %v1949, 1
      %v2110 = vrot.slane %v1950, 1
      %v2111 = vrot.slane %v1951, 1
      %v2112 = vrot.slane %v1952, 1
      %v2113 = vrot.slane %v1953, 1
      %v2114 = vsel %vm1080, %v2112, %v2113
      %v2115 = vsel %vm1080, %v2111, %v2112
      %v2116 = vsel %vm1080, %v2109, %v2110
      %v2117 = vsel %vm1080, %v2108, %v2109
      %v2118 = vsel %vm1080, %v2106, %v2107
      %v2119 = vsel %vm1080, %v2105, %v2106
      %v2120 = vsel %vm1080, %v2103, %v2104
      %v2121 = vsel %vm1080, %v2102, %v2103
      %v2122 = vsel %vm1080, %v2100, %v2101
      %v2123 = vsel %vm1080, %v2099, %v2100
      %v2124 = vsel %vm1080, %v2097, %v2098
      %v2125 = vsel %vm1080, %v2096, %v2097
      %v2126 = vsel %vm1080, %v2094, %v2095
      %v2127 = vsel %vm1080, %v2093, %v2094
      %v2128 = vsel %vm1080, %v2091, %v2092
      %v2129 = vsel %vm1080, %v2090, %v2091
      %v2130 = vsel %vm1080, %v2088, %v2089
      %v2131 = vsel %vm1080, %v2087, %v2088
      %v2132 = vsel %vm1080, %v2085, %v2086
      %v2133 = vsel %vm1080, %v2084, %v2085
      %v2134 = vsel %vm1080, %v2082, %v2083
      %v2135 = vsel %vm1080, %v2081, %v2082
      %v2136 = vsel %vm1080, %v2079, %v2080
      %v2137 = vsel %vm1080, %v2078, %v2079
      %v2138 = vsel %vm1080, %v2076, %v2077
      %v2139 = vsel %vm1080, %v2075, %v2076
      %v2140 = vsel %vm1080, %v2073, %v2074
      %v2141 = vsel %vm1080, %v2072, %v2073
      %v2142 = vsel %vm1080, %v2070, %v2071
      %v2143 = vsel %vm1080, %v2069, %v2070
      %v2144 = vsel %vm1080, %v2067, %v2068
      %v2145 = vsel %vm1080, %v2066, %v2067
      %v2146 = vmax.f32 %v2034, %v2145
      %v2147 = vmax.f32 %v2035, %v2144
      %v2148 = vmax.f32 %v2036, %v2143
      %v2149 = vmax.f32 %v2037, %v2142
      %v2150 = vmax.f32 %v2038, %v2141
      %v2151 = vmax.f32 %v2039, %v2140
      %v2152 = vmax.f32 %v2040, %v2139
      %v2153 = vmax.f32 %v2041, %v2138
      %v2154 = vmax.f32 %v2042, %v2137
      %v2155 = vmax.f32 %v2043, %v2136
      %v2156 = vmax.f32 %v2044, %v2135
      %v2157 = vmax.f32 %v2045, %v2134
      %v2158 = vmax.f32 %v2046, %v2133
      %v2159 = vmax.f32 %v2047, %v2132
      %v2160 = vmax.f32 %v2048, %v2131
      %v2161 = vmax.f32 %v2049, %v2130
      %v2162 = vmax.f32 %v2050, %v2129
      %v2163 = vmax.f32 %v2051, %v2128
      %v2164 = vmax.f32 %v2052, %v2127
      %v2165 = vmax.f32 %v2053, %v2126
      %v2166 = vmax.f32 %v2054, %v2125
      %v2167 = vmax.f32 %v2055, %v2124
      %v2168 = vmax.f32 %v2056, %v2123
      %v2169 = vmax.f32 %v2057, %v2122
      %v2170 = vmax.f32 %v2058, %v2121
      %v2171 = vmax.f32 %v2059, %v2120
      %v2172 = vmax.f32 %v2060, %v2119
      %v2173 = vmax.f32 %v2061, %v2118
      %v2174 = vmax.f32 %v2062, %v2117
      %v2175 = vmax.f32 %v2063, %v2116
      %v2176 = vmax.f32 %v2064, %v2115
      %v2177 = vmax.f32 %v2065, %v2114
      %v2178 = vrot.slane %v1906, 6
      %v2179 = vrot.slane %v1907, 6
      %v2180 = vrot.slane %v1908, 6
      %v2181 = vrot.slane %v1909, 6
      %v2182 = vrot.slane %v1910, 6
      %v2183 = vrot.slane %v1911, 6
      %v2184 = vrot.slane %v1912, 6
      %v2185 = vrot.slane %v1913, 6
      %v2186 = vrot.slane %v1914, 6
      %v2187 = vrot.slane %v1915, 6
      %v2188 = vrot.slane %v1916, 6
      %v2189 = vrot.slane %v1917, 6
      %v2190 = vrot.slane %v1918, 6
      %v2191 = vrot.slane %v1919, 6
      %v2192 = vrot.slane %v1920, 6
      %v2193 = vrot.slane %v1921, 6
      %v2194 = vrot.slane %v1922, 6
      %v2195 = vrot.slane %v1923, 6
      %v2196 = vrot.slane %v1924, 6
      %v2197 = vrot.slane %v1925, 6
      %v2198 = vrot.slane %v1926, 6
      %v2199 = vrot.slane %v1927, 6
      %v2200 = vrot.slane %v1928, 6
      %v2201 = vrot.slane %v1929, 6
      %v2202 = vrot.slane %v1930, 6
      %v2203 = vrot.slane %v1931, 6
      %v2204 = vrot.slane %v1932, 6
      %v2205 = vrot.slane %v1933, 6
      %v2206 = vrot.slane %v1934, 6
      %v2207 = vrot.slane %v1935, 6
      %v2208 = vrot.slane %v1936, 6
      %v2209 = vrot.slane %v1937, 6
      %v2210 = vrot.slane %v1938, 6
      %v2211 = vrot.slane %v1939, 6
      %v2212 = vrot.slane %v1940, 6
      %v2213 = vrot.slane %v1941, 6
      %v2214 = vrot.slane %v1942, 6
      %v2215 = vrot.slane %v1943, 6
      %v2216 = vrot.slane %v1944, 6
      %v2217 = vrot.slane %v1945, 6
      %v2218 = vrot.slane %v1946, 6
      %v2219 = vrot.slane %v1947, 6
      %v2220 = vrot.slane %v1948, 6
      %v2221 = vrot.slane %v1949, 6
      %v2222 = vrot.slane %v1950, 6
      %v2223 = vrot.slane %v1951, 6
      %v2224 = vrot.slane %v1952, 6
      %v2225 = vrot.slane %v1953, 6
      %v2226 = vsel %vm1193, %v2223, %v2224
      %v2227 = vsel %vm1193, %v2222, %v2223
      %v2228 = vsel %vm1193, %v2220, %v2221
      %v2229 = vsel %vm1193, %v2219, %v2220
      %v2230 = vsel %vm1193, %v2217, %v2218
      %v2231 = vsel %vm1193, %v2216, %v2217
      %v2232 = vsel %vm1193, %v2214, %v2215
      %v2233 = vsel %vm1193, %v2213, %v2214
      %v2234 = vsel %vm1193, %v2211, %v2212
      %v2235 = vsel %vm1193, %v2210, %v2211
      %v2236 = vsel %vm1193, %v2208, %v2209
      %v2237 = vsel %vm1193, %v2207, %v2208
      %v2238 = vsel %vm1193, %v2205, %v2206
      %v2239 = vsel %vm1193, %v2204, %v2205
      %v2240 = vsel %vm1193, %v2202, %v2203
      %v2241 = vsel %vm1193, %v2201, %v2202
      %v2242 = vsel %vm1193, %v2199, %v2200
      %v2243 = vsel %vm1193, %v2198, %v2199
      %v2244 = vsel %vm1193, %v2196, %v2197
      %v2245 = vsel %vm1193, %v2195, %v2196
      %v2246 = vsel %vm1193, %v2193, %v2194
      %v2247 = vsel %vm1193, %v2192, %v2193
      %v2248 = vsel %vm1193, %v2190, %v2191
      %v2249 = vsel %vm1193, %v2189, %v2190
      %v2250 = vsel %vm1193, %v2187, %v2188
      %v2251 = vsel %vm1193, %v2186, %v2187
      %v2252 = vsel %vm1193, %v2184, %v2185
      %v2253 = vsel %vm1193, %v2183, %v2184
      %v2254 = vsel %vm1193, %v2181, %v2182
      %v2255 = vsel %vm1193, %v2180, %v2181
      %v2256 = vsel %vm1193, %v2178, %v2179
      %v2257 = vsel %vm1193, %v2225, %v2178
      %v2258 = vmax.f32 %v2146, %v2257
      %v2259 = vmax.f32 %v2147, %v2256
      %v2260 = vmax.f32 %v2148, %v2255
      %v2261 = vmax.f32 %v2149, %v2254
      %v2262 = vmax.f32 %v2150, %v2253
      %v2263 = vmax.f32 %v2151, %v2252
      %v2264 = vmax.f32 %v2152, %v2251
      %v2265 = vmax.f32 %v2153, %v2250
      %v2266 = vmax.f32 %v2154, %v2249
      %v2267 = vmax.f32 %v2155, %v2248
      %v2268 = vmax.f32 %v2156, %v2247
      %v2269 = vmax.f32 %v2157, %v2246
      %v2270 = vmax.f32 %v2158, %v2245
      %v2271 = vmax.f32 %v2159, %v2244
      %v2272 = vmax.f32 %v2160, %v2243
      %v2273 = vmax.f32 %v2161, %v2242
      %v2274 = vmax.f32 %v2162, %v2241
      %v2275 = vmax.f32 %v2163, %v2240
      %v2276 = vmax.f32 %v2164, %v2239
      %v2277 = vmax.f32 %v2165, %v2238
      %v2278 = vmax.f32 %v2166, %v2237
      %v2279 = vmax.f32 %v2167, %v2236
      %v2280 = vmax.f32 %v2168, %v2235
      %v2281 = vmax.f32 %v2169, %v2234
      %v2282 = vmax.f32 %v2170, %v2233
      %v2283 = vmax.f32 %v2171, %v2232
      %v2284 = vmax.f32 %v2172, %v2231
      %v2285 = vmax.f32 %v2173, %v2230
      %v2286 = vmax.f32 %v2174, %v2229
      %v2287 = vmax.f32 %v2175, %v2228
      %v2288 = vmax.f32 %v2176, %v2227
      %v2289 = vmax.f32 %v2177, %v2226
      %v2290 = vrot.slane %v1906, 2
      %v2291 = vrot.slane %v1907, 2
      %v2292 = vrot.slane %v1908, 2
      %v2293 = vrot.slane %v1909, 2
      %v2294 = vrot.slane %v1910, 2
      %v2295 = vrot.slane %v1911, 2
      %v2296 = vrot.slane %v1912, 2
      %v2297 = vrot.slane %v1913, 2
      %v2298 = vrot.slane %v1914, 2
      %v2299 = vrot.slane %v1915, 2
      %v2300 = vrot.slane %v1916, 2
      %v2301 = vrot.slane %v1917, 2
      %v2302 = vrot.slane %v1918, 2
      %v2303 = vrot.slane %v1919, 2
      %v2304 = vrot.slane %v1920, 2
      %v2305 = vrot.slane %v1921, 2
      %v2306 = vrot.slane %v1922, 2
      %v2307 = vrot.slane %v1923, 2
      %v2308 = vrot.slane %v1924, 2
      %v2309 = vrot.slane %v1925, 2
      %v2310 = vrot.slane %v1926, 2
      %v2311 = vrot.slane %v1927, 2
      %v2312 = vrot.slane %v1928, 2
      %v2313 = vrot.slane %v1929, 2
      %v2314 = vrot.slane %v1930, 2
      %v2315 = vrot.slane %v1931, 2
      %v2316 = vrot.slane %v1932, 2
      %v2317 = vrot.slane %v1933, 2
      %v2318 = vrot.slane %v1934, 2
      %v2319 = vrot.slane %v1935, 2
      %v2320 = vrot.slane %v1936, 2
      %v2321 = vrot.slane %v1937, 2
      %v2322 = vrot.slane %v1938, 2
      %v2323 = vrot.slane %v1939, 2
      %v2324 = vrot.slane %v1940, 2
      %v2325 = vrot.slane %v1941, 2
      %v2326 = vrot.slane %v1942, 2
      %v2327 = vrot.slane %v1943, 2
      %v2328 = vrot.slane %v1944, 2
      %v2329 = vrot.slane %v1945, 2
      %v2330 = vrot.slane %v1946, 2
      %v2331 = vrot.slane %v1947, 2
      %v2332 = vrot.slane %v1948, 2
      %v2333 = vrot.slane %v1949, 2
      %v2334 = vrot.slane %v1950, 2
      %v2335 = vrot.slane %v1951, 2
      %v2336 = vrot.slane %v1952, 2
      %v2337 = vrot.slane %v1953, 2
      %v2338 = vsel %vm1306, %v2336, %v2337
      %v2339 = vsel %vm1306, %v2335, %v2336
      %v2340 = vsel %vm1306, %v2333, %v2334
      %v2341 = vsel %vm1306, %v2332, %v2333
      %v2342 = vsel %vm1306, %v2330, %v2331
      %v2343 = vsel %vm1306, %v2329, %v2330
      %v2344 = vsel %vm1306, %v2327, %v2328
      %v2345 = vsel %vm1306, %v2326, %v2327
      %v2346 = vsel %vm1306, %v2324, %v2325
      %v2347 = vsel %vm1306, %v2323, %v2324
      %v2348 = vsel %vm1306, %v2321, %v2322
      %v2349 = vsel %vm1306, %v2320, %v2321
      %v2350 = vsel %vm1306, %v2318, %v2319
      %v2351 = vsel %vm1306, %v2317, %v2318
      %v2352 = vsel %vm1306, %v2315, %v2316
      %v2353 = vsel %vm1306, %v2314, %v2315
      %v2354 = vsel %vm1306, %v2312, %v2313
      %v2355 = vsel %vm1306, %v2311, %v2312
      %v2356 = vsel %vm1306, %v2309, %v2310
      %v2357 = vsel %vm1306, %v2308, %v2309
      %v2358 = vsel %vm1306, %v2306, %v2307
      %v2359 = vsel %vm1306, %v2305, %v2306
      %v2360 = vsel %vm1306, %v2303, %v2304
      %v2361 = vsel %vm1306, %v2302, %v2303
      %v2362 = vsel %vm1306, %v2300, %v2301
      %v2363 = vsel %vm1306, %v2299, %v2300
      %v2364 = vsel %vm1306, %v2297, %v2298
      %v2365 = vsel %vm1306, %v2296, %v2297
      %v2366 = vsel %vm1306, %v2294, %v2295
      %v2367 = vsel %vm1306, %v2293, %v2294
      %v2368 = vsel %vm1306, %v2291, %v2292
      %v2369 = vsel %vm1306, %v2290, %v2291
      %v2370 = vmax.f32 %v2258, %v2369
      %v2371 = vmax.f32 %v2259, %v2368
      %v2372 = vmax.f32 %v2260, %v2367
      %v2373 = vmax.f32 %v2261, %v2366
      %v2374 = vmax.f32 %v2262, %v2365
      %v2375 = vmax.f32 %v2263, %v2364
      %v2376 = vmax.f32 %v2264, %v2363
      %v2377 = vmax.f32 %v2265, %v2362
      %v2378 = vmax.f32 %v2266, %v2361
      %v2379 = vmax.f32 %v2267, %v2360
      %v2380 = vmax.f32 %v2268, %v2359
      %v2381 = vmax.f32 %v2269, %v2358
      %v2382 = vmax.f32 %v2270, %v2357
      %v2383 = vmax.f32 %v2271, %v2356
      %v2384 = vmax.f32 %v2272, %v2355
      %v2385 = vmax.f32 %v2273, %v2354
      %v2386 = vmax.f32 %v2274, %v2353
      %v2387 = vmax.f32 %v2275, %v2352
      %v2388 = vmax.f32 %v2276, %v2351
      %v2389 = vmax.f32 %v2277, %v2350
      %v2390 = vmax.f32 %v2278, %v2349
      %v2391 = vmax.f32 %v2279, %v2348
      %v2392 = vmax.f32 %v2280, %v2347
      %v2393 = vmax.f32 %v2281, %v2346
      %v2394 = vmax.f32 %v2282, %v2345
      %v2395 = vmax.f32 %v2283, %v2344
      %v2396 = vmax.f32 %v2284, %v2343
      %v2397 = vmax.f32 %v2285, %v2342
      %v2398 = vmax.f32 %v2286, %v2341
      %v2399 = vmax.f32 %v2287, %v2340
      %v2400 = vmax.f32 %v2288, %v2339
      %v2401 = vmax.f32 %v2289, %v2338
      %2402 = vst.msk [vmem:[%s614] sm:$0xff] %vm615, %v2370
      %2403 = vst.msk [vmem:[%s614 + $0x8] sm:$0xff] %vm615, %v2371
      %2404 = vst.msk [vmem:[%s614 + $0x18] sm:$0xff] %vm615, %v2372
      %2405 = vst.msk [vmem:[%s614 + $0x20] sm:$0xff] %vm615, %v2373
      %2406 = vst.msk [vmem:[%s614 + $0x30] sm:$0xff] %vm615, %v2374
      %2407 = vst.msk [vmem:[%s614 + $0x38] sm:$0xff] %vm615, %v2375
      %2408 = vst.msk [vmem:[%s614 + $0x48] sm:$0xff] %vm615, %v2376
      %2409 = vst.msk [vmem:[%s614 + $0x50] sm:$0xff] %vm615, %v2377
      %2410 = vst.msk [vmem:[%s614 + $0x60] sm:$0xff] %vm615, %v2378
      %2411 = vst.msk [vmem:[%s614 + $0x68] sm:$0xff] %vm615, %v2379
      %2412 = vst.msk [vmem:[%s614 + $0x78] sm:$0xff] %vm615, %v2380
      %2413 = vst.msk [vmem:[%s614 + $0x80] sm:$0xff] %vm615, %v2381
      %2414 = vst.msk [vmem:[%s614 + $0x90] sm:$0xff] %vm615, %v2382
      %2415 = vst.msk [vmem:[%s614 + $0x98] sm:$0xff] %vm615, %v2383
      %2416 = vst.msk [vmem:[%s614 + $0xa8] sm:$0xff] %vm615, %v2384
      %2417 = vst.msk [vmem:[%s614 + $0xb0] sm:$0xff] %vm615, %v2385
      %2418 = vst.msk [vmem:[%s614 + $0xc0] sm:$0xff] %vm615, %v2386
      %2419 = vst.msk [vmem:[%s614 + $0xc8] sm:$0xff] %vm615, %v2387
      %2420 = vst.msk [vmem:[%s614 + $0xd8] sm:$0xff] %vm615, %v2388
      %2421 = vst.msk [vmem:[%s614 + $0xe0] sm:$0xff] %vm615, %v2389
      %2422 = vst.msk [vmem:[%s614 + $0xf0] sm:$0xff] %vm615, %v2390
      %2423 = vst.msk [vmem:[%s614 + $0xf8] sm:$0xff] %vm615, %v2391
      %2424 = vst.msk [vmem:[%s614 + $0x108] sm:$0xff] %vm615, %v2392
      %2425 = vst.msk [vmem:[%s614 + $0x110] sm:$0xff] %vm615, %v2393
      %2426 = vst.msk [vmem:[%s614 + $0x120] sm:$0xff] %vm615, %v2394
      %2427 = vst.msk [vmem:[%s614 + $0x128] sm:$0xff] %vm615, %v2395
      %2428 = vst.msk [vmem:[%s614 + $0x138] sm:$0xff] %vm615, %v2396
      %2429 = vst.msk [vmem:[%s614 + $0x140] sm:$0xff] %vm615, %v2397
      %2430 = vst.msk [vmem:[%s614 + $0x150] sm:$0xff] %vm615, %v2398
      %2431 = vst.msk [vmem:[%s614 + $0x158] sm:$0xff] %vm615, %v2399
      %2432 = vst.msk [vmem:[%s614 + $0x168] sm:$0xff] %vm615, %v2400
      %2433 = vst.msk [vmem:[%s614 + $0x170] sm:$0xff] %vm615, %v2401
      %v2434 = vpack.c.bf16 %v2371, %v2370
      %v2435 = vpack.c.bf16 %v2373, %v2372
      %v2436 = vpack.c.bf16 %v2375, %v2374
      %v2437 = vpack.c.bf16 %v2377, %v2376
      %v2438 = vpack.c.bf16 %v2379, %v2378
      %v2439 = vpack.c.bf16 %v2381, %v2380
      %v2440 = vpack.c.bf16 %v2383, %v2382
      %v2441 = vpack.c.bf16 %v2385, %v2384
      %v2442 = vpack.c.bf16 %v2387, %v2386
      %v2443 = vpack.c.bf16 %v2389, %v2388
      %v2444 = vpack.c.bf16 %v2391, %v2390
      %v2445 = vpack.c.bf16 %v2393, %v2392
      %v2446 = vpack.c.bf16 %v2395, %v2394
      %v2447 = vpack.c.bf16 %v2397, %v2396
      %v2448 = vpack.c.bf16 %v2399, %v2398
      %v2449 = vpack.c.bf16 %v2401, %v2400
      %s2450 = scalar_lea.vmem %s3, 2
      %v2451 = vld [vmem:[%s2450] sm:$0x1]
      %v2453 = vsel %vm615, %v2434, 0
      %v2456 = vsel %vm615, %v2435, 0
      %v2459 = vsel %vm615, %v2436, 0
      %v2462 = vsel %vm615, %v2437, 0
      %v2465 = vsel %vm615, %v2438, 0
      %v2468 = vsel %vm615, %v2439, 0
      %v2471 = vsel %vm615, %v2440, 0
      %v2474 = vsel %vm615, %v2441, 0
      %v2477 = vsel %vm615, %v2442, 0
      %v2480 = vsel %vm615, %v2443, 0
      %v2483 = vsel %vm615, %v2444, 0
      %v2486 = vsel %vm615, %v2445, 0
      %v2489 = vsel %vm615, %v2446, 0
      %v2492 = vsel %vm615, %v2447, 0
      %v2495 = vsel %vm615, %v2448, 0
      %v2498 = vsel %vm615, %v2449, 0
      %v2501 = vsel %vm1469, %v2451, 0
      %2503 = vmatpush.bf16.msra.mxu0 0
      %2504 = vmatpush.bf16.msra.mxu0 0
      %2505 = vmatpush.bf16.msra.mxu0 0
      %2506 = vmatpush.bf16.msra.mxu0 0
      %2507 = vmatpush.bf16.msra.mxu0 0
      %2508 = vmatpush.bf16.msra.mxu0 0
      %2509 = vmatpush.bf16.msra.mxu0 0
      %2510 = vmatpush.bf16.msra.mxu0 %v2501
      %2511 = vmatmul.bf16.gmra.mxu0 %v2453
      %v2512 = vpop.f32.mrf.mxu0
      %v2513 = vadd.f32 0.0, %v2512
      %v2514 = vpop.f32.mrf.mxu0
      %v2515 = vadd.f32 0.0, %v2514
      %2516 = vmatmul.bf16.gmra.mxu0 %v2456
      %v2517 = vpop.f32.mrf.mxu0
      %v2518 = vadd.f32 0.0, %v2517
      %v2519 = vpop.f32.mrf.mxu0
      %v2520 = vadd.f32 0.0, %v2519
      %2521 = vmatmul.bf16.gmra.mxu0 %v2459
      %v2522 = vpop.f32.mrf.mxu0
      %v2523 = vadd.f32 0.0, %v2522
      %v2524 = vpop.f32.mrf.mxu0
      %v2525 = vadd.f32 0.0, %v2524
      %2526 = vmatmul.bf16.gmra.mxu0 %v2462
      %v2527 = vpop.f32.mrf.mxu0
      %v2528 = vadd.f32 0.0, %v2527
      %v2529 = vpop.f32.mrf.mxu0
      %v2530 = vadd.f32 0.0, %v2529
      %2531 = vmatmul.bf16.gmra.mxu0 %v2465
      %v2532 = vpop.f32.mrf.mxu0
      %v2533 = vadd.f32 0.0, %v2532
      %v2534 = vpop.f32.mrf.mxu0
      %v2535 = vadd.f32 0.0, %v2534
      %2536 = vmatmul.bf16.gmra.mxu0 %v2468
      %v2537 = vpop.f32.mrf.mxu0
      %v2538 = vadd.f32 0.0, %v2537
      %v2539 = vpop.f32.mrf.mxu0
      %v2540 = vadd.f32 0.0, %v2539
      %2541 = vmatmul.bf16.gmra.mxu0 %v2471
      %v2542 = vpop.f32.mrf.mxu0
      %v2543 = vadd.f32 0.0, %v2542
      %v2544 = vpop.f32.mrf.mxu0
      %v2545 = vadd.f32 0.0, %v2544
      %2546 = vmatmul.bf16.gmra.mxu0 %v2474
      %v2547 = vpop.f32.mrf.mxu0
      %v2548 = vadd.f32 0.0, %v2547
      %v2549 = vpop.f32.mrf.mxu0
      %v2550 = vadd.f32 0.0, %v2549
      %2551 = vmatmul.bf16.gmra.mxu0 %v2477
      %v2552 = vpop.f32.mrf.mxu0
      %v2553 = vadd.f32 0.0, %v2552
      %v2554 = vpop.f32.mrf.mxu0
      %v2555 = vadd.f32 0.0, %v2554
      %2556 = vmatmul.bf16.gmra.mxu0 %v2480
      %v2557 = vpop.f32.mrf.mxu0
      %v2558 = vadd.f32 0.0, %v2557
      %v2559 = vpop.f32.mrf.mxu0
      %v2560 = vadd.f32 0.0, %v2559
      %2561 = vmatmul.bf16.gmra.mxu0 %v2483
      %v2562 = vpop.f32.mrf.mxu0
      %v2563 = vadd.f32 0.0, %v2562
      %v2564 = vpop.f32.mrf.mxu0
      %v2565 = vadd.f32 0.0, %v2564
      %2566 = vmatmul.bf16.gmra.mxu0 %v2486
      %v2567 = vpop.f32.mrf.mxu0
      %v2568 = vadd.f32 0.0, %v2567
      %v2569 = vpop.f32.mrf.mxu0
      %v2570 = vadd.f32 0.0, %v2569
      %2571 = vmatmul.bf16.gmra.mxu0 %v2489
      %v2572 = vpop.f32.mrf.mxu0
      %v2573 = vadd.f32 0.0, %v2572
      %v2574 = vpop.f32.mrf.mxu0
      %v2575 = vadd.f32 0.0, %v2574
      %2576 = vmatmul.bf16.gmra.mxu0 %v2492
      %v2577 = vpop.f32.mrf.mxu0
      %v2578 = vadd.f32 0.0, %v2577
      %v2579 = vpop.f32.mrf.mxu0
      %v2580 = vadd.f32 0.0, %v2579
      %2581 = vmatmul.bf16.gmra.mxu0 %v2495
      %v2582 = vpop.f32.mrf.mxu0
      %v2583 = vadd.f32 0.0, %v2582
      %v2584 = vpop.f32.mrf.mxu0
      %v2585 = vadd.f32 0.0, %v2584
      %2586 = vmatmul.bf16.gmra.mxu0 %v2498
      %v2587 = vpop.f32.mrf.mxu0
      %v2588 = vadd.f32 0.0, %v2587
      %v2589 = vpop.f32.mrf.mxu0
      %v2590 = vadd.f32 0.0, %v2589
      %2591 = vdwg.mxu0
      %v2592 = vadd.f32 %v1623, %v2513
      %v2593 = vadd.f32 %v1625, %v2515
      %v2594 = vadd.f32 %v1628, %v2518
      %v2595 = vadd.f32 %v1630, %v2520
      %v2596 = vadd.f32 %v1633, %v2523
      %v2597 = vadd.f32 %v1635, %v2525
      %v2598 = vadd.f32 %v1638, %v2528
      %v2599 = vadd.f32 %v1640, %v2530
      %v2600 = vadd.f32 %v1643, %v2533
      %v2601 = vadd.f32 %v1645, %v2535
      %v2602 = vadd.f32 %v1648, %v2538
      %v2603 = vadd.f32 %v1650, %v2540
      %v2604 = vadd.f32 %v1653, %v2543
      %v2605 = vadd.f32 %v1655, %v2545
      %v2606 = vadd.f32 %v1658, %v2548
      %v2607 = vadd.f32 %v1660, %v2550
      %v2608 = vadd.f32 %v1663, %v2553
      %v2609 = vadd.f32 %v1665, %v2555
      %v2610 = vadd.f32 %v1668, %v2558
      %v2611 = vadd.f32 %v1670, %v2560
      %v2612 = vadd.f32 %v1673, %v2563
      %v2613 = vadd.f32 %v1675, %v2565
      %v2614 = vadd.f32 %v1678, %v2568
      %v2615 = vadd.f32 %v1680, %v2570
      %v2616 = vadd.f32 %v1683, %v2573
      %v2617 = vadd.f32 %v1685, %v2575
      %v2618 = vadd.f32 %v1688, %v2578
      %v2619 = vadd.f32 %v1690, %v2580
      %v2620 = vadd.f32 %v1693, %v2583
      %v2621 = vadd.f32 %v1695, %v2585
      %v2622 = vadd.f32 %v1698, %v2588
      %v2623 = vadd.f32 %v1700, %v2590
      %v2624 = vld [vmem:[#allocation2] sm:$0xff]
      %v2625 = vld [vmem:[#allocation2 + $0x8] sm:$0xff]
      %v2626 = vld [vmem:[#allocation2 + $0x10] sm:$0xff]
      %v2627 = vld [vmem:[#allocation2 + $0x18] sm:$0xff]
      %v2628 = vld [vmem:[#allocation2 + $0x20] sm:$0xff]
      %v2629 = vld [vmem:[#allocation2 + $0x28] sm:$0xff]
      %v2630 = vld [vmem:[#allocation2 + $0x30] sm:$0xff]
      %v2631 = vld [vmem:[#allocation2 + $0x38] sm:$0xff]
      %v2632 = vld [vmem:[#allocation2 + $0x40] sm:$0xff]
      %v2633 = vld [vmem:[#allocation2 + $0x48] sm:$0xff]
      %v2634 = vld [vmem:[#allocation2 + $0x50] sm:$0xff]
      %v2635 = vld [vmem:[#allocation2 + $0x58] sm:$0xff]
      %v2636 = vld [vmem:[#allocation2 + $0x60] sm:$0xff]
      %v2637 = vld [vmem:[#allocation2 + $0x68] sm:$0xff]
      %v2638 = vld [vmem:[#allocation2 + $0x70] sm:$0xff]
      %v2639 = vld [vmem:[#allocation2 + $0x78] sm:$0xff]
      %v2640 = vld [vmem:[#allocation2 + $0x80] sm:$0xff]
      %v2641 = vld [vmem:[#allocation2 + $0x88] sm:$0xff]
      %v2642 = vld [vmem:[#allocation2 + $0x90] sm:$0xff]
      %v2643 = vld [vmem:[#allocation2 + $0x98] sm:$0xff]
      %v2644 = vld [vmem:[#allocation2 + $0xa0] sm:$0xff]
      %v2645 = vld [vmem:[#allocation2 + $0xa8] sm:$0xff]
      %v2646 = vld [vmem:[#allocation2 + $0xb0] sm:$0xff]
      %v2647 = vld [vmem:[#allocation2 + $0xb8] sm:$0xff]
      %v2648 = vld [vmem:[#allocation2 + $0xc0] sm:$0xff]
      %v2649 = vld [vmem:[#allocation2 + $0xc8] sm:$0xff]
      %v2650 = vld [vmem:[#allocation2 + $0xd0] sm:$0xff]
      %v2651 = vld [vmem:[#allocation2 + $0xd8] sm:$0xff]
      %v2652 = vld [vmem:[#allocation2 + $0xe0] sm:$0xff]
      %v2653 = vld [vmem:[#allocation2 + $0xe8] sm:$0xff]
      %v2654 = vld [vmem:[#allocation2 + $0xf0] sm:$0xff]
      %v2655 = vld [vmem:[#allocation2 + $0xf8] sm:$0xff]
      %v2656 = vld [vmem:[#allocation2 + $0x100] sm:$0xff]
      %v2657 = vld [vmem:[#allocation2 + $0x108] sm:$0xff]
      %v2658 = vld [vmem:[#allocation2 + $0x110] sm:$0xff]
      %v2659 = vld [vmem:[#allocation2 + $0x118] sm:$0xff]
      %v2660 = vld [vmem:[#allocation2 + $0x120] sm:$0xff]
      %v2661 = vld [vmem:[#allocation2 + $0x128] sm:$0xff]
      %v2662 = vld [vmem:[#allocation2 + $0x130] sm:$0xff]
      %v2663 = vld [vmem:[#allocation2 + $0x138] sm:$0xff]
      %v2664 = vld [vmem:[#allocation2 + $0x140] sm:$0xff]
      %v2665 = vld [vmem:[#allocation2 + $0x148] sm:$0xff]
      %v2666 = vld [vmem:[#allocation2 + $0x150] sm:$0xff]
      %v2667 = vld [vmem:[#allocation2 + $0x158] sm:$0xff]
      %v2668 = vld [vmem:[#allocation2 + $0x160] sm:$0xff]
      %v2669 = vld [vmem:[#allocation2 + $0x168] sm:$0xff]
      %v2670 = vld [vmem:[#allocation2 + $0x170] sm:$0xff]
      %v2671 = vld [vmem:[#allocation2 + $0x178] sm:$0xff]
      %v2672 = vld [vmem:[#allocation2 + $0x180] sm:$0xff]
      %v2673 = vld [vmem:[#allocation2 + $0x188] sm:$0xff]
      %v2674 = vld [vmem:[#allocation2 + $0x190] sm:$0xff]
      %v2675 = vld [vmem:[#allocation2 + $0x198] sm:$0xff]
      %v2676 = vld [vmem:[#allocation2 + $0x1a0] sm:$0xff]
      %v2677 = vld [vmem:[#allocation2 + $0x1a8] sm:$0xff]
      %v2678 = vld [vmem:[#allocation2 + $0x1b0] sm:$0xff]
      %v2679 = vld [vmem:[#allocation2 + $0x1b8] sm:$0xff]
      %v2680 = vld [vmem:[#allocation2 + $0x1c0] sm:$0xff]
      %v2681 = vld [vmem:[#allocation2 + $0x1c8] sm:$0xff]
      %v2682 = vld [vmem:[#allocation2 + $0x1d0] sm:$0xff]
      %v2683 = vld [vmem:[#allocation2 + $0x1d8] sm:$0xff]
      %v2684 = vmax.f32 %v2624, %v2627
      %v2685 = vmax.f32 %v2625, %v2628
      %v2686 = vmax.f32 %v2626, %v2629
      %v2687 = vmax.f32 %v2627, %v2630
      %v2688 = vmax.f32 %v2628, %v2631
      %v2689 = vmax.f32 %v2629, %v2632
      %v2690 = vmax.f32 %v2630, %v2633
      %v2691 = vmax.f32 %v2631, %v2634
      %v2692 = vmax.f32 %v2632, %v2635
      %v2693 = vmax.f32 %v2633, %v2636
      %v2694 = vmax.f32 %v2634, %v2637
      %v2695 = vmax.f32 %v2635, %v2638
      %v2696 = vmax.f32 %v2636, %v2639
      %v2697 = vmax.f32 %v2637, %v2640
      %v2698 = vmax.f32 %v2638, %v2641
      %v2699 = vmax.f32 %v2639, %v2642
      %v2700 = vmax.f32 %v2640, %v2643
      %v2701 = vmax.f32 %v2641, %v2644
      %v2702 = vmax.f32 %v2642, %v2645
      %v2703 = vmax.f32 %v2643, %v2646
      %v2704 = vmax.f32 %v2644, %v2647
      %v2705 = vmax.f32 %v2645, %v2648
      %v2706 = vmax.f32 %v2646, %v2649
      %v2707 = vmax.f32 %v2647, %v2650
      %v2708 = vmax.f32 %v2648, %v2651
      %v2709 = vmax.f32 %v2649, %v2652
      %v2710 = vmax.f32 %v2650, %v2653
      %v2711 = vmax.f32 %v2651, %v2654
      %v2712 = vmax.f32 %v2652, %v2655
      %v2713 = vmax.f32 %v2653, %v2656
      %v2714 = vmax.f32 %v2654, %v2657
      %v2715 = vmax.f32 %v2655, %v2658
      %v2716 = vmax.f32 %v2656, %v2659
      %v2717 = vmax.f32 %v2657, %v2660
      %v2718 = vmax.f32 %v2658, %v2661
      %v2719 = vmax.f32 %v2659, %v2662
      %v2720 = vmax.f32 %v2660, %v2663
      %v2721 = vmax.f32 %v2661, %v2664
      %v2722 = vmax.f32 %v2662, %v2665
      %v2723 = vmax.f32 %v2663, %v2666
      %v2724 = vmax.f32 %v2664, %v2667
      %v2725 = vmax.f32 %v2665, %v2668
      %v2726 = vmax.f32 %v2666, %v2669
      %v2727 = vmax.f32 %v2667, %v2670
      %v2728 = vmax.f32 %v2668, %v2671
      %v2729 = vmax.f32 %v2669, %v2672
      %v2730 = vmax.f32 %v2670, %v2673
      %v2731 = vmax.f32 %v2671, %v2674
      %v2732 = vmax.f32 %v2684, %v2630
      %v2733 = vmax.f32 %v2685, %v2631
      %v2734 = vmax.f32 %v2686, %v2632
      %v2735 = vmax.f32 %v2687, %v2633
      %v2736 = vmax.f32 %v2688, %v2634
      %v2737 = vmax.f32 %v2689, %v2635
      %v2738 = vmax.f32 %v2690, %v2636
      %v2739 = vmax.f32 %v2691, %v2637
      %v2740 = vmax.f32 %v2692, %v2638
      %v2741 = vmax.f32 %v2693, %v2639
      %v2742 = vmax.f32 %v2694, %v2640
      %v2743 = vmax.f32 %v2695, %v2641
      %v2744 = vmax.f32 %v2696, %v2642
      %v2745 = vmax.f32 %v2697, %v2643
      %v2746 = vmax.f32 %v2698, %v2644
      %v2747 = vmax.f32 %v2699, %v2645
      %v2748 = vmax.f32 %v2700, %v2646
      %v2749 = vmax.f32 %v2701, %v2647
      %v2750 = vmax.f32 %v2702, %v2648
      %v2751 = vmax.f32 %v2703, %v2649
      %v2752 = vmax.f32 %v2704, %v2650
      %v2753 = vmax.f32 %v2705, %v2651
      %v2754 = vmax.f32 %v2706, %v2652
      %v2755 = vmax.f32 %v2707, %v2653
      %v2756 = vmax.f32 %v2708, %v2654
      %v2757 = vmax.f32 %v2709, %v2655
      %v2758 = vmax.f32 %v2710, %v2656
      %v2759 = vmax.f32 %v2711, %v2657
      %v2760 = vmax.f32 %v2712, %v2658
      %v2761 = vmax.f32 %v2713, %v2659
      %v2762 = vmax.f32 %v2714, %v2660
      %v2763 = vmax.f32 %v2715, %v2661
      %v2764 = vmax.f32 %v2716, %v2662
      %v2765 = vmax.f32 %v2717, %v2663
      %v2766 = vmax.f32 %v2718, %v2664
      %v2767 = vmax.f32 %v2719, %v2665
      %v2768 = vmax.f32 %v2720, %v2666
      %v2769 = vmax.f32 %v2721, %v2667
      %v2770 = vmax.f32 %v2722, %v2668
      %v2771 = vmax.f32 %v2723, %v2669
      %v2772 = vmax.f32 %v2724, %v2670
      %v2773 = vmax.f32 %v2725, %v2671
      %v2774 = vmax.f32 %v2726, %v2672
      %v2775 = vmax.f32 %v2727, %v2673
      %v2776 = vmax.f32 %v2728, %v2674
      %v2777 = vmax.f32 %v2729, %v2675
      %v2778 = vmax.f32 %v2730, %v2676
      %v2779 = vmax.f32 %v2731, %v2677
      %v2780 = vmax.f32 %v2732, %v2633
      %v2781 = vmax.f32 %v2733, %v2634
      %v2782 = vmax.f32 %v2734, %v2635
      %v2783 = vmax.f32 %v2735, %v2636
      %v2784 = vmax.f32 %v2736, %v2637
      %v2785 = vmax.f32 %v2737, %v2638
      %v2786 = vmax.f32 %v2738, %v2639
      %v2787 = vmax.f32 %v2739, %v2640
      %v2788 = vmax.f32 %v2740, %v2641
      %v2789 = vmax.f32 %v2741, %v2642
      %v2790 = vmax.f32 %v2742, %v2643
      %v2791 = vmax.f32 %v2743, %v2644
      %v2792 = vmax.f32 %v2744, %v2645
      %v2793 = vmax.f32 %v2745, %v2646
      %v2794 = vmax.f32 %v2746, %v2647
      %v2795 = vmax.f32 %v2747, %v2648
      %v2796 = vmax.f32 %v2748, %v2649
      %v2797 = vmax.f32 %v2749, %v2650
      %v2798 = vmax.f32 %v2750, %v2651
      %v2799 = vmax.f32 %v2751, %v2652
      %v2800 = vmax.f32 %v2752, %v2653
      %v2801 = vmax.f32 %v2753, %v2654
      %v2802 = vmax.f32 %v2754, %v2655
      %v2803 = vmax.f32 %v2755, %v2656
      %v2804 = vmax.f32 %v2756, %v2657
      %v2805 = vmax.f32 %v2757, %v2658
      %v2806 = vmax.f32 %v2758, %v2659
      %v2807 = vmax.f32 %v2759, %v2660
      %v2808 = vmax.f32 %v2760, %v2661
      %v2809 = vmax.f32 %v2761, %v2662
      %v2810 = vmax.f32 %v2762, %v2663
      %v2811 = vmax.f32 %v2763, %v2664
      %v2812 = vmax.f32 %v2764, %v2665
      %v2813 = vmax.f32 %v2765, %v2666
      %v2814 = vmax.f32 %v2766, %v2667
      %v2815 = vmax.f32 %v2767, %v2668
      %v2816 = vmax.f32 %v2768, %v2669
      %v2817 = vmax.f32 %v2769, %v2670
      %v2818 = vmax.f32 %v2770, %v2671
      %v2819 = vmax.f32 %v2771, %v2672
      %v2820 = vmax.f32 %v2772, %v2673
      %v2821 = vmax.f32 %v2773, %v2674
      %v2822 = vmax.f32 %v2774, %v2675
      %v2823 = vmax.f32 %v2775, %v2676
      %v2824 = vmax.f32 %v2776, %v2677
      %v2825 = vmax.f32 %v2777, %v2678
      %v2826 = vmax.f32 %v2778, %v2679
      %v2827 = vmax.f32 %v2779, %v2680
      %v2828 = vmax.f32 %v2780, %v2636
      %v2829 = vmax.f32 %v2781, %v2637
      %v2830 = vmax.f32 %v2782, %v2638
      %v2831 = vmax.f32 %v2783, %v2639
      %v2832 = vmax.f32 %v2784, %v2640
      %v2833 = vmax.f32 %v2785, %v2641
      %v2834 = vmax.f32 %v2786, %v2642
      %v2835 = vmax.f32 %v2787, %v2643
      %v2836 = vmax.f32 %v2788, %v2644
      %v2837 = vmax.f32 %v2789, %v2645
      %v2838 = vmax.f32 %v2790, %v2646
      %v2839 = vmax.f32 %v2791, %v2647
      %v2840 = vmax.f32 %v2792, %v2648
      %v2841 = vmax.f32 %v2793, %v2649
      %v2842 = vmax.f32 %v2794, %v2650
      %v2843 = vmax.f32 %v2795, %v2651
      %v2844 = vmax.f32 %v2796, %v2652
      %v2845 = vmax.f32 %v2797, %v2653
      %v2846 = vmax.f32 %v2798, %v2654
      %v2847 = vmax.f32 %v2799, %v2655
      %v2848 = vmax.f32 %v2800, %v2656
      %v2849 = vmax.f32 %v2801, %v2657
      %v2850 = vmax.f32 %v2802, %v2658
      %v2851 = vmax.f32 %v2803, %v2659
      %v2852 = vmax.f32 %v2804, %v2660
      %v2853 = vmax.f32 %v2805, %v2661
      %v2854 = vmax.f32 %v2806, %v2662
      %v2855 = vmax.f32 %v2807, %v2663
      %v2856 = vmax.f32 %v2808, %v2664
      %v2857 = vmax.f32 %v2809, %v2665
      %v2858 = vmax.f32 %v2810, %v2666
      %v2859 = vmax.f32 %v2811, %v2667
      %v2860 = vmax.f32 %v2812, %v2668
      %v2861 = vmax.f32 %v2813, %v2669
      %v2862 = vmax.f32 %v2814, %v2670
      %v2863 = vmax.f32 %v2815, %v2671
      %v2864 = vmax.f32 %v2816, %v2672
      %v2865 = vmax.f32 %v2817, %v2673
      %v2866 = vmax.f32 %v2818, %v2674
      %v2867 = vmax.f32 %v2819, %v2675
      %v2868 = vmax.f32 %v2820, %v2676
      %v2869 = vmax.f32 %v2821, %v2677
      %v2870 = vmax.f32 %v2822, %v2678
      %v2871 = vmax.f32 %v2823, %v2679
      %v2872 = vmax.f32 %v2824, %v2680
      %v2873 = vmax.f32 %v2825, %v2681
      %v2874 = vmax.f32 %v2826, %v2682
      %v2875 = vmax.f32 %v2827, %v2683
      %v2876 = vrot.slane %v2828, 7
      %v2877 = vrot.slane %v2829, 7
      %v2878 = vrot.slane %v2830, 7
      %v2879 = vrot.slane %v2831, 7
      %v2880 = vrot.slane %v2832, 7
      %v2881 = vrot.slane %v2833, 7
      %v2882 = vrot.slane %v2834, 7
      %v2883 = vrot.slane %v2835, 7
      %v2884 = vrot.slane %v2836, 7
      %v2885 = vrot.slane %v2837, 7
      %v2886 = vrot.slane %v2838, 7
      %v2887 = vrot.slane %v2839, 7
      %v2888 = vrot.slane %v2840, 7
      %v2889 = vrot.slane %v2841, 7
      %v2890 = vrot.slane %v2842, 7
      %v2891 = vrot.slane %v2843, 7
      %v2892 = vrot.slane %v2844, 7
      %v2893 = vrot.slane %v2845, 7
      %v2894 = vrot.slane %v2846, 7
      %v2895 = vrot.slane %v2847, 7
      %v2896 = vrot.slane %v2848, 7
      %v2897 = vrot.slane %v2849, 7
      %v2898 = vrot.slane %v2850, 7
      %v2899 = vrot.slane %v2851, 7
      %v2900 = vrot.slane %v2852, 7
      %v2901 = vrot.slane %v2853, 7
      %v2902 = vrot.slane %v2854, 7
      %v2903 = vrot.slane %v2855, 7
      %v2904 = vrot.slane %v2856, 7
      %v2905 = vrot.slane %v2857, 7
      %v2906 = vrot.slane %v2858, 7
      %v2907 = vrot.slane %v2859, 7
      %v2908 = vrot.slane %v2860, 7
      %v2909 = vrot.slane %v2861, 7
      %v2910 = vrot.slane %v2862, 7
      %v2911 = vrot.slane %v2863, 7
      %v2912 = vrot.slane %v2864, 7
      %v2913 = vrot.slane %v2865, 7
      %v2914 = vrot.slane %v2866, 7
      %v2915 = vrot.slane %v2867, 7
      %v2916 = vrot.slane %v2868, 7
      %v2917 = vrot.slane %v2869, 7
      %v2918 = vrot.slane %v2870, 7
      %v2919 = vrot.slane %v2871, 7
      %v2920 = vrot.slane %v2872, 7
      %v2921 = vrot.slane %v2873, 7
      %v2922 = vrot.slane %v2874, 7
      %v2923 = vrot.slane %v2875, 7
      %v2924 = vsel %vm967, %v2921, %v2922
      %v2925 = vsel %vm967, %v2920, %v2921
      %v2926 = vsel %vm967, %v2918, %v2919
      %v2927 = vsel %vm967, %v2917, %v2918
      %v2928 = vsel %vm967, %v2915, %v2916
      %v2929 = vsel %vm967, %v2914, %v2915
      %v2930 = vsel %vm967, %v2912, %v2913
      %v2931 = vsel %vm967, %v2911, %v2912
      %v2932 = vsel %vm967, %v2909, %v2910
      %v2933 = vsel %vm967, %v2908, %v2909
      %v2934 = vsel %vm967, %v2906, %v2907
      %v2935 = vsel %vm967, %v2905, %v2906
      %v2936 = vsel %vm967, %v2903, %v2904
      %v2937 = vsel %vm967, %v2902, %v2903
      %v2938 = vsel %vm967, %v2900, %v2901
      %v2939 = vsel %vm967, %v2899, %v2900
      %v2940 = vsel %vm967, %v2897, %v2898
      %v2941 = vsel %vm967, %v2896, %v2897
      %v2942 = vsel %vm967, %v2894, %v2895
      %v2943 = vsel %vm967, %v2893, %v2894
      %v2944 = vsel %vm967, %v2891, %v2892
      %v2945 = vsel %vm967, %v2890, %v2891
      %v2946 = vsel %vm967, %v2888, %v2889
      %v2947 = vsel %vm967, %v2887, %v2888
      %v2948 = vsel %vm967, %v2885, %v2886
      %v2949 = vsel %vm967, %v2884, %v2885
      %v2950 = vsel %vm967, %v2882, %v2883
      %v2951 = vsel %vm967, %v2881, %v2882
      %v2952 = vsel %vm967, %v2879, %v2880
      %v2953 = vsel %vm967, %v2878, %v2879
      %v2954 = vsel %vm967, %v2876, %v2877
      %v2955 = vsel %vm967, %v2923, %v2876
      %v2956 = vmax.f32 %v2828, %v2955
      %v2957 = vmax.f32 %v2829, %v2954
      %v2958 = vmax.f32 %v2831, %v2953
      %v2959 = vmax.f32 %v2832, %v2952
      %v2960 = vmax.f32 %v2834, %v2951
      %v2961 = vmax.f32 %v2835, %v2950
      %v2962 = vmax.f32 %v2837, %v2949
      %v2963 = vmax.f32 %v2838, %v2948
      %v2964 = vmax.f32 %v2840, %v2947
      %v2965 = vmax.f32 %v2841, %v2946
      %v2966 = vmax.f32 %v2843, %v2945
      %v2967 = vmax.f32 %v2844, %v2944
      %v2968 = vmax.f32 %v2846, %v2943
      %v2969 = vmax.f32 %v2847, %v2942
      %v2970 = vmax.f32 %v2849, %v2941
      %v2971 = vmax.f32 %v2850, %v2940
      %v2972 = vmax.f32 %v2852, %v2939
      %v2973 = vmax.f32 %v2853, %v2938
      %v2974 = vmax.f32 %v2855, %v2937
      %v2975 = vmax.f32 %v2856, %v2936
      %v2976 = vmax.f32 %v2858, %v2935
      %v2977 = vmax.f32 %v2859, %v2934
      %v2978 = vmax.f32 %v2861, %v2933
      %v2979 = vmax.f32 %v2862, %v2932
      %v2980 = vmax.f32 %v2864, %v2931
      %v2981 = vmax.f32 %v2865, %v2930
      %v2982 = vmax.f32 %v2867, %v2929
      %v2983 = vmax.f32 %v2868, %v2928
      %v2984 = vmax.f32 %v2870, %v2927
      %v2985 = vmax.f32 %v2871, %v2926
      %v2986 = vmax.f32 %v2873, %v2925
      %v2987 = vmax.f32 %v2874, %v2924
      %v2988 = vrot.slane %v2828, 1
      %v2989 = vrot.slane %v2829, 1
      %v2990 = vrot.slane %v2830, 1
      %v2991 = vrot.slane %v2831, 1
      %v2992 = vrot.slane %v2832, 1
      %v2993 = vrot.slane %v2833, 1
      %v2994 = vrot.slane %v2834, 1
      %v2995 = vrot.slane %v2835, 1
      %v2996 = vrot.slane %v2836, 1
      %v2997 = vrot.slane %v2837, 1
      %v2998 = vrot.slane %v2838, 1
      %v2999 = vrot.slane %v2839, 1
      %v3000 = vrot.slane %v2840, 1
      %v3001 = vrot.slane %v2841, 1
      %v3002 = vrot.slane %v2842, 1
      %v3003 = vrot.slane %v2843, 1
      %v3004 = vrot.slane %v2844, 1
      %v3005 = vrot.slane %v2845, 1
      %v3006 = vrot.slane %v2846, 1
      %v3007 = vrot.slane %v2847, 1
      %v3008 = vrot.slane %v2848, 1
      %v3009 = vrot.slane %v2849, 1
      %v3010 = vrot.slane %v2850, 1
      %v3011 = vrot.slane %v2851, 1
      %v3012 = vrot.slane %v2852, 1
      %v3013 = vrot.slane %v2853, 1
      %v3014 = vrot.slane %v2854, 1
      %v3015 = vrot.slane %v2855, 1
      %v3016 = vrot.slane %v2856, 1
      %v3017 = vrot.slane %v2857, 1
      %v3018 = vrot.slane %v2858, 1
      %v3019 = vrot.slane %v2859, 1
      %v3020 = vrot.slane %v2860, 1
      %v3021 = vrot.slane %v2861, 1
      %v3022 = vrot.slane %v2862, 1
      %v3023 = vrot.slane %v2863, 1
      %v3024 = vrot.slane %v2864, 1
      %v3025 = vrot.slane %v2865, 1
      %v3026 = vrot.slane %v2866, 1
      %v3027 = vrot.slane %v2867, 1
      %v3028 = vrot.slane %v2868, 1
      %v3029 = vrot.slane %v2869, 1
      %v3030 = vrot.slane %v2870, 1
      %v3031 = vrot.slane %v2871, 1
      %v3032 = vrot.slane %v2872, 1
      %v3033 = vrot.slane %v2873, 1
      %v3034 = vrot.slane %v2874, 1
      %v3035 = vrot.slane %v2875, 1
      %v3036 = vsel %vm1080, %v3034, %v3035
      %v3037 = vsel %vm1080, %v3033, %v3034
      %v3038 = vsel %vm1080, %v3031, %v3032
      %v3039 = vsel %vm1080, %v3030, %v3031
      %v3040 = vsel %vm1080, %v3028, %v3029
      %v3041 = vsel %vm1080, %v3027, %v3028
      %v3042 = vsel %vm1080, %v3025, %v3026
      %v3043 = vsel %vm1080, %v3024, %v3025
      %v3044 = vsel %vm1080, %v3022, %v3023
      %v3045 = vsel %vm1080, %v3021, %v3022
      %v3046 = vsel %vm1080, %v3019, %v3020
      %v3047 = vsel %vm1080, %v3018, %v3019
      %v3048 = vsel %vm1080, %v3016, %v3017
      %v3049 = vsel %vm1080, %v3015, %v3016
      %v3050 = vsel %vm1080, %v3013, %v3014
      %v3051 = vsel %vm1080, %v3012, %v3013
      %v3052 = vsel %vm1080, %v3010, %v3011
      %v3053 = vsel %vm1080, %v3009, %v3010
      %v3054 = vsel %vm1080, %v3007, %v3008
      %v3055 = vsel %vm1080, %v3006, %v3007
      %v3056 = vsel %vm1080, %v3004, %v3005
      %v3057 = vsel %vm1080, %v3003, %v3004
      %v3058 = vsel %vm1080, %v3001, %v3002
      %v3059 = vsel %vm1080, %v3000, %v3001
      %v3060 = vsel %vm1080, %v2998, %v2999
      %v3061 = vsel %vm1080, %v2997, %v2998
      %v3062 = vsel %vm1080, %v2995, %v2996
      %v3063 = vsel %vm1080, %v2994, %v2995
      %v3064 = vsel %vm1080, %v2992, %v2993
      %v3065 = vsel %vm1080, %v2991, %v2992
      %v3066 = vsel %vm1080, %v2989, %v2990
      %v3067 = vsel %vm1080, %v2988, %v2989
      %v3068 = vmax.f32 %v2956, %v3067
      %v3069 = vmax.f32 %v2957, %v3066
      %v3070 = vmax.f32 %v2958, %v3065
      %v3071 = vmax.f32 %v2959, %v3064
      %v3072 = vmax.f32 %v2960, %v3063
      %v3073 = vmax.f32 %v2961, %v3062
      %v3074 = vmax.f32 %v2962, %v3061
      %v3075 = vmax.f32 %v2963, %v3060
      %v3076 = vmax.f32 %v2964, %v3059
      %v3077 = vmax.f32 %v2965, %v3058
      %v3078 = vmax.f32 %v2966, %v3057
      %v3079 = vmax.f32 %v2967, %v3056
      %v3080 = vmax.f32 %v2968, %v3055
      %v3081 = vmax.f32 %v2969, %v3054
      %v3082 = vmax.f32 %v2970, %v3053
      %v3083 = vmax.f32 %v2971, %v3052
      %v3084 = vmax.f32 %v2972, %v3051
      %v3085 = vmax.f32 %v2973, %v3050
      %v3086 = vmax.f32 %v2974, %v3049
      %v3087 = vmax.f32 %v2975, %v3048
      %v3088 = vmax.f32 %v2976, %v3047
      %v3089 = vmax.f32 %v2977, %v3046
      %v3090 = vmax.f32 %v2978, %v3045
      %v3091 = vmax.f32 %v2979, %v3044
      %v3092 = vmax.f32 %v2980, %v3043
      %v3093 = vmax.f32 %v2981, %v3042
      %v3094 = vmax.f32 %v2982, %v3041
      %v3095 = vmax.f32 %v2983, %v3040
      %v3096 = vmax.f32 %v2984, %v3039
      %v3097 = vmax.f32 %v2985, %v3038
      %v3098 = vmax.f32 %v2986, %v3037
      %v3099 = vmax.f32 %v2987, %v3036
      %v3100 = vrot.slane %v2828, 6
      %v3101 = vrot.slane %v2829, 6
      %v3102 = vrot.slane %v2830, 6
      %v3103 = vrot.slane %v2831, 6
      %v3104 = vrot.slane %v2832, 6
      %v3105 = vrot.slane %v2833, 6
      %v3106 = vrot.slane %v2834, 6
      %v3107 = vrot.slane %v2835, 6
      %v3108 = vrot.slane %v2836, 6
      %v3109 = vrot.slane %v2837, 6
      %v3110 = vrot.slane %v2838, 6
      %v3111 = vrot.slane %v2839, 6
      %v3112 = vrot.slane %v2840, 6
      %v3113 = vrot.slane %v2841, 6
      %v3114 = vrot.slane %v2842, 6
      %v3115 = vrot.slane %v2843, 6
      %v3116 = vrot.slane %v2844, 6
      %v3117 = vrot.slane %v2845, 6
      %v3118 = vrot.slane %v2846, 6
      %v3119 = vrot.slane %v2847, 6
      %v3120 = vrot.slane %v2848, 6
      %v3121 = vrot.slane %v2849, 6
      %v3122 = vrot.slane %v2850, 6
      %v3123 = vrot.slane %v2851, 6
      %v3124 = vrot.slane %v2852, 6
      %v3125 = vrot.slane %v2853, 6
      %v3126 = vrot.slane %v2854, 6
      %v3127 = vrot.slane %v2855, 6
      %v3128 = vrot.slane %v2856, 6
      %v3129 = vrot.slane %v2857, 6
      %v3130 = vrot.slane %v2858, 6
      %v3131 = vrot.slane %v2859, 6
      %v3132 = vrot.slane %v2860, 6
      %v3133 = vrot.slane %v2861, 6
      %v3134 = vrot.slane %v2862, 6
      %v3135 = vrot.slane %v2863, 6
      %v3136 = vrot.slane %v2864, 6
      %v3137 = vrot.slane %v2865, 6
      %v3138 = vrot.slane %v2866, 6
      %v3139 = vrot.slane %v2867, 6
      %v3140 = vrot.slane %v2868, 6
      %v3141 = vrot.slane %v2869, 6
      %v3142 = vrot.slane %v2870, 6
      %v3143 = vrot.slane %v2871, 6
      %v3144 = vrot.slane %v2872, 6
      %v3145 = vrot.slane %v2873, 6
      %v3146 = vrot.slane %v2874, 6
      %v3147 = vrot.slane %v2875, 6
      %v3148 = vsel %vm1193, %v3145, %v3146
      %v3149 = vsel %vm1193, %v3144, %v3145
      %v3150 = vsel %vm1193, %v3142, %v3143
      %v3151 = vsel %vm1193, %v3141, %v3142
      %v3152 = vsel %vm1193, %v3139, %v3140
      %v3153 = vsel %vm1193, %v3138, %v3139
      %v3154 = vsel %vm1193, %v3136, %v3137
      %v3155 = vsel %vm1193, %v3135, %v3136
      %v3156 = vsel %vm1193, %v3133, %v3134
      %v3157 = vsel %vm1193, %v3132, %v3133
      %v3158 = vsel %vm1193, %v3130, %v3131
      %v3159 = vsel %vm1193, %v3129, %v3130
      %v3160 = vsel %vm1193, %v3127, %v3128
      %v3161 = vsel %vm1193, %v3126, %v3127
      %v3162 = vsel %vm1193, %v3124, %v3125
      %v3163 = vsel %vm1193, %v3123, %v3124
      %v3164 = vsel %vm1193, %v3121, %v3122
      %v3165 = vsel %vm1193, %v3120, %v3121
      %v3166 = vsel %vm1193, %v3118, %v3119
      %v3167 = vsel %vm1193, %v3117, %v3118
      %v3168 = vsel %vm1193, %v3115, %v3116
      %v3169 = vsel %vm1193, %v3114, %v3115
      %v3170 = vsel %vm1193, %v3112, %v3113
      %v3171 = vsel %vm1193, %v3111, %v3112
      %v3172 = vsel %vm1193, %v3109, %v3110
      %v3173 = vsel %vm1193, %v3108, %v3109
      %v3174 = vsel %vm1193, %v3106, %v3107
      %v3175 = vsel %vm1193, %v3105, %v3106
      %v3176 = vsel %vm1193, %v3103, %v3104
      %v3177 = vsel %vm1193, %v3102, %v3103
      %v3178 = vsel %vm1193, %v3100, %v3101
      %v3179 = vsel %vm1193, %v3147, %v3100
      %v3180 = vmax.f32 %v3068, %v3179
      %v3181 = vmax.f32 %v3069, %v3178
      %v3182 = vmax.f32 %v3070, %v3177
      %v3183 = vmax.f32 %v3071, %v3176
      %v3184 = vmax.f32 %v3072, %v3175
      %v3185 = vmax.f32 %v3073, %v3174
      %v3186 = vmax.f32 %v3074, %v3173
      %v3187 = vmax.f32 %v3075, %v3172
      %v3188 = vmax.f32 %v3076, %v3171
      %v3189 = vmax.f32 %v3077, %v3170
      %v3190 = vmax.f32 %v3078, %v3169
      %v3191 = vmax.f32 %v3079, %v3168
      %v3192 = vmax.f32 %v3080, %v3167
      %v3193 = vmax.f32 %v3081, %v3166
      %v3194 = vmax.f32 %v3082, %v3165
      %v3195 = vmax.f32 %v3083, %v3164
      %v3196 = vmax.f32 %v3084, %v3163
      %v3197 = vmax.f32 %v3085, %v3162
      %v3198 = vmax.f32 %v3086, %v3161
      %v3199 = vmax.f32 %v3087, %v3160
      %v3200 = vmax.f32 %v3088, %v3159
      %v3201 = vmax.f32 %v3089, %v3158
      %v3202 = vmax.f32 %v3090, %v3157
      %v3203 = vmax.f32 %v3091, %v3156
      %v3204 = vmax.f32 %v3092, %v3155
      %v3205 = vmax.f32 %v3093, %v3154
      %v3206 = vmax.f32 %v3094, %v3153
      %v3207 = vmax.f32 %v3095, %v3152
      %v3208 = vmax.f32 %v3096, %v3151
      %v3209 = vmax.f32 %v3097, %v3150
      %v3210 = vmax.f32 %v3098, %v3149
      %v3211 = vmax.f32 %v3099, %v3148
      %v3212 = vrot.slane %v2828, 2
      %v3213 = vrot.slane %v2829, 2
      %v3214 = vrot.slane %v2830, 2
      %v3215 = vrot.slane %v2831, 2
      %v3216 = vrot.slane %v2832, 2
      %v3217 = vrot.slane %v2833, 2
      %v3218 = vrot.slane %v2834, 2
      %v3219 = vrot.slane %v2835, 2
      %v3220 = vrot.slane %v2836, 2
      %v3221 = vrot.slane %v2837, 2
      %v3222 = vrot.slane %v2838, 2
      %v3223 = vrot.slane %v2839, 2
      %v3224 = vrot.slane %v2840, 2
      %v3225 = vrot.slane %v2841, 2
      %v3226 = vrot.slane %v2842, 2
      %v3227 = vrot.slane %v2843, 2
      %v3228 = vrot.slane %v2844, 2
      %v3229 = vrot.slane %v2845, 2
      %v3230 = vrot.slane %v2846, 2
      %v3231 = vrot.slane %v2847, 2
      %v3232 = vrot.slane %v2848, 2
      %v3233 = vrot.slane %v2849, 2
      %v3234 = vrot.slane %v2850, 2
      %v3235 = vrot.slane %v2851, 2
      %v3236 = vrot.slane %v2852, 2
      %v3237 = vrot.slane %v2853, 2
      %v3238 = vrot.slane %v2854, 2
      %v3239 = vrot.slane %v2855, 2
      %v3240 = vrot.slane %v2856, 2
      %v3241 = vrot.slane %v2857, 2
      %v3242 = vrot.slane %v2858, 2
      %v3243 = vrot.slane %v2859, 2
      %v3244 = vrot.slane %v2860, 2
      %v3245 = vrot.slane %v2861, 2
      %v3246 = vrot.slane %v2862, 2
      %v3247 = vrot.slane %v2863, 2
      %v3248 = vrot.slane %v2864, 2
      %v3249 = vrot.slane %v2865, 2
      %v3250 = vrot.slane %v2866, 2
      %v3251 = vrot.slane %v2867, 2
      %v3252 = vrot.slane %v2868, 2
      %v3253 = vrot.slane %v2869, 2
      %v3254 = vrot.slane %v2870, 2
      %v3255 = vrot.slane %v2871, 2
      %v3256 = vrot.slane %v2872, 2
      %v3257 = vrot.slane %v2873, 2
      %v3258 = vrot.slane %v2874, 2
      %v3259 = vrot.slane %v2875, 2
      %v3260 = vsel %vm1306, %v3258, %v3259
      %v3261 = vsel %vm1306, %v3257, %v3258
      %v3262 = vsel %vm1306, %v3255, %v3256
      %v3263 = vsel %vm1306, %v3254, %v3255
      %v3264 = vsel %vm1306, %v3252, %v3253
      %v3265 = vsel %vm1306, %v3251, %v3252
      %v3266 = vsel %vm1306, %v3249, %v3250
      %v3267 = vsel %vm1306, %v3248, %v3249
      %v3268 = vsel %vm1306, %v3246, %v3247
      %v3269 = vsel %vm1306, %v3245, %v3246
      %v3270 = vsel %vm1306, %v3243, %v3244
      %v3271 = vsel %vm1306, %v3242, %v3243
      %v3272 = vsel %vm1306, %v3240, %v3241
      %v3273 = vsel %vm1306, %v3239, %v3240
      %v3274 = vsel %vm1306, %v3237, %v3238
      %v3275 = vsel %vm1306, %v3236, %v3237
      %v3276 = vsel %vm1306, %v3234, %v3235
      %v3277 = vsel %vm1306, %v3233, %v3234
      %v3278 = vsel %vm1306, %v3231, %v3232
      %v3279 = vsel %vm1306, %v3230, %v3231
      %v3280 = vsel %vm1306, %v3228, %v3229
      %v3281 = vsel %vm1306, %v3227, %v3228
      %v3282 = vsel %vm1306, %v3225, %v3226
      %v3283 = vsel %vm1306, %v3224, %v3225
      %v3284 = vsel %vm1306, %v3222, %v3223
      %v3285 = vsel %vm1306, %v3221, %v3222
      %v3286 = vsel %vm1306, %v3219, %v3220
      %v3287 = vsel %vm1306, %v3218, %v3219
      %v3288 = vsel %vm1306, %v3216, %v3217
      %v3289 = vsel %vm1306, %v3215, %v3216
      %v3290 = vsel %vm1306, %v3213, %v3214
      %v3291 = vsel %vm1306, %v3212, %v3213
      %v3292 = vmax.f32 %v3180, %v3291
      %v3293 = vmax.f32 %v3181, %v3290
      %v3294 = vmax.f32 %v3182, %v3289
      %v3295 = vmax.f32 %v3183, %v3288
      %v3296 = vmax.f32 %v3184, %v3287
      %v3297 = vmax.f32 %v3185, %v3286
      %v3298 = vmax.f32 %v3186, %v3285
      %v3299 = vmax.f32 %v3187, %v3284
      %v3300 = vmax.f32 %v3188, %v3283
      %v3301 = vmax.f32 %v3189, %v3282
      %v3302 = vmax.f32 %v3190, %v3281
      %v3303 = vmax.f32 %v3191, %v3280
      %v3304 = vmax.f32 %v3192, %v3279
      %v3305 = vmax.f32 %v3193, %v3278
      %v3306 = vmax.f32 %v3194, %v3277
      %v3307 = vmax.f32 %v3195, %v3276
      %v3308 = vmax.f32 %v3196, %v3275
      %v3309 = vmax.f32 %v3197, %v3274
      %v3310 = vmax.f32 %v3198, %v3273
      %v3311 = vmax.f32 %v3199, %v3272
      %v3312 = vmax.f32 %v3200, %v3271
      %v3313 = vmax.f32 %v3201, %v3270
      %v3314 = vmax.f32 %v3202, %v3269
      %v3315 = vmax.f32 %v3203, %v3268
      %v3316 = vmax.f32 %v3204, %v3267
      %v3317 = vmax.f32 %v3205, %v3266
      %v3318 = vmax.f32 %v3206, %v3265
      %v3319 = vmax.f32 %v3207, %v3264
      %v3320 = vmax.f32 %v3208, %v3263
      %v3321 = vmax.f32 %v3209, %v3262
      %v3322 = vmax.f32 %v3210, %v3261
      %v3323 = vmax.f32 %v3211, %v3260
      %v3324 = vpack.c.bf16 %v3293, %v3292
      %v3325 = vpack.c.bf16 %v3295, %v3294
      %v3326 = vpack.c.bf16 %v3297, %v3296
      %v3327 = vpack.c.bf16 %v3299, %v3298
      %v3328 = vpack.c.bf16 %v3301, %v3300
      %v3329 = vpack.c.bf16 %v3303, %v3302
      %v3330 = vpack.c.bf16 %v3305, %v3304
      %v3331 = vpack.c.bf16 %v3307, %v3306
      %v3332 = vpack.c.bf16 %v3309, %v3308
      %v3333 = vpack.c.bf16 %v3311, %v3310
      %v3334 = vpack.c.bf16 %v3313, %v3312
      %v3335 = vpack.c.bf16 %v3315, %v3314
      %v3336 = vpack.c.bf16 %v3317, %v3316
      %v3337 = vpack.c.bf16 %v3319, %v3318
      %v3338 = vpack.c.bf16 %v3321, %v3320
      %v3339 = vpack.c.bf16 %v3323, %v3322
      %s3340 = scalar_lea.vmem %s3, 3
      %v3341 = vld [vmem:[%s3340] sm:$0x1]
      %v3343 = vsel %vm615, %v3324, 0
      %v3346 = vsel %vm615, %v3325, 0
      %v3349 = vsel %vm615, %v3326, 0
      %v3352 = vsel %vm615, %v3327, 0
      %v3355 = vsel %vm615, %v3328, 0
      %v3358 = vsel %vm615, %v3329, 0
      %v3361 = vsel %vm615, %v3330, 0
      %v3364 = vsel %vm615, %v3331, 0
      %v3367 = vsel %vm615, %v3332, 0
      %v3370 = vsel %vm615, %v3333, 0
      %v3373 = vsel %vm615, %v3334, 0
      %v3376 = vsel %vm615, %v3335, 0
      %v3379 = vsel %vm615, %v3336, 0
      %v3382 = vsel %vm615, %v3337, 0
      %v3385 = vsel %vm615, %v3338, 0
      %v3388 = vsel %vm615, %v3339, 0
      %v3391 = vsel %vm1469, %v3341, 0
      %3393 = vmatpush.bf16.msra.mxu0 0
      %3394 = vmatpush.bf16.msra.mxu0 0
      %3395 = vmatpush.bf16.msra.mxu0 0
      %3396 = vmatpush.bf16.msra.mxu0 0
      %3397 = vmatpush.bf16.msra.mxu0 0
      %3398 = vmatpush.bf16.msra.mxu0 0
      %3399 = vmatpush.bf16.msra.mxu0 0
      %3400 = vmatpush.bf16.msra.mxu0 %v3391
      %3401 = vmatmul.bf16.gmra.mxu0 %v3343
      %v3402 = vpop.f32.mrf.mxu0
      %v3403 = vadd.f32 0.0, %v3402
      %v3404 = vpop.f32.mrf.mxu0
      %v3405 = vadd.f32 0.0, %v3404
      %3406 = vmatmul.bf16.gmra.mxu0 %v3346
      %v3407 = vpop.f32.mrf.mxu0
      %v3408 = vadd.f32 0.0, %v3407
      %v3409 = vpop.f32.mrf.mxu0
      %v3410 = vadd.f32 0.0, %v3409
      %3411 = vmatmul.bf16.gmra.mxu0 %v3349
      %v3412 = vpop.f32.mrf.mxu0
      %v3413 = vadd.f32 0.0, %v3412
      %v3414 = vpop.f32.mrf.mxu0
      %v3415 = vadd.f32 0.0, %v3414
      %3416 = vmatmul.bf16.gmra.mxu0 %v3352
      %v3417 = vpop.f32.mrf.mxu0
      %v3418 = vadd.f32 0.0, %v3417
      %v3419 = vpop.f32.mrf.mxu0
      %v3420 = vadd.f32 0.0, %v3419
      %3421 = vmatmul.bf16.gmra.mxu0 %v3355
      %v3422 = vpop.f32.mrf.mxu0
      %v3423 = vadd.f32 0.0, %v3422
      %v3424 = vpop.f32.mrf.mxu0
      %v3425 = vadd.f32 0.0, %v3424
      %3426 = vmatmul.bf16.gmra.mxu0 %v3358
      %v3427 = vpop.f32.mrf.mxu0
      %v3428 = vadd.f32 0.0, %v3427
      %v3429 = vpop.f32.mrf.mxu0
      %v3430 = vadd.f32 0.0, %v3429
      %3431 = vmatmul.bf16.gmra.mxu0 %v3361
      %v3432 = vpop.f32.mrf.mxu0
      %v3433 = vadd.f32 0.0, %v3432
      %v3434 = vpop.f32.mrf.mxu0
      %v3435 = vadd.f32 0.0, %v3434
      %3436 = vmatmul.bf16.gmra.mxu0 %v3364
      %v3437 = vpop.f32.mrf.mxu0
      %v3438 = vadd.f32 0.0, %v3437
      %v3439 = vpop.f32.mrf.mxu0
      %v3440 = vadd.f32 0.0, %v3439
      %3441 = vmatmul.bf16.gmra.mxu0 %v3367
      %v3442 = vpop.f32.mrf.mxu0
      %v3443 = vadd.f32 0.0, %v3442
      %v3444 = vpop.f32.mrf.mxu0
      %v3445 = vadd.f32 0.0, %v3444
      %3446 = vmatmul.bf16.gmra.mxu0 %v3370
      %v3447 = vpop.f32.mrf.mxu0
      %v3448 = vadd.f32 0.0, %v3447
      %v3449 = vpop.f32.mrf.mxu0
      %v3450 = vadd.f32 0.0, %v3449
      %3451 = vmatmul.bf16.gmra.mxu0 %v3373
      %v3452 = vpop.f32.mrf.mxu0
      %v3453 = vadd.f32 0.0, %v3452
      %v3454 = vpop.f32.mrf.mxu0
      %v3455 = vadd.f32 0.0, %v3454
      %3456 = vmatmul.bf16.gmra.mxu0 %v3376
      %v3457 = vpop.f32.mrf.mxu0
      %v3458 = vadd.f32 0.0, %v3457
      %v3459 = vpop.f32.mrf.mxu0
      %v3460 = vadd.f32 0.0, %v3459
      %3461 = vmatmul.bf16.gmra.mxu0 %v3379
      %v3462 = vpop.f32.mrf.mxu0
      %v3463 = vadd.f32 0.0, %v3462
      %v3464 = vpop.f32.mrf.mxu0
      %v3465 = vadd.f32 0.0, %v3464
      %3466 = vmatmul.bf16.gmra.mxu0 %v3382
      %v3467 = vpop.f32.mrf.mxu0
      %v3468 = vadd.f32 0.0, %v3467
      %v3469 = vpop.f32.mrf.mxu0
      %v3470 = vadd.f32 0.0, %v3469
      %3471 = vmatmul.bf16.gmra.mxu0 %v3385
      %v3472 = vpop.f32.mrf.mxu0
      %v3473 = vadd.f32 0.0, %v3472
      %v3474 = vpop.f32.mrf.mxu0
      %v3475 = vadd.f32 0.0, %v3474
      %3476 = vmatmul.bf16.gmra.mxu0 %v3388
      %v3477 = vpop.f32.mrf.mxu0
      %v3478 = vadd.f32 0.0, %v3477
      %v3479 = vpop.f32.mrf.mxu0
      %v3480 = vadd.f32 0.0, %v3479
      %3481 = vdwg.mxu0
      %v3482 = vadd.f32 %v2592, %v3403
      %v3483 = vadd.f32 %v2593, %v3405
      %v3484 = vadd.f32 %v2594, %v3408
      %v3485 = vadd.f32 %v2595, %v3410
      %v3486 = vadd.f32 %v2596, %v3413
      %v3487 = vadd.f32 %v2597, %v3415
      %v3488 = vadd.f32 %v2598, %v3418
      %v3489 = vadd.f32 %v2599, %v3420
      %v3490 = vadd.f32 %v2600, %v3423
      %v3491 = vadd.f32 %v2601, %v3425
      %v3492 = vadd.f32 %v2602, %v3428
      %v3493 = vadd.f32 %v2603, %v3430
      %v3494 = vadd.f32 %v2604, %v3433
      %v3495 = vadd.f32 %v2605, %v3435
      %v3496 = vadd.f32 %v2606, %v3438
      %v3497 = vadd.f32 %v2607, %v3440
      %v3498 = vadd.f32 %v2608, %v3443
      %v3499 = vadd.f32 %v2609, %v3445
      %v3500 = vadd.f32 %v2610, %v3448
      %v3501 = vadd.f32 %v2611, %v3450
      %v3502 = vadd.f32 %v2612, %v3453
      %v3503 = vadd.f32 %v2613, %v3455
      %v3504 = vadd.f32 %v2614, %v3458
      %v3505 = vadd.f32 %v2615, %v3460
      %v3506 = vadd.f32 %v2616, %v3463
      %v3507 = vadd.f32 %v2617, %v3465
      %v3508 = vadd.f32 %v2618, %v3468
      %v3509 = vadd.f32 %v2619, %v3470
      %v3510 = vadd.f32 %v2620, %v3473
      %v3511 = vadd.f32 %v2621, %v3475
      %v3512 = vadd.f32 %v2622, %v3478
      %v3513 = vadd.f32 %v2623, %v3480
      %v3514 = vld [vmem:[%s4] sm:$0x1]
      %v3516 = vperm.slane %v3514, 0
      %v3518 = vadd.f32 %v3482, %v3516
      %v3519 = vadd.f32 %v3483, %v3516
      %v3520 = vadd.f32 %v3484, %v3516
      %v3521 = vadd.f32 %v3485, %v3516
      %v3522 = vadd.f32 %v3486, %v3516
      %v3523 = vadd.f32 %v3487, %v3516
      %v3524 = vadd.f32 %v3488, %v3516
      %v3525 = vadd.f32 %v3489, %v3516
      %v3526 = vadd.f32 %v3490, %v3516
      %v3527 = vadd.f32 %v3491, %v3516
      %v3528 = vadd.f32 %v3492, %v3516
      %v3529 = vadd.f32 %v3493, %v3516
      %v3530 = vadd.f32 %v3494, %v3516
      %v3531 = vadd.f32 %v3495, %v3516
      %v3532 = vadd.f32 %v3496, %v3516
      %v3533 = vadd.f32 %v3497, %v3516
      %v3534 = vadd.f32 %v3498, %v3516
      %v3535 = vadd.f32 %v3499, %v3516
      %v3536 = vadd.f32 %v3500, %v3516
      %v3537 = vadd.f32 %v3501, %v3516
      %v3538 = vadd.f32 %v3502, %v3516
      %v3539 = vadd.f32 %v3503, %v3516
      %v3540 = vadd.f32 %v3504, %v3516
      %v3541 = vadd.f32 %v3505, %v3516
      %v3542 = vadd.f32 %v3506, %v3516
      %v3543 = vadd.f32 %v3507, %v3516
      %v3544 = vadd.f32 %v3508, %v3516
      %v3545 = vadd.f32 %v3509, %v3516
      %v3546 = vadd.f32 %v3510, %v3516
      %v3547 = vadd.f32 %v3511, %v3516
      %v3548 = vadd.f32 %v3512, %v3516
      %v3549 = vadd.f32 %v3513, %v3516
      %v3550 = vmax.f32 %v3518, 0.0
      %v3551 = vmax.f32 %v3519, 0.0
      %v3552 = vmax.f32 %v3520, 0.0
      %v3553 = vmax.f32 %v3521, 0.0
      %v3554 = vmax.f32 %v3522, 0.0
      %v3555 = vmax.f32 %v3523, 0.0
      %v3556 = vmax.f32 %v3524, 0.0
      %v3557 = vmax.f32 %v3525, 0.0
      %v3558 = vmax.f32 %v3526, 0.0
      %v3559 = vmax.f32 %v3527, 0.0
      %v3560 = vmax.f32 %v3528, 0.0
      %v3561 = vmax.f32 %v3529, 0.0
      %v3562 = vmax.f32 %v3530, 0.0
      %v3563 = vmax.f32 %v3531, 0.0
      %v3564 = vmax.f32 %v3532, 0.0
      %v3565 = vmax.f32 %v3533, 0.0
      %v3566 = vmax.f32 %v3534, 0.0
      %v3567 = vmax.f32 %v3535, 0.0
      %v3568 = vmax.f32 %v3536, 0.0
      %v3569 = vmax.f32 %v3537, 0.0
      %v3570 = vmax.f32 %v3538, 0.0
      %v3571 = vmax.f32 %v3539, 0.0
      %v3572 = vmax.f32 %v3540, 0.0
      %v3573 = vmax.f32 %v3541, 0.0
      %v3574 = vmax.f32 %v3542, 0.0
      %v3575 = vmax.f32 %v3543, 0.0
      %v3576 = vmax.f32 %v3544, 0.0
      %v3577 = vmax.f32 %v3545, 0.0
      %v3578 = vmax.f32 %v3546, 0.0
      %v3579 = vmax.f32 %v3547, 0.0
      %v3580 = vmax.f32 %v3548, 0.0
      %v3581 = vmax.f32 %v3549, 0.0
      %v3582 = vmin.f32 %v3550, 6.0
      %v3583 = vmin.f32 %v3551, 6.0
      %v3584 = vmin.f32 %v3552, 6.0
      %v3585 = vmin.f32 %v3553, 6.0
      %v3586 = vmin.f32 %v3554, 6.0
      %v3587 = vmin.f32 %v3555, 6.0
      %v3588 = vmin.f32 %v3556, 6.0
      %v3589 = vmin.f32 %v3557, 6.0
      %v3590 = vmin.f32 %v3558, 6.0
      %v3591 = vmin.f32 %v3559, 6.0
      %v3592 = vmin.f32 %v3560, 6.0
      %v3593 = vmin.f32 %v3561, 6.0
      %v3594 = vmin.f32 %v3562, 6.0
      %v3595 = vmin.f32 %v3563, 6.0
      %v3596 = vmin.f32 %v3564, 6.0
      %v3597 = vmin.f32 %v3565, 6.0
      %v3598 = vmin.f32 %v3566, 6.0
      %v3599 = vmin.f32 %v3567, 6.0
      %v3600 = vmin.f32 %v3568, 6.0
      %v3601 = vmin.f32 %v3569, 6.0
      %v3602 = vmin.f32 %v3570, 6.0
      %v3603 = vmin.f32 %v3571, 6.0
      %v3604 = vmin.f32 %v3572, 6.0
      %v3605 = vmin.f32 %v3573, 6.0
      %v3606 = vmin.f32 %v3574, 6.0
      %v3607 = vmin.f32 %v3575, 6.0
      %v3608 = vmin.f32 %v3576, 6.0
      %v3609 = vmin.f32 %v3577, 6.0
      %v3610 = vmin.f32 %v3578, 6.0
      %v3611 = vmin.f32 %v3579, 6.0
      %v3612 = vmin.f32 %v3580, 6.0
      %v3613 = vmin.f32 %v3581, 6.0
      %vm3614 = vcmask 64512
      %3615 = vst.msk [vmem:[%s224] sm:$0xff] %vm3614, %v3582
      %3616 = vst.msk [vmem:[%s224 + $0x8] sm:$0xff] %vm3614, %v3583
      %3617 = vst.msk [vmem:[%s224 + $0x10] sm:$0xff] %vm3614, %v3584
      %3618 = vst.msk [vmem:[%s224 + $0x18] sm:$0xff] %vm3614, %v3585
      %3619 = vst.msk [vmem:[%s224 + $0x20] sm:$0xff] %vm3614, %v3586
      %3620 = vst.msk [vmem:[%s224 + $0x28] sm:$0xff] %vm3614, %v3587
      %3621 = vst.msk [vmem:[%s224 + $0x30] sm:$0xff] %vm3614, %v3588
      %3622 = vst.msk [vmem:[%s224 + $0x38] sm:$0xff] %vm3614, %v3589
      %3623 = vst.msk [vmem:[%s224 + $0x40] sm:$0xff] %vm3614, %v3590
      %3624 = vst.msk [vmem:[%s224 + $0x48] sm:$0xff] %vm3614, %v3591
      %3625 = vst.msk [vmem:[%s224 + $0x50] sm:$0xff] %vm3614, %v3592
      %3626 = vst.msk [vmem:[%s224 + $0x58] sm:$0xff] %vm3614, %v3593
      %3627 = vst.msk [vmem:[%s224 + $0x60] sm:$0xff] %vm3614, %v3594
      %3628 = vst.msk [vmem:[%s224 + $0x68] sm:$0xff] %vm3614, %v3595
      %3629 = vst.msk [vmem:[%s224 + $0x70] sm:$0xff] %vm3614, %v3596
      %3630 = vst.msk [vmem:[%s224 + $0x78] sm:$0xff] %vm3614, %v3597
      %3631 = vst.msk [vmem:[%s224 + $0x80] sm:$0xff] %vm3614, %v3598
      %3632 = vst.msk [vmem:[%s224 + $0x88] sm:$0xff] %vm3614, %v3599
      %3633 = vst.msk [vmem:[%s224 + $0x90] sm:$0xff] %vm3614, %v3600
      %3634 = vst.msk [vmem:[%s224 + $0x98] sm:$0xff] %vm3614, %v3601
      %3635 = vst.msk [vmem:[%s224 + $0xa0] sm:$0xff] %vm3614, %v3602
      %3636 = vst.msk [vmem:[%s224 + $0xa8] sm:$0xff] %vm3614, %v3603
      %3637 = vst.msk [vmem:[%s224 + $0xb0] sm:$0xff] %vm3614, %v3604
      %3638 = vst.msk [vmem:[%s224 + $0xb8] sm:$0xff] %vm3614, %v3605
      %3639 = vst.msk [vmem:[%s224 + $0xc0] sm:$0xff] %vm3614, %v3606
      %3640 = vst.msk [vmem:[%s224 + $0xc8] sm:$0xff] %vm3614, %v3607
      %3641 = vst.msk [vmem:[%s224 + $0xd0] sm:$0xff] %vm3614, %v3608
      %3642 = vst.msk [vmem:[%s224 + $0xd8] sm:$0xff] %vm3614, %v3609
      %3643 = vst.msk [vmem:[%s224 + $0xe0] sm:$0xff] %vm3614, %v3610
      %3644 = vst.msk [vmem:[%s224 + $0xe8] sm:$0xff] %vm3614, %v3611
      %3645 = vst.msk [vmem:[%s224 + $0xf0] sm:$0xff] %vm3614, %v3612
      %3646 = vst.msk [vmem:[%s224 + $0xf8] sm:$0xff] %vm3614, %v3613
      %p3647 = scmp.lt.s32.totalorder %s16, 1
      %s3648 = scalar_select %p3647, %s16, 1
      %s3649 = smul.addr %s3648, 32
      %s3650 = smul.addr %s3649, 8
      %s3651 = scalar_lea.vmem %s5, %s3650
      // Predicated region
      $region45: #{tpu_custom_call.1} parent=39 // pred_check
        %p3652 = pneg %p144
      $region46: #{tpu_custom_call.1} parent=39 // pred_check_branch
        %3654 = sbr.rel (%p3652) target = $region48
      $region47: #{tpu_custom_call.1} parent=39 // pred_region
        _
      $region48: #{tpu_custom_call.1} parent=39 // pred_fallthru
        _
    $region40: #{tpu_custom_call.1} parent=5 // pred_fallthru
      _
    %p3655 = scmp.le.s32.totalorder 2, %s11
    // Predicated region
    $region49: #{tpu_custom_call.1} parent=5 // pred_check
      %p3656 = pneg %p3655
    $region50: #{tpu_custom_call.1} parent=5 // pred_check_branch
      %3658 = sbr.rel (%p3656) target = $region52
    $region51: #{tpu_custom_call.1} parent=5 // pred_region
      %s3659 = ssub.s32 %s11, 2
      // Predicated region
      $region53: #{tpu_custom_call.1} parent=51 // pred_check
        %p3660 = pneg %p150
      $region54: #{tpu_custom_call.1} parent=51 // pred_check_branch
        %3662 = sbr.rel (%p3660) target = $region56
      $region55: #{tpu_custom_call.1} parent=51 // pred_region
        %p3663 = scmp.lt.s32.totalorder %s17, 1
        %s3664 = scalar_select %p3663, %s17, 1
        %s3665 = smul.addr %s3664, 32
        %s3666 = smul.addr %s3665, 8
        %s3667 = scalar_lea.vmem %s5, %s3666
      $region56: #{tpu_custom_call.1} parent=51 // pred_fallthru
        _
    $region52: #{tpu_custom_call.1} parent=5 // pred_fallthru
      _
  $region6: #{tpu_custom_call.1} parent=0 // loop_footer
    %s15 = sadd.s32 1, %s11
  $region7: #{tpu_custom_call.1} parent=0 // loop_footer_branch
    %10 = sbr.rel target = $region3
  $region8: #{tpu_custom_call.1} parent=0 // loop_exit
    _

</llo_original>
